<compile_context>
chip_gen: v5e
topology: v5e:2x2
jax: 0.10.0
libtpu: 0.0.40
codegen_flags: <defaults>
</compile_context>

<pallas_src>
import functools

import numpy as np
import jax
import jax.numpy as jnp
from jax.experimental import pallas as pl
from jax.experimental.pallas import tpu as pltpu


# ----------------------------------------------------------------------------
# Pallas kernels
# ----------------------------------------------------------------------------

def _matmul_bias_act_kernel(x_ref, w_ref, b_ref, o_ref, *, act):
    """Fused (M, K) @ (K, N) + bias with optional relu / sigmoid epilogue.

    LHS is cast to bf16 in-kernel (VPU); accumulate + epilogue in f32.
    """
    x = x_ref[...].astype(jnp.bfloat16)
    acc = jnp.dot(x, w_ref[...], preferred_element_type=jnp.float32)
    acc = acc + b_ref[...]
    if act == "relu":
        acc = jnp.maximum(acc, 0.0)
    elif act == "sigmoid":
        acc = jax.nn.sigmoid(acc)
    o_ref[...] = acc.astype(o_ref.dtype)


def _mlp2_kernel(x_ref, w1_ref, b1_ref, w2_ref, b2_ref, o_ref):
    """relu(relu(x @ W1 + b1) @ W2 + b2) — fc1 + fc2 fused in one kernel
    (no HBM round-trip for the (B, hidden) intermediate)."""
    x = x_ref[...].astype(jnp.bfloat16)
    h = jnp.dot(x, w1_ref[...], preferred_element_type=jnp.float32)
    h = jnp.maximum(h + b1_ref[...], 0.0)
    h = jnp.dot(h.astype(jnp.bfloat16), w2_ref[...],
                preferred_element_type=jnp.float32)
    o_ref[...] = jnp.maximum(h + b2_ref[...], 0.0).astype(o_ref.dtype)


def _round_up(v, m):
    return (v + m - 1) // m * m


def matmul_bias_act(x, w, b, act=None, cost=None):
    """x: (M, K) f32, w: (K, N) bf16, b: (1, N) f32 -> (M, N) f32."""
    M, K = x.shape
    N = w.shape[1]
    kernel = functools.partial(_matmul_bias_act_kernel, act=act)

    if M <= 2048:
        # Single VMEM-resident block: block_shape == full array dims, so the
        # (8,128) divisibility rule does not apply and no row padding or
        # output slicing is needed (M = 50 / 162 / 578 at B=2).
        return pl.pallas_call(
            kernel,
            out_shape=jax.ShapeDtypeStruct((M, N), jnp.float32),
            grid_spec=pltpu.PrefetchScalarGridSpec(
                num_scalar_prefetch=0,
                grid=(1,),
                in_specs=[
                    pl.BlockSpec((M, K), lambda i: (0, 0)),
                    pl.BlockSpec((K, N), lambda i: (0, 0)),
                    pl.BlockSpec((1, N), lambda i: (0, 0)),
                ],
                out_specs=pl.BlockSpec((M, N), lambda i: (0, 0)),
            ),
            cost_estimate=cost,
        )(x, w, b)

    # Large-batch path (e.g. scaled-up B, v7x megacore): tile rows with a
    # "parallel" grid so both TensorCores get work and per-tile VMEM stays
    # small.  Padded rows compute garbage that is sliced off below.
    TM = 512
    Mp = _round_up(M, TM)
    x_pad = jnp.pad(x, ((0, Mp - M), (0, 0))) if Mp != M else x
    out = pl.pallas_call(
        kernel,
        out_shape=jax.ShapeDtypeStruct((Mp, N), jnp.float32),
        grid_spec=pltpu.PrefetchScalarGridSpec(
            num_scalar_prefetch=0,
            grid=(Mp // TM,),
            in_specs=[
                pl.BlockSpec((TM, K), lambda i: (i, 0)),
                pl.BlockSpec((K, N), lambda i: (0, 0)),
                pl.BlockSpec((1, N), lambda i: (0, 0)),
            ],
            out_specs=pl.BlockSpec((TM, N), lambda i: (i, 0)),
        ),
        compiler_params=pltpu.CompilerParams(
            dimension_semantics=("parallel",)),
        cost_estimate=cost,
    )(x_pad, w, b)
    return out[:M]


def mlp_relu2(x, w1, b1, w2, b2):
    """x: (B, L) f32 -> relu(relu(x@w1+b1)@w2+b2): (B, H2) f32. One pallas_call."""
    B, L = x.shape
    H1 = w1.shape[1]
    H2 = w2.shape[1]
    cost = pl.CostEstimate(
        flops=2 * B * L * H1 + 2 * B * H1 * H2,
        transcendentals=0,
        bytes_accessed=(B * L + B * H2) * 4 + (L * H1 + H1 * H2) * 2
        + (H1 + H2) * 4,
    )
    return pl.pallas_call(
        _mlp2_kernel,
        out_shape=jax.ShapeDtypeStruct((B, H2), jnp.float32),
        grid_spec=pltpu.PrefetchScalarGridSpec(
            num_scalar_prefetch=0,
            grid=(1,),
            in_specs=[
                pl.BlockSpec((B, L), lambda i: (0, 0)),
                pl.BlockSpec((L, H1), lambda i: (0, 0)),
                pl.BlockSpec((1, H1), lambda i: (0, 0)),
                pl.BlockSpec((H1, H2), lambda i: (0, 0)),
                pl.BlockSpec((1, H2), lambda i: (0, 0)),
            ],
            out_specs=pl.BlockSpec((B, H2), lambda i: (0, 0)),
        ),
        cost_estimate=cost,
    )(x, w1, b1, w2, b2)


# ----------------------------------------------------------------------------
# One-time weight preprocessing (runs OUTSIDE the jitted forward)
# ----------------------------------------------------------------------------
# ConvTranspose2d(k=4, s=2, p=1) sub-pixel phase decomposition:
# For output pixel (2m+r, 2n+s), with xp the 1-zero-padded input:
#   out = sum_{pr,pc in {0,1}} xp[m+r+pr, n+s+pc] * W[:, :, KY[r][pr], KX[s][pc]]
# where KY[0]=(3,1), KY[1]=(2,0) (same for KX), W in torch layout (Cin,Cout,4,4).

_KSEL = ((3, 1), (2, 0))


def _phase_weight_matrix(w_t, b, cout_pad):
    """torch (Cin, Cout, 4, 4) -> (4*Cin, 4*cout_pad) phase-stacked matrix.

    Phase (r, s) occupies N-columns [(2r+s)*cout_pad : (2r+s+1)*cout_pad);
    K rows are ordered (pr, pc, ci) to match the im2col concat order.
    """
    cin, cout = w_t.shape[0], w_t.shape[1]
    blocks, biases = [], []
    for r in (0, 1):
        for s in (0, 1):
            ky = jnp.array(_KSEL[r])
            kx = jnp.array(_KSEL[s])
            sub = w_t[:, :, ky[:, None], kx[None, :]]          # (Cin, Cout, 2, 2)
            blk = jnp.transpose(sub, (2, 3, 0, 1)).reshape(4 * cin, cout)
            bb = b
            if cout_pad > cout:
                blk = jnp.pad(blk, ((0, 0), (0, cout_pad - cout)))
                bb = jnp.pad(b, (0, cout_pad - cout))
            blocks.append(blk)
            biases.append(bb)
    return jnp.concatenate(blocks, axis=1), jnp.concatenate(biases, axis=0)


def prepare_params(p):
    """Hoisted weight prep: fc2 column permutation, phase-stacked deconv
    matrices, bf16 weight casts, (1, N) f32 biases.  Call once at load time."""
    # Permute fc2 columns so (B, 1024) reshapes directly to NHWC (B,4,4,64),
    # matching torch's x.view(-1, 64, 4, 4) (NCHW) without a runtime transpose.
    perm = np.transpose(np.arange(64 * 16).reshape(64, 4, 4), (1, 2, 0)).reshape(-1)

    def lin(w, b):
        return w.astype(jnp.bfloat16), b.reshape(1, -1).astype(jnp.float32)

    def deconv(w_t, b, cout_pad):
        wmat, bvec = _phase_weight_matrix(w_t, b, cout_pad)
        return wmat.astype(jnp.bfloat16), bvec.reshape(1, -1).astype(jnp.float32)

    fc1_w, fc1_b = lin(p["fc1_w"], p["fc1_b"])
    fc2_w, fc2_b = lin(p["fc2_w"][:, perm], p["fc2_b"][perm])
    dc1_w, dc1_b = deconv(p["dc1_w"], p["dc1_b"], 32)
    dc2_w, dc2_b = deconv(p["dc2_w"], p["dc2_b"], 32)
    # deconv3 Cout=1 zero-padded to 32 per phase -> lane-dense N=128 stores;
    # the [:cout] slice in the phase gather drops the pad columns.
    dc3_w, dc3_b = deconv(p["dc3_w"], p["dc3_b"], 32)
    return dict(fc1_w=fc1_w, fc1_b=fc1_b, fc2_w=fc2_w, fc2_b=fc2_b,
                dc1_w=dc1_w, dc1_b=dc1_b, dc2_w=dc2_w, dc2_b=dc2_b,
                dc3_w=dc3_w, dc3_b=dc3_b)


# ----------------------------------------------------------------------------
# ConvTranspose2d(k=4, s=2, p=1) stage and full forward
# ----------------------------------------------------------------------------

def conv_transpose_stage(x_nhwc, wmat, bvec, *, cout, act):
    """x: (B, H, W, Cin) NHWC; wmat: (4*Cin, 4*coutp) bf16 phase-stacked;
    bvec: (1, 4*coutp) f32.  Returns (B, 2H, 2W, cout) f32."""
    B, H, W, cin = x_nhwc.shape
    coutp = wmat.shape[1] // 4

    # TODO(synk): this im2col + the depth-to-space below stay as XLA glue;
    # pulling them into the kernel (full megakernel) needs in-kernel reshapes
    # across non-8-aligned sublane dims / strided sublane stores.
    xp = jnp.pad(x_nhwc, ((0, 0), (1, 1), (1, 1), (0, 0)))
    # 2x2 im2col over all (H+1)*(W+1) base positions, K order (pr, pc, ci).
    cols = jnp.concatenate(
        [xp[:, pr:pr + H + 1, pc:pc + W + 1, :] for pr in (0, 1) for pc in (0, 1)],
        axis=-1).reshape(B * (H + 1) * (W + 1), 4 * cin)

    M, K, N = cols.shape[0], 4 * cin, 4 * coutp
    cost = pl.CostEstimate(
        flops=2 * M * K * N,
        transcendentals=M * N if act == "sigmoid" else 0,
        bytes_accessed=M * K * 4 + K * N * 2 + N * 4 + M * N * 4)
    out = matmul_bias_act(cols, wmat, bvec, act=act, cost=cost)    # (M, 4*coutp)
    out = out.reshape(B, H + 1, W + 1, 4, coutp)

    # depth-to-space: phase (r, s) at base offset (r, s) -> output (2m+r, 2n+s)
    phases = [out[:, r:r + H, s:s + W, 2 * r + s, :cout]
              for r in (0, 1) for s in (0, 1)]                     # (B, H, W, cout)
    tmp = jnp.stack(phases, axis=3).reshape(B, H, W, 2, 2, cout)
    return tmp.transpose(0, 1, 3, 2, 4, 5).reshape(B, 2 * H, 2 * W, cout)


def mnist_conv_decoder_forward(pp, x):
    """pp: prepare_params(...) output; x: (B, latents) f32 -> (B, 1, 32, 32)."""
    B = x.shape[0]
    h = mlp_relu2(x, pp["fc1_w"], pp["fc1_b"], pp["fc2_w"], pp["fc2_b"])       # (B, 1024)
    h = h.reshape(B, 4, 4, 64)                  # already NHWC (columns pre-permuted)
    h = conv_transpose_stage(h, pp["dc1_w"], pp["dc1_b"], cout=32, act="relu")     # (B, 8, 8,32)
    h = conv_transpose_stage(h, pp["dc2_w"], pp["dc2_b"], cout=32, act="relu")     # (B,16,16,32)
    h = conv_transpose_stage(h, pp["dc3_w"], pp["dc3_b"], cout=1, act="sigmoid")   # (B,32,32, 1)
    return h.reshape(B, 1, 32, 32)              # C == 1: NHWC -> NCHW is a pure reshape


# ----------------------------------------------------------------------------
# Pure-JAX reference (torch semantics) for the in-script correctness check
# ----------------------------------------------------------------------------

def _ref_deconv(x_nchw, w_t, b):
    rhs = jnp.flip(w_t, (2, 3)).transpose(1, 0, 2, 3)          # (Cout, Cin, 4, 4)
    out = jax.lax.conv_general_dilated(
        x_nchw, rhs, window_strides=(1, 1), padding=((2, 2), (2, 2)),
        lhs_dilation=(2, 2), dimension_numbers=("NCHW", "OIHW", "NCHW"))
    return out + b[None, :, None, None]


def _ref_forward(params, x):
    h = jax.nn.relu(x @ params["fc1_w"] + params["fc1_b"])
    h = jax.nn.relu(h @ params["fc2_w"] + params["fc2_b"])
    y = h.reshape(-1, 64, 4, 4)
    y = jax.nn.relu(_ref_deconv(y, params["dc1_w"], params["dc1_b"]))
    y = jax.nn.relu(_ref_deconv(y, params["dc2_w"], params["dc2_b"]))
    return jax.nn.sigmoid(_ref_deconv(y, params["dc3_w"], params["dc3_b"]))


# ----------------------------------------------------------------------------
# Deterministic synthetic params (shapes follow the torch module)
# ----------------------------------------------------------------------------

def init_params(key, latents, hidden):
    ks = jax.random.split(key, 10)
    s = 0.05
    p = {}
    # Linear weights stored transposed vs torch: (in, out)
    p["fc1_w"] = s * jax.random.normal(ks[0], (latents, hidden), jnp.float32)
    p["fc1_b"] = s * jax.random.normal(ks[1], (hidden,), jnp.float32)
    p["fc2_w"] = s * jax.random.normal(ks[2], (hidden, 64 * 4 * 4), jnp.float32)
    p["fc2_b"] = s * jax.random.normal(ks[3], (64 * 4 * 4,), jnp.float32)
    # ConvTranspose2d weights in torch layout (Cin, Cout, kh, kw)
    p["dc1_w"] = s * jax.random.normal(ks[4], (64, 32, 4, 4), jnp.float32)
    p["dc1_b"] = s * jax.random.normal(ks[5], (32,), jnp.float32)
    p["dc2_w"] = s * jax.random.normal(ks[6], (32, 32, 4, 4), jnp.float32)
    p["dc2_b"] = s * jax.random.normal(ks[7], (32,), jnp.float32)
    p["dc3_w"] = s * jax.random.normal(ks[8], (32, 1, 4, 4), jnp.float32)
    p["dc3_b"] = s * jax.random.normal(ks[9], (1,), jnp.float32)
    return p


if __name__ == "__main__":
    # Config: p = {'z_dim': [16, 16, 16], 'enc_h': [256, ...]}, l = 0
    #   -> latents = 16 + 16 = 32, hidden = 256.
    B = 2
    latents = 32
    hidden = 256

    key = jax.random.PRNGKey(0)
    kx, kp = jax.random.split(key)
    x = jax.random.normal(kx, (B, latents), jnp.float32)
    params = init_params(kp, latents, hidden)

    # One-time weight prep, OUTSIDE the jitted forward.
    prepared = prepare_params(params)
    prepared = jax.tree_util.tree_map(jax.block_until_ready, prepared)

    fwd = jax.jit(mnist_conv_decoder_forward)
    y = jax.block_until_ready(fwd(prepared, x))
    y_ref = jax.block_until_ready(jax.jit(_ref_forward)(params, x))

    assert y.shape == (B, 1, 32, 32), y.shape
    assert bool(jnp.all(jnp.isfinite(y)))
    assert bool(jnp.all((y >= 0.0) & (y <= 1.0)))          # sigmoid range
    max_err = float(jnp.max(jnp.abs(y - y_ref)))
    assert max_err < 2e-2, f"mismatch vs reference: {max_err}"

    print("KERNEL_OK")
</pallas_src>

<mosaic_0001>
module attributes {stable_mosaic.version = 11 : i64} {
  func.func @_matmul_bias_act_kernel(%arg0: i32, %arg1: memref<50x256xf32, #tpu.memory_space<vmem>>, %arg2: memref<256x128xbf16, #tpu.memory_space<vmem>>, %arg3: memref<1x128xf32, #tpu.memory_space<vmem>>, %arg4: memref<50x128xf32, #tpu.memory_space<vmem>>) attributes {dimension_semantics = [#tpu.dimension_semantics<arbitrary>], iteration_bounds = array<i64: 1>, scalar_prefetch = 0 : i64, scratch_operands = 0 : i64, tpu.core_type = #tpu.core_type<tc>, window_params = [{pipeline_mode = #tpu.pipeline_mode<synchronous>, transform_indices = @transform_0, window_bounds = array<i64: 50, 256>}, {pipeline_mode = #tpu.pipeline_mode<synchronous>, transform_indices = @transform_1, window_bounds = array<i64: 256, 128>}, {pipeline_mode = #tpu.pipeline_mode<synchronous>, transform_indices = @transform_2, window_bounds = array<i64: 1, 128>}, {pipeline_mode = #tpu.pipeline_mode<synchronous>, transform_indices = @transform_3, window_bounds = array<i64: 50, 128>}]} {
    %c0 = arith.constant 0 : index
    %c0_0 = arith.constant 0 : index
    %0 = vector.load %arg1[%c0, %c0_0] : memref<50x256xf32, #tpu.memory_space<vmem>>, vector<50x256xf32>
    %1 = arith.truncf %0 : vector<50x256xf32> to vector<50x256xbf16>
    %c0_1 = arith.constant 0 : index
    %c0_2 = arith.constant 0 : index
    %2 = vector.load %arg2[%c0_1, %c0_2] : memref<256x128xbf16, #tpu.memory_space<vmem>>, vector<256x128xbf16>
    %cst = arith.constant dense<0.000000e+00> : vector<50x128xf32>
    %3 = tpu.matmul %1, %2, %cst {dimension_numbers = #tpu.dot_dimension_numbers<[1], [0], [0], [1], [0, 0, 1, 1], [], []>} : vector<50x256xbf16>, vector<256x128xbf16>, vector<50x128xf32> -> vector<50x128xf32>
    %c0_3 = arith.constant 0 : index
    %c0_4 = arith.constant 0 : index
    %4 = vector.load %arg3[%c0_3, %c0_4] : memref<1x128xf32, #tpu.memory_space<vmem>>, vector<1x128xf32>
    %5 = vector.broadcast %4 : vector<1x128xf32> to vector<50x128xf32>
    %6 = arith.addf %3, %5 : vector<50x128xf32>
    %cst_5 = arith.constant 0.000000e+00 : f32
    %7 = vector.broadcast %cst_5 : f32 to vector<50x128xf32>
    %8 = arith.maximumf %6, %7 : vector<50x128xf32>
    %c0_6 = arith.constant 0 : index
    %c0_7 = arith.constant 0 : index
    %9 = vector.load %arg4[%c0_6, %c0_7] : memref<50x128xf32, #tpu.memory_space<vmem>>, vector<50x128xf32>
    tpu.vector_store %arg4[%c0_6, %c0_7], %8 {strides = array<i32>} : memref<50x128xf32, #tpu.memory_space<vmem>>, vector<50x128xf32>,
    return
  }
  func.func @transform_0(%arg0: i32) -> (i32, i32) {
    %c0_i32 = arith.constant 0 : i32
    %c0_i32_0 = arith.constant 0 : i32
    %c0_i32_1 = arith.constant 0 : i32
    return %c0_i32, %c0_i32_0 : i32, i32
  }
  func.func @transform_1(%arg0: i32) -> (i32, i32) {
    %c0_i32 = arith.constant 0 : i32
    %c0_i32_0 = arith.constant 0 : i32
    %c0_i32_1 = arith.constant 0 : i32
    return %c0_i32, %c0_i32_0 : i32, i32
  }
  func.func @transform_2(%arg0: i32) -> (i32, i32) {
    %c0_i32 = arith.constant 0 : i32
    %c0_i32_0 = arith.constant 0 : i32
    %c0_i32_1 = arith.constant 0 : i32
    return %c0_i32, %c0_i32_0 : i32, i32
  }
  func.func @transform_3(%arg0: i32) -> (i32, i32) {
    %c0_i32 = arith.constant 0 : i32
    %c0_i32_0 = arith.constant 0 : i32
    %c0_i32_1 = arith.constant 0 : i32
    return %c0_i32, %c0_i32_0 : i32, i32
  }
}

module attributes {stable_mosaic.version = 11 : i64} {
  func.func @_mlp2_kernel(%arg0: i32, %arg1: memref<2x32xf32, #tpu.memory_space<vmem>>, %arg2: memref<32x256xbf16, #tpu.memory_space<vmem>>, %arg3: memref<1x256xf32, #tpu.memory_space<vmem>>, %arg4: memref<256x1024xbf16, #tpu.memory_space<vmem>>, %arg5: memref<1x1024xf32, #tpu.memory_space<vmem>>, %arg6: memref<2x1024xf32, #tpu.memory_space<vmem>>) attributes {dimension_semantics = [#tpu.dimension_semantics<arbitrary>], iteration_bounds = array<i64: 1>, scalar_prefetch = 0 : i64, scratch_operands = 0 : i64, tpu.core_type = #tpu.core_type<tc>, window_params = [{pipeline_mode = #tpu.pipeline_mode<synchronous>, transform_indices = @transform_0, window_bounds = array<i64: 2, 32>}, {pipeline_mode = #tpu.pipeline_mode<synchronous>, transform_indices = @transform_1, window_bounds = array<i64: 32, 256>}, {pipeline_mode = #tpu.pipeline_mode<synchronous>, transform_indices = @transform_2, window_bounds = array<i64: 1, 256>}, {pipeline_mode = #tpu.pipeline_mode<synchronous>, transform_indices = @transform_3, window_bounds = array<i64: 256, 1024>}, {pipeline_mode = #tpu.pipeline_mode<synchronous>, transform_indices = @transform_4, window_bounds = array<i64: 1, 1024>}, {pipeline_mode = #tpu.pipeline_mode<synchronous>, transform_indices = @transform_5, window_bounds = array<i64: 2, 1024>}]} {
    %c0 = arith.constant 0 : index
    %c0_0 = arith.constant 0 : index
    %0 = vector.load %arg1[%c0, %c0_0] : memref<2x32xf32, #tpu.memory_space<vmem>>, vector<2x32xf32>
    %1 = arith.truncf %0 : vector<2x32xf32> to vector<2x32xbf16>
    %c0_1 = arith.constant 0 : index
    %c0_2 = arith.constant 0 : index
    %2 = vector.load %arg2[%c0_1, %c0_2] : memref<32x256xbf16, #tpu.memory_space<vmem>>, vector<32x256xbf16>
    %cst = arith.constant dense<0.000000e+00> : vector<2x256xf32>
    %3 = tpu.matmul %1, %2, %cst {dimension_numbers = #tpu.dot_dimension_numbers<[1], [0], [0], [1], [0, 0, 1, 1], [], []>} : vector<2x32xbf16>, vector<32x256xbf16>, vector<2x256xf32> -> vector<2x256xf32>
    %c0_3 = arith.constant 0 : index
    %c0_4 = arith.constant 0 : index
    %4 = vector.load %arg3[%c0_3, %c0_4] : memref<1x256xf32, #tpu.memory_space<vmem>>, vector<1x256xf32>
    %5 = vector.broadcast %4 : vector<1x256xf32> to vector<2x256xf32>
    %6 = arith.addf %3, %5 : vector<2x256xf32>
    %cst_5 = arith.constant 0.000000e+00 : f32
    %7 = vector.broadcast %cst_5 : f32 to vector<2x256xf32>
    %8 = arith.maximumf %6, %7 : vector<2x256xf32>
    %9 = arith.truncf %8 : vector<2x256xf32> to vector<2x256xbf16>
    %c0_6 = arith.constant 0 : index
    %c0_7 = arith.constant 0 : index
    %10 = vector.load %arg4[%c0_6, %c0_7] : memref<256x1024xbf16, #tpu.memory_space<vmem>>, vector<256x1024xbf16>
    %cst_8 = arith.constant dense<0.000000e+00> : vector<2x1024xf32>
    %11 = tpu.matmul %9, %10, %cst_8 {dimension_numbers = #tpu.dot_dimension_numbers<[1], [0], [0], [1], [0, 0, 1, 1], [], []>} : vector<2x256xbf16>, vector<256x1024xbf16>, vector<2x1024xf32> -> vector<2x1024xf32>
    %c0_9 = arith.constant 0 : index
    %c0_10 = arith.constant 0 : index
    %12 = vector.load %arg5[%c0_9, %c0_10] : memref<1x1024xf32, #tpu.memory_space<vmem>>, vector<1x1024xf32>
    %13 = vector.broadcast %12 : vector<1x1024xf32> to vector<2x1024xf32>
    %14 = arith.addf %11, %13 : vector<2x1024xf32>
    %cst_11 = arith.constant 0.000000e+00 : f32
    %15 = vector.broadcast %cst_11 : f32 to vector<2x1024xf32>
    %16 = arith.maximumf %14, %15 : vector<2x1024xf32>
    %c0_12 = arith.constant 0 : index
    %c0_13 = arith.constant 0 : index
    %17 = vector.load %arg6[%c0_12, %c0_13] : memref<2x1024xf32, #tpu.memory_space<vmem>>, vector<2x1024xf32>
    tpu.vector_store %arg6[%c0_12, %c0_13], %16 {strides = array<i32>} : memref<2x1024xf32, #tpu.memory_space<vmem>>, vector<2x1024xf32>,
    return
  }
  func.func @transform_0(%arg0: i32) -> (i32, i32) {
    %c0_i32 = arith.constant 0 : i32
    %c0_i32_0 = arith.constant 0 : i32
    %c0_i32_1 = arith.constant 0 : i32
    return %c0_i32, %c0_i32_0 : i32, i32
  }
  func.func @transform_1(%arg0: i32) -> (i32, i32) {
    %c0_i32 = arith.constant 0 : i32
    %c0_i32_0 = arith.constant 0 : i32
    %c0_i32_1 = arith.constant 0 : i32
    return %c0_i32, %c0_i32_0 : i32, i32
  }
  func.func @transform_2(%arg0: i32) -> (i32, i32) {
    %c0_i32 = arith.constant 0 : i32
    %c0_i32_0 = arith.constant 0 : i32
    %c0_i32_1 = arith.constant 0 : i32
    return %c0_i32, %c0_i32_0 : i32, i32
  }
  func.func @transform_3(%arg0: i32) -> (i32, i32) {
    %c0_i32 = arith.constant 0 : i32
    %c0_i32_0 = arith.constant 0 : i32
    %c0_i32_1 = arith.constant 0 : i32
    return %c0_i32, %c0_i32_0 : i32, i32
  }
  func.func @transform_4(%arg0: i32) -> (i32, i32) {
    %c0_i32 = arith.constant 0 : i32
    %c0_i32_0 = arith.constant 0 : i32
    %c0_i32_1 = arith.constant 0 : i32
    return %c0_i32, %c0_i32_0 : i32, i32
  }
  func.func @transform_5(%arg0: i32) -> (i32, i32) {
    %c0_i32 = arith.constant 0 : i32
    %c0_i32_0 = arith.constant 0 : i32
    %c0_i32_1 = arith.constant 0 : i32
    return %c0_i32, %c0_i32_0 : i32, i32
  }
}

module attributes {stable_mosaic.version = 11 : i64} {
  func.func @_matmul_bias_act_kernel(%arg0: i32, %arg1: memref<162x128xf32, #tpu.memory_space<vmem>>, %arg2: memref<128x128xbf16, #tpu.memory_space<vmem>>, %arg3: memref<1x128xf32, #tpu.memory_space<vmem>>, %arg4: memref<162x128xf32, #tpu.memory_space<vmem>>) attributes {dimension_semantics = [#tpu.dimension_semantics<arbitrary>], iteration_bounds = array<i64: 1>, scalar_prefetch = 0 : i64, scratch_operands = 0 : i64, tpu.core_type = #tpu.core_type<tc>, window_params = [{pipeline_mode = #tpu.pipeline_mode<synchronous>, transform_indices = @transform_0, window_bounds = array<i64: 162, 128>}, {pipeline_mode = #tpu.pipeline_mode<synchronous>, transform_indices = @transform_1, window_bounds = array<i64: 128, 128>}, {pipeline_mode = #tpu.pipeline_mode<synchronous>, transform_indices = @transform_2, window_bounds = array<i64: 1, 128>}, {pipeline_mode = #tpu.pipeline_mode<synchronous>, transform_indices = @transform_3, window_bounds = array<i64: 162, 128>}]} {
    %c0 = arith.constant 0 : index
    %c0_0 = arith.constant 0 : index
    %0 = vector.load %arg1[%c0, %c0_0] : memref<162x128xf32, #tpu.memory_space<vmem>>, vector<162x128xf32>
    %1 = arith.truncf %0 : vector<162x128xf32> to vector<162x128xbf16>
    %c0_1 = arith.constant 0 : index
    %c0_2 = arith.constant 0 : index
    %2 = vector.load %arg2[%c0_1, %c0_2] : memref<128x128xbf16, #tpu.memory_space<vmem>>, vector<128x128xbf16>
    %cst = arith.constant dense<0.000000e+00> : vector<162x128xf32>
    %3 = tpu.matmul %1, %2, %cst {dimension_numbers = #tpu.dot_dimension_numbers<[1], [0], [0], [1], [0, 0, 1, 1], [], []>} : vector<162x128xbf16>, vector<128x128xbf16>, vector<162x128xf32> -> vector<162x128xf32>
    %c0_3 = arith.constant 0 : index
    %c0_4 = arith.constant 0 : index
    %4 = vector.load %arg3[%c0_3, %c0_4] : memref<1x128xf32, #tpu.memory_space<vmem>>, vector<1x128xf32>
    %5 = vector.broadcast %4 : vector<1x128xf32> to vector<162x128xf32>
    %6 = arith.addf %3, %5 : vector<162x128xf32>
    %cst_5 = arith.constant 0.000000e+00 : f32
    %7 = vector.broadcast %cst_5 : f32 to vector<162x128xf32>
    %8 = arith.maximumf %6, %7 : vector<162x128xf32>
    %c0_6 = arith.constant 0 : index
    %c0_7 = arith.constant 0 : index
    %9 = vector.load %arg4[%c0_6, %c0_7] : memref<162x128xf32, #tpu.memory_space<vmem>>, vector<162x128xf32>
    tpu.vector_store %arg4[%c0_6, %c0_7], %8 {strides = array<i32>} : memref<162x128xf32, #tpu.memory_space<vmem>>, vector<162x128xf32>,
    return
  }
  func.func @transform_0(%arg0: i32) -> (i32, i32) {
    %c0_i32 = arith.constant 0 : i32
    %c0_i32_0 = arith.constant 0 : i32
    %c0_i32_1 = arith.constant 0 : i32
    return %c0_i32, %c0_i32_0 : i32, i32
  }
  func.func @transform_1(%arg0: i32) -> (i32, i32) {
    %c0_i32 = arith.constant 0 : i32
    %c0_i32_0 = arith.constant 0 : i32
    %c0_i32_1 = arith.constant 0 : i32
    return %c0_i32, %c0_i32_0 : i32, i32
  }
  func.func @transform_2(%arg0: i32) -> (i32, i32) {
    %c0_i32 = arith.constant 0 : i32
    %c0_i32_0 = arith.constant 0 : i32
    %c0_i32_1 = arith.constant 0 : i32
    return %c0_i32, %c0_i32_0 : i32, i32
  }
  func.func @transform_3(%arg0: i32) -> (i32, i32) {
    %c0_i32 = arith.constant 0 : i32
    %c0_i32_0 = arith.constant 0 : i32
    %c0_i32_1 = arith.constant 0 : i32
    return %c0_i32, %c0_i32_0 : i32, i32
  }
}

module attributes {stable_mosaic.version = 11 : i64} {
  func.func @_matmul_bias_act_kernel(%arg0: i32, %arg1: memref<578x128xf32, #tpu.memory_space<vmem>>, %arg2: memref<128x128xbf16, #tpu.memory_space<vmem>>, %arg3: memref<1x128xf32, #tpu.memory_space<vmem>>, %arg4: memref<578x128xf32, #tpu.memory_space<vmem>>) attributes {dimension_semantics = [#tpu.dimension_semantics<arbitrary>], iteration_bounds = array<i64: 1>, scalar_prefetch = 0 : i64, scratch_operands = 0 : i64, tpu.core_type = #tpu.core_type<tc>, window_params = [{pipeline_mode = #tpu.pipeline_mode<synchronous>, transform_indices = @transform_0, window_bounds = array<i64: 578, 128>}, {pipeline_mode = #tpu.pipeline_mode<synchronous>, transform_indices = @transform_1, window_bounds = array<i64: 128, 128>}, {pipeline_mode = #tpu.pipeline_mode<synchronous>, transform_indices = @transform_2, window_bounds = array<i64: 1, 128>}, {pipeline_mode = #tpu.pipeline_mode<synchronous>, transform_indices = @transform_3, window_bounds = array<i64: 578, 128>}]} {
    %c0 = arith.constant 0 : index
    %c0_0 = arith.constant 0 : index
    %0 = vector.load %arg1[%c0, %c0_0] : memref<578x128xf32, #tpu.memory_space<vmem>>, vector<578x128xf32>
    %1 = arith.truncf %0 : vector<578x128xf32> to vector<578x128xbf16>
    %c0_1 = arith.constant 0 : index
    %c0_2 = arith.constant 0 : index
    %2 = vector.load %arg2[%c0_1, %c0_2] : memref<128x128xbf16, #tpu.memory_space<vmem>>, vector<128x128xbf16>
    %cst = arith.constant dense<0.000000e+00> : vector<578x128xf32>
    %3 = tpu.matmul %1, %2, %cst {dimension_numbers = #tpu.dot_dimension_numbers<[1], [0], [0], [1], [0, 0, 1, 1], [], []>} : vector<578x128xbf16>, vector<128x128xbf16>, vector<578x128xf32> -> vector<578x128xf32>
    %c0_3 = arith.constant 0 : index
    %c0_4 = arith.constant 0 : index
    %4 = vector.load %arg3[%c0_3, %c0_4] : memref<1x128xf32, #tpu.memory_space<vmem>>, vector<1x128xf32>
    %5 = vector.broadcast %4 : vector<1x128xf32> to vector<578x128xf32>
    %6 = arith.addf %3, %5 : vector<578x128xf32>
    %7 = arith.negf %6 : vector<578x128xf32>
    %8 = math.exp %7 : vector<578x128xf32>
    %cst_5 = arith.constant 1.000000e+00 : f32
    %9 = vector.broadcast %cst_5 : f32 to vector<578x128xf32>
    %10 = arith.addf %9, %8 : vector<578x128xf32>
    %11 = arith.divf %9, %10 : vector<578x128xf32>
    %c0_6 = arith.constant 0 : index
    %c0_7 = arith.constant 0 : index
    %12 = vector.load %arg4[%c0_6, %c0_7] : memref<578x128xf32, #tpu.memory_space<vmem>>, vector<578x128xf32>
    tpu.vector_store %arg4[%c0_6, %c0_7], %11 {strides = array<i32>} : memref<578x128xf32, #tpu.memory_space<vmem>>, vector<578x128xf32>,
    return
  }
  func.func @transform_0(%arg0: i32) -> (i32, i32) {
    %c0_i32 = arith.constant 0 : i32
    %c0_i32_0 = arith.constant 0 : i32
    %c0_i32_1 = arith.constant 0 : i32
    return %c0_i32, %c0_i32_0 : i32, i32
  }
  func.func @transform_1(%arg0: i32) -> (i32, i32) {
    %c0_i32 = arith.constant 0 : i32
    %c0_i32_0 = arith.constant 0 : i32
    %c0_i32_1 = arith.constant 0 : i32
    return %c0_i32, %c0_i32_0 : i32, i32
  }
  func.func @transform_2(%arg0: i32) -> (i32, i32) {
    %c0_i32 = arith.constant 0 : i32
    %c0_i32_0 = arith.constant 0 : i32
    %c0_i32_1 = arith.constant 0 : i32
    return %c0_i32, %c0_i32_0 : i32, i32
  }
  func.func @transform_3(%arg0: i32) -> (i32, i32) {
    %c0_i32 = arith.constant 0 : i32
    %c0_i32_0 = arith.constant 0 : i32
    %c0_i32_1 = arith.constant 0 : i32
    return %c0_i32, %c0_i32_0 : i32, i32
  }
}

</mosaic_0001>

<llo_original>
// kernel: mnist_conv_decoder_forward.5
$region0: #{mnist_conv_decoder_forward.5}
  #allocation0 [shape = 'u32[]', space=smem, size = 0x4, offset = 0x4, fixed_abs, tag = 'smem constant byte address 0x4 - core index']
  #allocation1 [shape = 'u32[72,128]{1,0:T(1,128)}', space=vmem, size = 0x9000, scoped, tag = 'internal scratch']
  %s0 = inlined_call_operand.vmem [shape: f32[50,256], index: 0, kind: input, shape index: {}]
  %s1 = inlined_call_operand.hbm [shape: bf16[256,128], index: 1, kind: input, shape index: {}]
  %s2 = inlined_call_operand.hbm [shape: f32[1,128], index: 2, kind: input, shape index: {}]
  %s3 = inlined_call_operand.vmem [shape: f32[50,128], index: 3, kind: output, shape index: {}]
  %s4 = sld [smem:[#allocation0]]
  $region30: #{mnist_conv_decoder_forward.5} parent=0
    _
  %s6 = ssub.s32 1, %s4
  %s7 = scalar_select 0, %s6, %s4
  $region1: #{mnist_conv_decoder_forward.5} parent=0
    #allocation2 [shape = 'u8[65536]{0}', space=vmem, size = 0x10000, scoped, tag = 'input window, operand 1, single buffered']
    #allocation3 [shape = 's32[1]{0}', space=sflag, size = 0x4, scoped, tag = 'scoped memory for mnist_conv_decoder_forward.5']
    #allocation4 [shape = 'u8[512]{0}', space=vmem, size = 0x400, scoped, tag = 'input window, operand 2, single buffered']
    #allocation5 [shape = 's32[1]{0}', space=sflag, size = 0x4, scoped, tag = 'scoped memory for mnist_conv_decoder_forward.5']
    %8 = vsyncpa [#allocation3], 0
    %9 = vsyncpa [#allocation5], 0
    // Predicated region
    $region2: #{mnist_conv_decoder_forward.5} parent=1 // pred_check
      _
    $region3: #{mnist_conv_decoder_forward.5} parent=1 // pred_check_branch
      %11 = sbr.rel (0) target = $region5
    $region4: #{mnist_conv_decoder_forward.5} parent=1 // pred_region
      _
    $region5: #{mnist_conv_decoder_forward.5} parent=1 // pred_fallthru
      _
    // Predicated region
    $region6: #{mnist_conv_decoder_forward.5} parent=1 // pred_check
      _
    $region7: #{mnist_conv_decoder_forward.5} parent=1 // pred_check_branch
      %13 = sbr.rel (0) target = $region9
    $region8: #{mnist_conv_decoder_forward.5} parent=1 // pred_region
      %15 = vsyncadd [#allocation3], 0
      %s16 = sshll.u32 %s1, 4
      %s17 = int_to_ptr.hbm [resolvable:$true] %s16
      %s18 = sshll.u32 [#allocation2], 4
      %s19 = int_to_ptr.vmem [resolvable:$true] %s18
      %24 = dma.hbm_to_vmem [thread:$0]  %s17, 2048, %s19, [#allocation3], 64, 64, 4
    $region9: #{mnist_conv_decoder_forward.5} parent=1 // pred_fallthru
      _
    // Predicated region
    $region10: #{mnist_conv_decoder_forward.5} parent=1 // pred_check
      _
    $region11: #{mnist_conv_decoder_forward.5} parent=1 // pred_check_branch
      %26 = sbr.rel (0) target = $region13
    $region12: #{mnist_conv_decoder_forward.5} parent=1 // pred_region
      %28 = vsyncadd [#allocation5], 0
      %s30 = sshll.u32 %s2, 4
      %s31 = int_to_ptr.hbm [resolvable:$true] %s30
      %s32 = sshll.u32 [#allocation4], 4
      %s33 = int_to_ptr.vmem [resolvable:$true] %s32
      %35 = dma.hbm_to_vmem [thread:$0]  %s31, 16, %s33, [#allocation5]
    $region13: #{mnist_conv_decoder_forward.5} parent=1 // pred_fallthru
      _
    // Predicated region
    $region14: #{mnist_conv_decoder_forward.5} parent=1 // pred_check
      _
    $region15: #{mnist_conv_decoder_forward.5} parent=1 // pred_check_branch
      %37 = sbr.rel (0) target = $region17
    $region16: #{mnist_conv_decoder_forward.5} parent=1 // pred_region
      %39 = dma.done [#allocation3], 2048
    $region17: #{mnist_conv_decoder_forward.5} parent=1 // pred_fallthru
      _
    // Predicated region
    $region18: #{mnist_conv_decoder_forward.5} parent=1 // pred_check
      _
    $region19: #{mnist_conv_decoder_forward.5} parent=1 // pred_check_branch
      %41 = sbr.rel (0) target = $region21
    $region20: #{mnist_conv_decoder_forward.5} parent=1 // pred_region
      %43 = dma.done [#allocation5], 16
    $region21: #{mnist_conv_decoder_forward.5} parent=1 // pred_fallthru
      _
    %v44 = vld [vmem:[%s0] sm:$0xff]
    %v45 = vld [vmem:[%s0 + $0x8] sm:$0xff]
    %v46 = vld [vmem:[%s0 + $0x10] sm:$0xff]
    %v47 = vld [vmem:[%s0 + $0x18] sm:$0xff]
    %v48 = vld [vmem:[%s0 + $0x20] sm:$0xff]
    %v49 = vld [vmem:[%s0 + $0x28] sm:$0xff]
    %v50 = vld [vmem:[%s0 + $0x30] sm:$0xff]
    %v51 = vld [vmem:[%s0 + $0x38] sm:$0xff]
    %v52 = vld [vmem:[%s0 + $0x40] sm:$0xff]
    %v53 = vld [vmem:[%s0 + $0x48] sm:$0xff]
    %v54 = vld [vmem:[%s0 + $0x50] sm:$0xff]
    %v55 = vld [vmem:[%s0 + $0x58] sm:$0xff]
    %v56 = vld [vmem:[%s0 + $0x60] sm:$0x3]
    %v57 = vld [vmem:[%s0 + $0x68] sm:$0x3]
    %v58 = vpack.c.bf16 %v46, %v44
    %v59 = vpack.c.bf16 %v47, %v45
    %v60 = vpack.c.bf16 %v50, %v48
    %v61 = vpack.c.bf16 %v51, %v49
    %v62 = vpack.c.bf16 %v54, %v52
    %v63 = vpack.c.bf16 %v55, %v53
    %v64 = vpack.c.bf16 %v56, %v56
    %v65 = vpack.c.bf16 %v57, %v57
    %v66 = vld [vmem:[#allocation2] sm:$0xf]
    %v67 = vld [vmem:[#allocation2 + $0x4] sm:$0xf]
    %v68 = vld [vmem:[#allocation2 + $0x8] sm:$0xf]
    %v69 = vld [vmem:[#allocation2 + $0xc] sm:$0xf]
    %v70 = vld [vmem:[#allocation2 + $0x10] sm:$0xf]
    %v71 = vld [vmem:[#allocation2 + $0x14] sm:$0xf]
    %v72 = vld [vmem:[#allocation2 + $0x18] sm:$0xf]
    %v73 = vld [vmem:[#allocation2 + $0x1c] sm:$0xf]
    %v74 = vld [vmem:[#allocation2 + $0x20] sm:$0xf]
    %v75 = vld [vmem:[#allocation2 + $0x24] sm:$0xf]
    %v76 = vld [vmem:[#allocation2 + $0x28] sm:$0xf]
    %v77 = vld [vmem:[#allocation2 + $0x2c] sm:$0xf]
    %v78 = vld [vmem:[#allocation2 + $0x30] sm:$0xf]
    %v79 = vld [vmem:[#allocation2 + $0x34] sm:$0xf]
    %v80 = vld [vmem:[#allocation2 + $0x38] sm:$0xf]
    %v81 = vld [vmem:[#allocation2 + $0x3c] sm:$0xf]
    %v82 = vld [vmem:[#allocation2 + $0x40] sm:$0xf]
    %v83 = vld [vmem:[#allocation2 + $0x44] sm:$0xf]
    %v84 = vld [vmem:[#allocation2 + $0x48] sm:$0xf]
    %v85 = vld [vmem:[#allocation2 + $0x4c] sm:$0xf]
    %v86 = vld [vmem:[#allocation2 + $0x50] sm:$0xf]
    %v87 = vld [vmem:[#allocation2 + $0x54] sm:$0xf]
    %v88 = vld [vmem:[#allocation2 + $0x58] sm:$0xf]
    %v89 = vld [vmem:[#allocation2 + $0x5c] sm:$0xf]
    %v90 = vld [vmem:[#allocation2 + $0x60] sm:$0xf]
    %v91 = vld [vmem:[#allocation2 + $0x64] sm:$0xf]
    %v92 = vld [vmem:[#allocation2 + $0x68] sm:$0xf]
    %v93 = vld [vmem:[#allocation2 + $0x6c] sm:$0xf]
    %v94 = vld [vmem:[#allocation2 + $0x70] sm:$0xf]
    %v95 = vld [vmem:[#allocation2 + $0x74] sm:$0xf]
    %v96 = vld [vmem:[#allocation2 + $0x78] sm:$0xf]
    %v97 = vld [vmem:[#allocation2 + $0x7c] sm:$0xf]
    %v98 = vld [vmem:[#allocation4] sm:$0x1]
    %v100 = vperm.slane %v98, 0
    %v134 = vunpack.c.l.b16 %v66
    %v135 = vunpack.c.l.b16 %v67
    %v136 = vunpack.c.l.b16 %v68
    %v137 = vunpack.c.l.b16 %v69
    %v138 = vunpack.c.l.b16 %v70
    %v139 = vunpack.c.l.b16 %v71
    %v140 = vunpack.c.l.b16 %v72
    %v141 = vunpack.c.l.b16 %v73
    %v142 = vunpack.c.l.b16 %v74
    %v143 = vunpack.c.l.b16 %v75
    %v144 = vunpack.c.l.b16 %v76
    %v145 = vunpack.c.l.b16 %v77
    %v146 = vunpack.c.l.b16 %v78
    %v147 = vunpack.c.l.b16 %v79
    %v148 = vunpack.c.l.b16 %v80
    %v149 = vunpack.c.l.b16 %v81
    %v150 = vunpack.c.l.b16 %v82
    %v151 = vunpack.c.l.b16 %v83
    %v152 = vunpack.c.l.b16 %v84
    %v153 = vunpack.c.l.b16 %v85
    %v154 = vunpack.c.l.b16 %v86
    %v155 = vunpack.c.l.b16 %v87
    %v156 = vunpack.c.l.b16 %v88
    %v157 = vunpack.c.l.b16 %v89
    %v158 = vunpack.c.l.b16 %v90
    %v159 = vunpack.c.l.b16 %v91
    %v160 = vunpack.c.l.b16 %v92
    %v161 = vunpack.c.l.b16 %v93
    %v162 = vunpack.c.l.b16 %v94
    %v163 = vunpack.c.l.b16 %v95
    %v164 = vunpack.c.l.b16 %v96
    %v165 = vunpack.c.l.b16 %v97
    %v166 = vpack.c.b16 %v135, %v134
    %v167 = vpack.c.b16 %v137, %v136
    %v168 = vpack.c.b16 %v139, %v138
    %v169 = vpack.c.b16 %v141, %v140
    %v170 = vpack.c.b16 %v143, %v142
    %v171 = vpack.c.b16 %v145, %v144
    %v172 = vpack.c.b16 %v147, %v146
    %v173 = vpack.c.b16 %v149, %v148
    %v174 = vpack.c.b16 %v151, %v150
    %v175 = vpack.c.b16 %v153, %v152
    %v176 = vpack.c.b16 %v155, %v154
    %v177 = vpack.c.b16 %v157, %v156
    %v178 = vpack.c.b16 %v159, %v158
    %v179 = vpack.c.b16 %v161, %v160
    %v180 = vpack.c.b16 %v163, %v162
    %v181 = vpack.c.b16 %v165, %v164
    %198 = vmatpush.bf16.msra.mxu0 %v173
    %199 = vmatpush.bf16.msra.mxu0 %v172
    %200 = vmatpush.bf16.msra.mxu0 %v171
    %201 = vmatpush.bf16.msra.mxu0 %v170
    %202 = vmatpush.bf16.msra.mxu0 %v169
    %203 = vmatpush.bf16.msra.mxu0 %v168
    %204 = vmatpush.bf16.msra.mxu0 %v167
    %205 = vmatpush.bf16.msra.mxu0 %v166
    %206 = vmatmul.bf16.gmra.mxu0 %v58
    %v207 = vpop.f32.mrf.mxu0
    %v208 = vadd.f32 %v100, %v207
    %v209 = vpop.f32.mrf.mxu0
    %v210 = vadd.f32 %v100, %v209
    %211 = vmatmul.bf16.gmra.mxu0 %v60
    %v212 = vpop.f32.mrf.mxu0
    %v213 = vadd.f32 %v100, %v212
    %v214 = vpop.f32.mrf.mxu0
    %v215 = vadd.f32 %v100, %v214
    %216 = vmatmul.bf16.gmra.mxu0 %v62
    %v217 = vpop.f32.mrf.mxu0
    %v218 = vadd.f32 %v100, %v217
    %v219 = vpop.f32.mrf.mxu0
    %v220 = vadd.f32 %v100, %v219
    %221 = vmatmul.bf16.gmra.mxu0 %v64
    %v222 = vpop.f32.mrf.mxu0
    %v223 = vadd.f32 %v100, %v222
    %v224 = vpop.f32.mrf.mxu0
    %225 = vdwg.mxu0
    %226 = vmatpush.bf16.msra.mxu0 %v181
    %227 = vmatpush.bf16.msra.mxu0 %v180
    %228 = vmatpush.bf16.msra.mxu0 %v179
    %229 = vmatpush.bf16.msra.mxu0 %v178
    %230 = vmatpush.bf16.msra.mxu0 %v177
    %231 = vmatpush.bf16.msra.mxu0 %v176
    %232 = vmatpush.bf16.msra.mxu0 %v175
    %233 = vmatpush.bf16.msra.mxu0 %v174
    %234 = vmatmul.bf16.gmra.mxu0 %v59
    %v235 = vpop.f32.mrf.mxu0
    %v236 = vadd.f32 %v208, %v235
    %v237 = vpop.f32.mrf.mxu0
    %v238 = vadd.f32 %v210, %v237
    %239 = vmatmul.bf16.gmra.mxu0 %v61
    %v240 = vpop.f32.mrf.mxu0
    %v241 = vadd.f32 %v213, %v240
    %v242 = vpop.f32.mrf.mxu0
    %v243 = vadd.f32 %v215, %v242
    %244 = vmatmul.bf16.gmra.mxu0 %v63
    %v245 = vpop.f32.mrf.mxu0
    %v246 = vadd.f32 %v218, %v245
    %v247 = vpop.f32.mrf.mxu0
    %v248 = vadd.f32 %v220, %v247
    %249 = vmatmul.bf16.gmra.mxu0 %v65
    %v250 = vpop.f32.mrf.mxu0
    %v251 = vadd.f32 %v223, %v250
    %v252 = vpop.f32.mrf.mxu0
    %253 = vdwg.mxu0
    %v254 = vmax.f32 %v236, 0.0
    %v255 = vmax.f32 %v238, 0.0
    %v256 = vmax.f32 %v241, 0.0
    %v257 = vmax.f32 %v243, 0.0
    %v258 = vmax.f32 %v246, 0.0
    %v259 = vmax.f32 %v248, 0.0
    %v260 = vmax.f32 %v251, 0.0
    %261 = vst [vmem:[%s3] sm:$0xff] %v254
    %262 = vst [vmem:[%s3 + $0x8] sm:$0xff] %v255
    %263 = vst [vmem:[%s3 + $0x10] sm:$0xff] %v256
    %264 = vst [vmem:[%s3 + $0x18] sm:$0xff] %v257
    %265 = vst [vmem:[%s3 + $0x20] sm:$0xff] %v258
    %266 = vst [vmem:[%s3 + $0x28] sm:$0xff] %v259
    %267 = vst [vmem:[%s3 + $0x30] sm:$0x3] %v260
    // Predicated region
    $region22: #{mnist_conv_decoder_forward.5} parent=1 // pred_check
      _
    $region23: #{mnist_conv_decoder_forward.5} parent=1 // pred_check_branch
      %269 = sbr.rel (0) target = $region25
    $region24: #{mnist_conv_decoder_forward.5} parent=1 // pred_region
      _
    $region25: #{mnist_conv_decoder_forward.5} parent=1 // pred_fallthru
      _
    // Predicated region
    $region26: #{mnist_conv_decoder_forward.5} parent=1 // pred_check
      _
    $region27: #{mnist_conv_decoder_forward.5} parent=1 // pred_check_branch
      %271 = sbr.rel (0) target = $region29
    $region28: #{mnist_conv_decoder_forward.5} parent=1 // pred_region
      _
    $region29: #{mnist_conv_decoder_forward.5} parent=1 // pred_fallthru
      _
    %272 = vsyncpa [#allocation3], 1
    %273 = vsyncpa [#allocation5], 1

// kernel: mnist_conv_decoder_forward.6
$region0: #{mnist_conv_decoder_forward.6}
  #allocation0 [shape = 'u32[]', space=smem, size = 0x4, offset = 0x4, fixed_abs, tag = 'smem constant byte address 0x4 - core index']
  #allocation1 [shape = 'u32[72,128]{1,0:T(1,128)}', space=vmem, size = 0x9000, scoped, tag = 'internal scratch']
  %s0 = inlined_call_operand.vmem [shape: f32[162,128], index: 0, kind: input, shape index: {}]
  %s1 = inlined_call_operand.vmem [shape: bf16[128,128], index: 1, kind: input, shape index: {}]
  %s2 = inlined_call_operand.vmem [shape: f32[1,128], index: 2, kind: input, shape index: {}]
  %s3 = inlined_call_operand.vmem [shape: f32[162,128], index: 3, kind: output, shape index: {}]
  %s4 = sld [smem:[#allocation0]]
  $region22: #{mnist_conv_decoder_forward.6} parent=0
    _
  %s6 = ssub.s32 1, %s4
  %s7 = scalar_select 0, %s6, %s4
  // Predicated region
  $region2: #{mnist_conv_decoder_forward.6} parent=0 // pred_check
    _
  $region3: #{mnist_conv_decoder_forward.6} parent=0 // pred_check_branch
    %9 = sbr.rel (0) target = $region5
  $region4: #{mnist_conv_decoder_forward.6} parent=0 // pred_region
    _
  $region5: #{mnist_conv_decoder_forward.6} parent=0 // pred_fallthru
    _
  // Predicated region
  $region6: #{mnist_conv_decoder_forward.6} parent=0 // pred_check
    _
  $region7: #{mnist_conv_decoder_forward.6} parent=0 // pred_check_branch
    %11 = sbr.rel (0) target = $region9
  $region8: #{mnist_conv_decoder_forward.6} parent=0 // pred_region
    _
  $region9: #{mnist_conv_decoder_forward.6} parent=0 // pred_fallthru
    _
  // Predicated region
  $region10: #{mnist_conv_decoder_forward.6} parent=0 // pred_check
    _
  $region11: #{mnist_conv_decoder_forward.6} parent=0 // pred_check_branch
    %13 = sbr.rel (0) target = $region13
  $region12: #{mnist_conv_decoder_forward.6} parent=0 // pred_region
    _
  $region13: #{mnist_conv_decoder_forward.6} parent=0 // pred_fallthru
    _
  %v14 = vld [vmem:[%s0] sm:$0xff]
  %v15 = vld [vmem:[%s0 + $0x8] sm:$0xff]
  %v16 = vld [vmem:[%s0 + $0x10] sm:$0xff]
  %v17 = vld [vmem:[%s0 + $0x18] sm:$0xff]
  %v18 = vld [vmem:[%s0 + $0x20] sm:$0xff]
  %v19 = vld [vmem:[%s0 + $0x28] sm:$0xff]
  %v20 = vld [vmem:[%s0 + $0x30] sm:$0xff]
  %v21 = vld [vmem:[%s0 + $0x38] sm:$0xff]
  %v22 = vld [vmem:[%s0 + $0x40] sm:$0xff]
  %v23 = vld [vmem:[%s0 + $0x48] sm:$0xff]
  %v24 = vld [vmem:[%s0 + $0x50] sm:$0xff]
  %v25 = vld [vmem:[%s0 + $0x58] sm:$0xff]
  %v26 = vld [vmem:[%s0 + $0x60] sm:$0xff]
  %v27 = vld [vmem:[%s0 + $0x68] sm:$0xff]
  %v28 = vld [vmem:[%s0 + $0x70] sm:$0xff]
  %v29 = vld [vmem:[%s0 + $0x78] sm:$0xff]
  %v30 = vld [vmem:[%s0 + $0x80] sm:$0xff]
  %v31 = vld [vmem:[%s0 + $0x88] sm:$0xff]
  %v32 = vld [vmem:[%s0 + $0x90] sm:$0xff]
  %v33 = vld [vmem:[%s0 + $0x98] sm:$0xff]
  %v34 = vld [vmem:[%s0 + $0xa0] sm:$0x3]
  %v35 = vpack.c.bf16 %v15, %v14
  %v36 = vpack.c.bf16 %v17, %v16
  %v37 = vpack.c.bf16 %v19, %v18
  %v38 = vpack.c.bf16 %v21, %v20
  %v39 = vpack.c.bf16 %v23, %v22
  %v40 = vpack.c.bf16 %v25, %v24
  %v41 = vpack.c.bf16 %v27, %v26
  %v42 = vpack.c.bf16 %v29, %v28
  %v43 = vpack.c.bf16 %v31, %v30
  %v44 = vpack.c.bf16 %v33, %v32
  %v45 = vpack.c.bf16 %v34, %v34
  %v46 = vld [vmem:[%s1] sm:$0xf]
  %v47 = vld [vmem:[%s1 + $0x4] sm:$0xf]
  %v48 = vld [vmem:[%s1 + $0x8] sm:$0xf]
  %v49 = vld [vmem:[%s1 + $0xc] sm:$0xf]
  %v50 = vld [vmem:[%s1 + $0x10] sm:$0xf]
  %v51 = vld [vmem:[%s1 + $0x14] sm:$0xf]
  %v52 = vld [vmem:[%s1 + $0x18] sm:$0xf]
  %v53 = vld [vmem:[%s1 + $0x1c] sm:$0xf]
  %v54 = vld [vmem:[%s1 + $0x20] sm:$0xf]
  %v55 = vld [vmem:[%s1 + $0x24] sm:$0xf]
  %v56 = vld [vmem:[%s1 + $0x28] sm:$0xf]
  %v57 = vld [vmem:[%s1 + $0x2c] sm:$0xf]
  %v58 = vld [vmem:[%s1 + $0x30] sm:$0xf]
  %v59 = vld [vmem:[%s1 + $0x34] sm:$0xf]
  %v60 = vld [vmem:[%s1 + $0x38] sm:$0xf]
  %v61 = vld [vmem:[%s1 + $0x3c] sm:$0xf]
  %v62 = vld [vmem:[%s2] sm:$0x1]
  %v64 = vperm.slane %v62, 0
  %v82 = vunpack.c.l.b16 %v46
  %v83 = vunpack.c.l.b16 %v47
  %v84 = vunpack.c.l.b16 %v48
  %v85 = vunpack.c.l.b16 %v49
  %v86 = vunpack.c.l.b16 %v50
  %v87 = vunpack.c.l.b16 %v51
  %v88 = vunpack.c.l.b16 %v52
  %v89 = vunpack.c.l.b16 %v53
  %v90 = vunpack.c.l.b16 %v54
  %v91 = vunpack.c.l.b16 %v55
  %v92 = vunpack.c.l.b16 %v56
  %v93 = vunpack.c.l.b16 %v57
  %v94 = vunpack.c.l.b16 %v58
  %v95 = vunpack.c.l.b16 %v59
  %v96 = vunpack.c.l.b16 %v60
  %v97 = vunpack.c.l.b16 %v61
  %v98 = vpack.c.b16 %v83, %v82
  %v99 = vpack.c.b16 %v85, %v84
  %v100 = vpack.c.b16 %v87, %v86
  %v101 = vpack.c.b16 %v89, %v88
  %v102 = vpack.c.b16 %v91, %v90
  %v103 = vpack.c.b16 %v93, %v92
  %v104 = vpack.c.b16 %v95, %v94
  %v105 = vpack.c.b16 %v97, %v96
  %114 = vmatpush.bf16.msra.mxu0 %v105
  %115 = vmatpush.bf16.msra.mxu0 %v104
  %116 = vmatpush.bf16.msra.mxu0 %v103
  %117 = vmatpush.bf16.msra.mxu0 %v102
  %118 = vmatpush.bf16.msra.mxu0 %v101
  %119 = vmatpush.bf16.msra.mxu0 %v100
  %120 = vmatpush.bf16.msra.mxu0 %v99
  %121 = vmatpush.bf16.msra.mxu0 %v98
  %122 = vmatmul.bf16.gmra.mxu0 %v35
  %v123 = vpop.f32.mrf.mxu0
  %v124 = vadd.f32 %v64, %v123
  %v125 = vpop.f32.mrf.mxu0
  %v126 = vadd.f32 %v64, %v125
  %127 = vmatmul.bf16.gmra.mxu0 %v36
  %v128 = vpop.f32.mrf.mxu0
  %v129 = vadd.f32 %v64, %v128
  %v130 = vpop.f32.mrf.mxu0
  %v131 = vadd.f32 %v64, %v130
  %132 = vmatmul.bf16.gmra.mxu0 %v37
  %v133 = vpop.f32.mrf.mxu0
  %v134 = vadd.f32 %v64, %v133
  %v135 = vpop.f32.mrf.mxu0
  %v136 = vadd.f32 %v64, %v135
  %137 = vmatmul.bf16.gmra.mxu0 %v38
  %v138 = vpop.f32.mrf.mxu0
  %v139 = vadd.f32 %v64, %v138
  %v140 = vpop.f32.mrf.mxu0
  %v141 = vadd.f32 %v64, %v140
  %142 = vmatmul.bf16.gmra.mxu0 %v39
  %v143 = vpop.f32.mrf.mxu0
  %v144 = vadd.f32 %v64, %v143
  %v145 = vpop.f32.mrf.mxu0
  %v146 = vadd.f32 %v64, %v145
  %147 = vmatmul.bf16.gmra.mxu0 %v40
  %v148 = vpop.f32.mrf.mxu0
  %v149 = vadd.f32 %v64, %v148
  %v150 = vpop.f32.mrf.mxu0
  %v151 = vadd.f32 %v64, %v150
  %152 = vmatmul.bf16.gmra.mxu0 %v41
  %v153 = vpop.f32.mrf.mxu0
  %v154 = vadd.f32 %v64, %v153
  %v155 = vpop.f32.mrf.mxu0
  %v156 = vadd.f32 %v64, %v155
  %157 = vmatmul.bf16.gmra.mxu0 %v42
  %v158 = vpop.f32.mrf.mxu0
  %v159 = vadd.f32 %v64, %v158
  %v160 = vpop.f32.mrf.mxu0
  %v161 = vadd.f32 %v64, %v160
  %162 = vmatmul.bf16.gmra.mxu0 %v43
  %v163 = vpop.f32.mrf.mxu0
  %v164 = vadd.f32 %v64, %v163
  %v165 = vpop.f32.mrf.mxu0
  %v166 = vadd.f32 %v64, %v165
  %167 = vmatmul.bf16.gmra.mxu0 %v44
  %v168 = vpop.f32.mrf.mxu0
  %v169 = vadd.f32 %v64, %v168
  %v170 = vpop.f32.mrf.mxu0
  %v171 = vadd.f32 %v64, %v170
  %172 = vmatmul.bf16.gmra.mxu0 %v45
  %v173 = vpop.f32.mrf.mxu0
  %v174 = vadd.f32 %v64, %v173
  %v175 = vpop.f32.mrf.mxu0
  %176 = vdwg.mxu0
  %v177 = vmax.f32 %v124, 0.0
  %v178 = vmax.f32 %v126, 0.0
  %v179 = vmax.f32 %v129, 0.0
  %v180 = vmax.f32 %v131, 0.0
  %v181 = vmax.f32 %v134, 0.0
  %v182 = vmax.f32 %v136, 0.0
  %v183 = vmax.f32 %v139, 0.0
  %v184 = vmax.f32 %v141, 0.0
  %v185 = vmax.f32 %v144, 0.0
  %v186 = vmax.f32 %v146, 0.0
  %v187 = vmax.f32 %v149, 0.0
  %v188 = vmax.f32 %v151, 0.0
  %v189 = vmax.f32 %v154, 0.0
  %v190 = vmax.f32 %v156, 0.0
  %v191 = vmax.f32 %v159, 0.0
  %v192 = vmax.f32 %v161, 0.0
  %v193 = vmax.f32 %v164, 0.0
  %v194 = vmax.f32 %v166, 0.0
  %v195 = vmax.f32 %v169, 0.0
  %v196 = vmax.f32 %v171, 0.0
  %v197 = vmax.f32 %v174, 0.0
  %198 = vst [vmem:[%s3] sm:$0xff] %v177
  %199 = vst [vmem:[%s3 + $0x8] sm:$0xff] %v178
  %200 = vst [vmem:[%s3 + $0x10] sm:$0xff] %v179
  %201 = vst [vmem:[%s3 + $0x18] sm:$0xff] %v180
  %202 = vst [vmem:[%s3 + $0x20] sm:$0xff] %v181
  %203 = vst [vmem:[%s3 + $0x28] sm:$0xff] %v182
  %204 = vst [vmem:[%s3 + $0x30] sm:$0xff] %v183
  %205 = vst [vmem:[%s3 + $0x38] sm:$0xff] %v184
  %206 = vst [vmem:[%s3 + $0x40] sm:$0xff] %v185
  %207 = vst [vmem:[%s3 + $0x48] sm:$0xff] %v186
  %208 = vst [vmem:[%s3 + $0x50] sm:$0xff] %v187
  %209 = vst [vmem:[%s3 + $0x58] sm:$0xff] %v188
  %210 = vst [vmem:[%s3 + $0x60] sm:$0xff] %v189
  %211 = vst [vmem:[%s3 + $0x68] sm:$0xff] %v190
  %212 = vst [vmem:[%s3 + $0x70] sm:$0xff] %v191
  %213 = vst [vmem:[%s3 + $0x78] sm:$0xff] %v192
  %214 = vst [vmem:[%s3 + $0x80] sm:$0xff] %v193
  %215 = vst [vmem:[%s3 + $0x88] sm:$0xff] %v194
  %216 = vst [vmem:[%s3 + $0x90] sm:$0xff] %v195
  %217 = vst [vmem:[%s3 + $0x98] sm:$0xff] %v196
  %218 = vst [vmem:[%s3 + $0xa0] sm:$0x3] %v197
  // Predicated region
  $region14: #{mnist_conv_decoder_forward.6} parent=0 // pred_check
    _
  $region15: #{mnist_conv_decoder_forward.6} parent=0 // pred_check_branch
    %220 = sbr.rel (0) target = $region17
  $region16: #{mnist_conv_decoder_forward.6} parent=0 // pred_region
    _
  $region17: #{mnist_conv_decoder_forward.6} parent=0 // pred_fallthru
    _
  // Predicated region
  $region18: #{mnist_conv_decoder_forward.6} parent=0 // pred_check
    _
  $region19: #{mnist_conv_decoder_forward.6} parent=0 // pred_check_branch
    %222 = sbr.rel (0) target = $region21
  $region20: #{mnist_conv_decoder_forward.6} parent=0 // pred_region
    _
  $region21: #{mnist_conv_decoder_forward.6} parent=0 // pred_fallthru
    _

// kernel: mnist_conv_decoder_forward.4
$region0: #{mnist_conv_decoder_forward.4}
  #allocation0 [shape = 'u32[]', space=smem, size = 0x4, offset = 0x4, fixed_abs, tag = 'smem constant byte address 0x4 - core index']
  #allocation1 [shape = 'u32[72,128]{1,0:T(1,128)}', space=vmem, size = 0x9000, scoped, tag = 'internal scratch']
  %s0 = inlined_call_operand.hbm [shape: f32[2,32], index: 0, kind: input, shape index: {}]
  %s1 = inlined_call_operand.hbm [shape: bf16[32,256], index: 1, kind: input, shape index: {}]
  %s2 = inlined_call_operand.hbm [shape: f32[1,256], index: 2, kind: input, shape index: {}]
  %s3 = inlined_call_operand.hbm [shape: bf16[256,1024], index: 3, kind: input, shape index: {}]
  %s4 = inlined_call_operand.hbm [shape: f32[1,1024], index: 4, kind: input, shape index: {}]
  %s5 = inlined_call_operand.vmem [shape: f32[2,1024], index: 5, kind: output, shape index: {}]
  %s6 = sld [smem:[#allocation0]]
  $region50: #{mnist_conv_decoder_forward.4} parent=0
    _
  %s8 = ssub.s32 1, %s6
  %s9 = scalar_select 0, %s8, %s6
  $region1: #{mnist_conv_decoder_forward.4} parent=0
    #allocation2 [shape = 'u8[1024]{0}', space=vmem, size = 0x400, scoped, tag = 'input window, operand 0, single buffered']
    #allocation3 [shape = 's32[1]{0}', space=sflag, size = 0x4, scoped, tag = 'scoped memory for mnist_conv_decoder_forward.4']
    #allocation4 [shape = 'u8[16384]{0}', space=vmem, size = 0x4000, scoped, tag = 'input window, operand 1, single buffered']
    #allocation5 [shape = 's32[1]{0}', space=sflag, size = 0x4, scoped, tag = 'scoped memory for mnist_conv_decoder_forward.4']
    #allocation6 [shape = 'u8[1024]{0}', space=vmem, size = 0x400, scoped, tag = 'input window, operand 2, single buffered']
    #allocation7 [shape = 'u8[524288]{0}', space=vmem, size = 0x80000, scoped, tag = 'input window, operand 3, single buffered']
    #allocation8 [shape = 's32[1]{0}', space=sflag, size = 0x4, scoped, tag = 'scoped memory for mnist_conv_decoder_forward.4']
    #allocation9 [shape = 'u8[4096]{0}', space=vmem, size = 0x1000, scoped, tag = 'input window, operand 4, single buffered']
    %10 = vsyncpa [#allocation3], 0
    %11 = vsyncpa [#allocation5], 0
    %12 = vsyncpa [#allocation8], 0
    // Predicated region
    $region2: #{mnist_conv_decoder_forward.4} parent=1 // pred_check
      _
    $region3: #{mnist_conv_decoder_forward.4} parent=1 // pred_check_branch
      %14 = sbr.rel (0) target = $region5
    $region4: #{mnist_conv_decoder_forward.4} parent=1 // pred_region
      %16 = vsyncadd [#allocation3], 0
      %s18 = sshll.u32 %s0, 4
      %s19 = int_to_ptr.hbm [resolvable:$true] %s18
      %s20 = sshll.u32 [#allocation2], 4
      %s21 = int_to_ptr.vmem [resolvable:$true] %s20
      %23 = dma.hbm_to_vmem [thread:$0]  %s19, 32, %s21, [#allocation3]
    $region5: #{mnist_conv_decoder_forward.4} parent=1 // pred_fallthru
      _
    // Predicated region
    $region6: #{mnist_conv_decoder_forward.4} parent=1 // pred_check
      _
    $region7: #{mnist_conv_decoder_forward.4} parent=1 // pred_check_branch
      %25 = sbr.rel (0) target = $region9
    $region8: #{mnist_conv_decoder_forward.4} parent=1 // pred_region
      %27 = vsyncadd [#allocation5], 0
      %s28 = sshll.u32 %s1, 4
      %s29 = int_to_ptr.hbm [resolvable:$true] %s28
      %s30 = sshll.u32 [#allocation4], 4
      %s31 = int_to_ptr.vmem [resolvable:$true] %s30
      %36 = dma.hbm_to_vmem [thread:$0]  %s29, 512, %s31, [#allocation5], 128, 128, 8
    $region9: #{mnist_conv_decoder_forward.4} parent=1 // pred_fallthru
      _
    // Predicated region
    $region10: #{mnist_conv_decoder_forward.4} parent=1 // pred_check
      _
    $region11: #{mnist_conv_decoder_forward.4} parent=1 // pred_check_branch
      %38 = sbr.rel (0) target = $region13
    $region12: #{mnist_conv_decoder_forward.4} parent=1 // pred_region
      %40 = vsyncadd [#allocation5], 0
      %s42 = sshll.u32 %s2, 4
      %s43 = int_to_ptr.hbm [resolvable:$true] %s42
      %s44 = sshll.u32 [#allocation6], 4
      %s45 = int_to_ptr.vmem [resolvable:$true] %s44
      %47 = dma.hbm_to_vmem [thread:$0]  %s43, 32, %s45, [#allocation5]
    $region13: #{mnist_conv_decoder_forward.4} parent=1 // pred_fallthru
      _
    // Predicated region
    $region14: #{mnist_conv_decoder_forward.4} parent=1 // pred_check
      _
    $region15: #{mnist_conv_decoder_forward.4} parent=1 // pred_check_branch
      %49 = sbr.rel (0) target = $region17
    $region16: #{mnist_conv_decoder_forward.4} parent=1 // pred_region
      %51 = vsyncadd [#allocation8], 0
      %s52 = sshll.u32 %s3, 4
      %s53 = int_to_ptr.hbm [resolvable:$true] %s52
      %s54 = sshll.u32 [#allocation7], 4
      %s55 = int_to_ptr.vmem [resolvable:$true] %s54
      %60 = dma.hbm_to_vmem [thread:$0]  %s53, 16384, %s55, [#allocation8], 512, 512, 32
    $region17: #{mnist_conv_decoder_forward.4} parent=1 // pred_fallthru
      _
    // Predicated region
    $region18: #{mnist_conv_decoder_forward.4} parent=1 // pred_check
      _
    $region19: #{mnist_conv_decoder_forward.4} parent=1 // pred_check_branch
      %62 = sbr.rel (0) target = $region21
    $region20: #{mnist_conv_decoder_forward.4} parent=1 // pred_region
      %64 = vsyncadd [#allocation8], 0
      %s66 = sshll.u32 %s4, 4
      %s67 = int_to_ptr.hbm [resolvable:$true] %s66
      %s68 = sshll.u32 [#allocation9], 4
      %s69 = int_to_ptr.vmem [resolvable:$true] %s68
      %71 = dma.hbm_to_vmem [thread:$0]  %s67, 128, %s69, [#allocation8]
    $region21: #{mnist_conv_decoder_forward.4} parent=1 // pred_fallthru
      _
    // Predicated region
    $region22: #{mnist_conv_decoder_forward.4} parent=1 // pred_check
      _
    $region23: #{mnist_conv_decoder_forward.4} parent=1 // pred_check_branch
      %73 = sbr.rel (0) target = $region25
    $region24: #{mnist_conv_decoder_forward.4} parent=1 // pred_region
      %75 = dma.done [#allocation3], 32
    $region25: #{mnist_conv_decoder_forward.4} parent=1 // pred_fallthru
      _
    // Predicated region
    $region26: #{mnist_conv_decoder_forward.4} parent=1 // pred_check
      _
    $region27: #{mnist_conv_decoder_forward.4} parent=1 // pred_check_branch
      %77 = sbr.rel (0) target = $region29
    $region28: #{mnist_conv_decoder_forward.4} parent=1 // pred_region
      %79 = dma.done [#allocation5], 512
    $region29: #{mnist_conv_decoder_forward.4} parent=1 // pred_fallthru
      _
    // Predicated region
    $region30: #{mnist_conv_decoder_forward.4} parent=1 // pred_check
      _
    $region31: #{mnist_conv_decoder_forward.4} parent=1 // pred_check_branch
      %81 = sbr.rel (0) target = $region33
    $region32: #{mnist_conv_decoder_forward.4} parent=1 // pred_region
      %83 = dma.done [#allocation5], 32
    $region33: #{mnist_conv_decoder_forward.4} parent=1 // pred_fallthru
      _
    // Predicated region
    $region34: #{mnist_conv_decoder_forward.4} parent=1 // pred_check
      _
    $region35: #{mnist_conv_decoder_forward.4} parent=1 // pred_check_branch
      %85 = sbr.rel (0) target = $region37
    $region36: #{mnist_conv_decoder_forward.4} parent=1 // pred_region
      %87 = dma.done [#allocation8], 16384
    $region37: #{mnist_conv_decoder_forward.4} parent=1 // pred_fallthru
      _
    // Predicated region
    $region38: #{mnist_conv_decoder_forward.4} parent=1 // pred_check
      _
    $region39: #{mnist_conv_decoder_forward.4} parent=1 // pred_check_branch
      %89 = sbr.rel (0) target = $region41
    $region40: #{mnist_conv_decoder_forward.4} parent=1 // pred_region
      %91 = dma.done [#allocation8], 128
    $region41: #{mnist_conv_decoder_forward.4} parent=1 // pred_fallthru
      _
    %v93 = vld [vmem:[#allocation2] sm:$0x3]
    %v94 = vpack.c.bf16 %v93, %v93
    %v95 = vld [vmem:[#allocation4] sm:$0xff]
    %v96 = vld [vmem:[#allocation4 + $0x8] sm:$0xff]
    %v97 = vld [vmem:[#allocation4 + $0x10] sm:$0xff]
    %v98 = vld [vmem:[#allocation4 + $0x18] sm:$0xff]
    %v99 = vld [vmem:[#allocation6] sm:$0x3]
    %v101 = vperm.slane %v99, 0
    %v102 = vperm.slane %v99, 1
    %v109 = vunpack.c.l.b16 %v95
    %v110 = vunpack.c.h.b16 %v95
    %v111 = vunpack.c.l.b16 %v96
    %v112 = vunpack.c.h.b16 %v96
    %v113 = vunpack.c.l.b16 %v97
    %v114 = vunpack.c.h.b16 %v97
    %v115 = vunpack.c.l.b16 %v98
    %v116 = vunpack.c.h.b16 %v98
    %v117 = vpack.c.b16 %v111, %v109
    %v118 = vpack.c.b16 %v112, %v110
    %v119 = vpack.c.b16 %v115, %v113
    %v120 = vpack.c.b16 %v116, %v114
    %vm125 = vcmask 261120
    %v127 = vsel %vm125, %v94, 0
    %129 = vmatpush.bf16.msra.mxu0 0
    %130 = vmatpush.bf16.msra.mxu0 0
    %131 = vmatpush.bf16.msra.mxu0 0
    %132 = vmatpush.bf16.msra.mxu0 0
    %133 = vmatpush.bf16.msra.mxu0 0
    %134 = vmatpush.bf16.msra.mxu0 0
    %135 = vmatpush.bf16.msra.mxu0 %v119
    %136 = vmatpush.bf16.msra.mxu0 %v117
    %137 = vmatmul.bf16.gmra.mxu0 %v127
    %v138 = vpop.f32.mrf.mxu0
    %v139 = vadd.f32 %v101, %v138
    %v140 = vpop.f32.mrf.mxu0
    %141 = vdwg.mxu0
    %142 = vmatpush.bf16.msra.mxu0 0
    %143 = vmatpush.bf16.msra.mxu0 0
    %144 = vmatpush.bf16.msra.mxu0 0
    %145 = vmatpush.bf16.msra.mxu0 0
    %146 = vmatpush.bf16.msra.mxu0 0
    %147 = vmatpush.bf16.msra.mxu0 0
    %148 = vmatpush.bf16.msra.mxu0 %v120
    %149 = vmatpush.bf16.msra.mxu0 %v118
    %150 = vmatmul.bf16.gmra.mxu0 %v127
    %v151 = vpop.f32.mrf.mxu0
    %v152 = vadd.f32 %v102, %v151
    %v153 = vpop.f32.mrf.mxu0
    %154 = vdwg.mxu0
    %v155 = vmax.f32 %v139, 0.0
    %v156 = vmax.f32 %v152, 0.0
    %v157 = vpack.c.bf16 %v155, %v155
    %v158 = vpack.c.bf16 %v156, %v156
    %v159 = vld [vmem:[#allocation7] sm:$0xff]
    %v160 = vld [vmem:[#allocation7 + $0x8] sm:$0xff]
    %v161 = vld [vmem:[#allocation7 + $0x10] sm:$0xff]
    %v162 = vld [vmem:[#allocation7 + $0x18] sm:$0xff]
    %v163 = vld [vmem:[#allocation7 + $0x20] sm:$0xff]
    %v164 = vld [vmem:[#allocation7 + $0x28] sm:$0xff]
    %v165 = vld [vmem:[#allocation7 + $0x30] sm:$0xff]
    %v166 = vld [vmem:[#allocation7 + $0x38] sm:$0xff]
    %v167 = vld [vmem:[#allocation7 + $0x40] sm:$0xff]
    %v168 = vld [vmem:[#allocation7 + $0x48] sm:$0xff]
    %v169 = vld [vmem:[#allocation7 + $0x50] sm:$0xff]
    %v170 = vld [vmem:[#allocation7 + $0x58] sm:$0xff]
    %v171 = vld [vmem:[#allocation7 + $0x60] sm:$0xff]
    %v172 = vld [vmem:[#allocation7 + $0x68] sm:$0xff]
    %v173 = vld [vmem:[#allocation7 + $0x70] sm:$0xff]
    %v174 = vld [vmem:[#allocation7 + $0x78] sm:$0xff]
    %v175 = vld [vmem:[#allocation7 + $0x80] sm:$0xff]
    %v176 = vld [vmem:[#allocation7 + $0x88] sm:$0xff]
    %v177 = vld [vmem:[#allocation7 + $0x90] sm:$0xff]
    %v178 = vld [vmem:[#allocation7 + $0x98] sm:$0xff]
    %v179 = vld [vmem:[#allocation7 + $0xa0] sm:$0xff]
    %v180 = vld [vmem:[#allocation7 + $0xa8] sm:$0xff]
    %v181 = vld [vmem:[#allocation7 + $0xb0] sm:$0xff]
    %v182 = vld [vmem:[#allocation7 + $0xb8] sm:$0xff]
    %v183 = vld [vmem:[#allocation7 + $0xc0] sm:$0xff]
    %v184 = vld [vmem:[#allocation7 + $0xc8] sm:$0xff]
    %v185 = vld [vmem:[#allocation7 + $0xd0] sm:$0xff]
    %v186 = vld [vmem:[#allocation7 + $0xd8] sm:$0xff]
    %v187 = vld [vmem:[#allocation7 + $0xe0] sm:$0xff]
    %v188 = vld [vmem:[#allocation7 + $0xe8] sm:$0xff]
    %v189 = vld [vmem:[#allocation7 + $0xf0] sm:$0xff]
    %v190 = vld [vmem:[#allocation7 + $0xf8] sm:$0xff]
    %v191 = vld [vmem:[#allocation7 + $0x100] sm:$0xff]
    %v192 = vld [vmem:[#allocation7 + $0x108] sm:$0xff]
    %v193 = vld [vmem:[#allocation7 + $0x110] sm:$0xff]
    %v194 = vld [vmem:[#allocation7 + $0x118] sm:$0xff]
    %v195 = vld [vmem:[#allocation7 + $0x120] sm:$0xff]
    %v196 = vld [vmem:[#allocation7 + $0x128] sm:$0xff]
    %v197 = vld [vmem:[#allocation7 + $0x130] sm:$0xff]
    %v198 = vld [vmem:[#allocation7 + $0x138] sm:$0xff]
    %v199 = vld [vmem:[#allocation7 + $0x140] sm:$0xff]
    %v200 = vld [vmem:[#allocation7 + $0x148] sm:$0xff]
    %v201 = vld [vmem:[#allocation7 + $0x150] sm:$0xff]
    %v202 = vld [vmem:[#allocation7 + $0x158] sm:$0xff]
    %v203 = vld [vmem:[#allocation7 + $0x160] sm:$0xff]
    %v204 = vld [vmem:[#allocation7 + $0x168] sm:$0xff]
    %v205 = vld [vmem:[#allocation7 + $0x170] sm:$0xff]
    %v206 = vld [vmem:[#allocation7 + $0x178] sm:$0xff]
    %v207 = vld [vmem:[#allocation7 + $0x180] sm:$0xff]
    %v208 = vld [vmem:[#allocation7 + $0x188] sm:$0xff]
    %v209 = vld [vmem:[#allocation7 + $0x190] sm:$0xff]
    %v210 = vld [vmem:[#allocation7 + $0x198] sm:$0xff]
    %v211 = vld [vmem:[#allocation7 + $0x1a0] sm:$0xff]
    %v212 = vld [vmem:[#allocation7 + $0x1a8] sm:$0xff]
    %v213 = vld [vmem:[#allocation7 + $0x1b0] sm:$0xff]
    %v214 = vld [vmem:[#allocation7 + $0x1b8] sm:$0xff]
    %v215 = vld [vmem:[#allocation7 + $0x1c0] sm:$0xff]
    %v216 = vld [vmem:[#allocation7 + $0x1c8] sm:$0xff]
    %v217 = vld [vmem:[#allocation7 + $0x1d0] sm:$0xff]
    %v218 = vld [vmem:[#allocation7 + $0x1d8] sm:$0xff]
    %v219 = vld [vmem:[#allocation7 + $0x1e0] sm:$0xff]
    %v220 = vld [vmem:[#allocation7 + $0x1e8] sm:$0xff]
    %v221 = vld [vmem:[#allocation7 + $0x1f0] sm:$0xff]
    %v222 = vld [vmem:[#allocation7 + $0x1f8] sm:$0xff]
    %v223 = vld [vmem:[#allocation7 + $0x200] sm:$0xff]
    %v224 = vld [vmem:[#allocation7 + $0x208] sm:$0xff]
    %v225 = vld [vmem:[#allocation7 + $0x210] sm:$0xff]
    %v226 = vld [vmem:[#allocation7 + $0x218] sm:$0xff]
    %v227 = vld [vmem:[#allocation7 + $0x220] sm:$0xff]
    %v228 = vld [vmem:[#allocation7 + $0x228] sm:$0xff]
    %v229 = vld [vmem:[#allocation7 + $0x230] sm:$0xff]
    %v230 = vld [vmem:[#allocation7 + $0x238] sm:$0xff]
    %v231 = vld [vmem:[#allocation7 + $0x240] sm:$0xff]
    %v232 = vld [vmem:[#allocation7 + $0x248] sm:$0xff]
    %v233 = vld [vmem:[#allocation7 + $0x250] sm:$0xff]
    %v234 = vld [vmem:[#allocation7 + $0x258] sm:$0xff]
    %v235 = vld [vmem:[#allocation7 + $0x260] sm:$0xff]
    %v236 = vld [vmem:[#allocation7 + $0x268] sm:$0xff]
    %v237 = vld [vmem:[#allocation7 + $0x270] sm:$0xff]
    %v238 = vld [vmem:[#allocation7 + $0x278] sm:$0xff]
    %v239 = vld [vmem:[#allocation7 + $0x280] sm:$0xff]
    %v240 = vld [vmem:[#allocation7 + $0x288] sm:$0xff]
    %v241 = vld [vmem:[#allocation7 + $0x290] sm:$0xff]
    %v242 = vld [vmem:[#allocation7 + $0x298] sm:$0xff]
    %v243 = vld [vmem:[#allocation7 + $0x2a0] sm:$0xff]
    %v244 = vld [vmem:[#allocation7 + $0x2a8] sm:$0xff]
    %v245 = vld [vmem:[#allocation7 + $0x2b0] sm:$0xff]
    %v246 = vld [vmem:[#allocation7 + $0x2b8] sm:$0xff]
    %v247 = vld [vmem:[#allocation7 + $0x2c0] sm:$0xff]
    %v248 = vld [vmem:[#allocation7 + $0x2c8] sm:$0xff]
    %v249 = vld [vmem:[#allocation7 + $0x2d0] sm:$0xff]
    %v250 = vld [vmem:[#allocation7 + $0x2d8] sm:$0xff]
    %v251 = vld [vmem:[#allocation7 + $0x2e0] sm:$0xff]
    %v252 = vld [vmem:[#allocation7 + $0x2e8] sm:$0xff]
    %v253 = vld [vmem:[#allocation7 + $0x2f0] sm:$0xff]
    %v254 = vld [vmem:[#allocation7 + $0x2f8] sm:$0xff]
    %v255 = vld [vmem:[#allocation7 + $0x300] sm:$0xff]
    %v256 = vld [vmem:[#allocation7 + $0x308] sm:$0xff]
    %v257 = vld [vmem:[#allocation7 + $0x310] sm:$0xff]
    %v258 = vld [vmem:[#allocation7 + $0x318] sm:$0xff]
    %v259 = vld [vmem:[#allocation7 + $0x320] sm:$0xff]
    %v260 = vld [vmem:[#allocation7 + $0x328] sm:$0xff]
    %v261 = vld [vmem:[#allocation7 + $0x330] sm:$0xff]
    %v262 = vld [vmem:[#allocation7 + $0x338] sm:$0xff]
    %v263 = vld [vmem:[#allocation7 + $0x340] sm:$0xff]
    %v264 = vld [vmem:[#allocation7 + $0x348] sm:$0xff]
    %v265 = vld [vmem:[#allocation7 + $0x350] sm:$0xff]
    %v266 = vld [vmem:[#allocation7 + $0x358] sm:$0xff]
    %v267 = vld [vmem:[#allocation7 + $0x360] sm:$0xff]
    %v268 = vld [vmem:[#allocation7 + $0x368] sm:$0xff]
    %v269 = vld [vmem:[#allocation7 + $0x370] sm:$0xff]
    %v270 = vld [vmem:[#allocation7 + $0x378] sm:$0xff]
    %v271 = vld [vmem:[#allocation7 + $0x380] sm:$0xff]
    %v272 = vld [vmem:[#allocation7 + $0x388] sm:$0xff]
    %v273 = vld [vmem:[#allocation7 + $0x390] sm:$0xff]
    %v274 = vld [vmem:[#allocation7 + $0x398] sm:$0xff]
    %v275 = vld [vmem:[#allocation7 + $0x3a0] sm:$0xff]
    %v276 = vld [vmem:[#allocation7 + $0x3a8] sm:$0xff]
    %v277 = vld [vmem:[#allocation7 + $0x3b0] sm:$0xff]
    %v278 = vld [vmem:[#allocation7 + $0x3b8] sm:$0xff]
    %v279 = vld [vmem:[#allocation7 + $0x3c0] sm:$0xff]
    %v280 = vld [vmem:[#allocation7 + $0x3c8] sm:$0xff]
    %v281 = vld [vmem:[#allocation7 + $0x3d0] sm:$0xff]
    %v282 = vld [vmem:[#allocation7 + $0x3d8] sm:$0xff]
    %v283 = vld [vmem:[#allocation7 + $0x3e0] sm:$0xff]
    %v284 = vld [vmem:[#allocation7 + $0x3e8] sm:$0xff]
    %v285 = vld [vmem:[#allocation7 + $0x3f0] sm:$0xff]
    %v286 = vld [vmem:[#allocation7 + $0x3f8] sm:$0xff]
    %v287 = vld [vmem:[#allocation9] sm:$0xff]
    %v289 = vperm.slane %v287, 0
    %v290 = vperm.slane %v287, 1
    %v291 = vperm.slane %v287, 2
    %v292 = vperm.slane %v287, 3
    %v293 = vperm.slane %v287, 4
    %v294 = vperm.slane %v287, 5
    %v295 = vperm.slane %v287, 6
    %v296 = vperm.slane %v287, 7
    %v433 = vunpack.c.l.b16 %v159
    %v434 = vunpack.c.h.b16 %v159
    %v435 = vunpack.c.l.b16 %v160
    %v436 = vunpack.c.h.b16 %v160
    %v437 = vunpack.c.l.b16 %v161
    %v438 = vunpack.c.h.b16 %v161
    %v439 = vunpack.c.l.b16 %v162
    %v440 = vunpack.c.h.b16 %v162
    %v441 = vunpack.c.l.b16 %v163
    %v442 = vunpack.c.h.b16 %v163
    %v443 = vunpack.c.l.b16 %v164
    %v444 = vunpack.c.h.b16 %v164
    %v445 = vunpack.c.l.b16 %v165
    %v446 = vunpack.c.h.b16 %v165
    %v447 = vunpack.c.l.b16 %v166
    %v448 = vunpack.c.h.b16 %v166
    %v449 = vunpack.c.l.b16 %v167
    %v450 = vunpack.c.h.b16 %v167
    %v451 = vunpack.c.l.b16 %v168
    %v452 = vunpack.c.h.b16 %v168
    %v453 = vunpack.c.l.b16 %v169
    %v454 = vunpack.c.h.b16 %v169
    %v455 = vunpack.c.l.b16 %v170
    %v456 = vunpack.c.h.b16 %v170
    %v457 = vunpack.c.l.b16 %v171
    %v458 = vunpack.c.h.b16 %v171
    %v459 = vunpack.c.l.b16 %v172
    %v460 = vunpack.c.h.b16 %v172
    %v461 = vunpack.c.l.b16 %v173
    %v462 = vunpack.c.h.b16 %v173
    %v463 = vunpack.c.l.b16 %v174
    %v464 = vunpack.c.h.b16 %v174
    %v465 = vunpack.c.l.b16 %v175
    %v466 = vunpack.c.h.b16 %v175
    %v467 = vunpack.c.l.b16 %v176
    %v468 = vunpack.c.h.b16 %v176
    %v469 = vunpack.c.l.b16 %v177
    %v470 = vunpack.c.h.b16 %v177
    %v471 = vunpack.c.l.b16 %v178
    %v472 = vunpack.c.h.b16 %v178
    %v473 = vunpack.c.l.b16 %v179
    %v474 = vunpack.c.h.b16 %v179
    %v475 = vunpack.c.l.b16 %v180
    %v476 = vunpack.c.h.b16 %v180
    %v477 = vunpack.c.l.b16 %v181
    %v478 = vunpack.c.h.b16 %v181
    %v479 = vunpack.c.l.b16 %v182
    %v480 = vunpack.c.h.b16 %v182
    %v481 = vunpack.c.l.b16 %v183
    %v482 = vunpack.c.h.b16 %v183
    %v483 = vunpack.c.l.b16 %v184
    %v484 = vunpack.c.h.b16 %v184
    %v485 = vunpack.c.l.b16 %v185
    %v486 = vunpack.c.h.b16 %v185
    %v487 = vunpack.c.l.b16 %v186
    %v488 = vunpack.c.h.b16 %v186
    %v489 = vunpack.c.l.b16 %v187
    %v490 = vunpack.c.h.b16 %v187
    %v491 = vunpack.c.l.b16 %v188
    %v492 = vunpack.c.h.b16 %v188
    %v493 = vunpack.c.l.b16 %v189
    %v494 = vunpack.c.h.b16 %v189
    %v495 = vunpack.c.l.b16 %v190
    %v496 = vunpack.c.h.b16 %v190
    %v497 = vunpack.c.l.b16 %v191
    %v498 = vunpack.c.h.b16 %v191
    %v499 = vunpack.c.l.b16 %v192
    %v500 = vunpack.c.h.b16 %v192
    %v501 = vunpack.c.l.b16 %v193
    %v502 = vunpack.c.h.b16 %v193
    %v503 = vunpack.c.l.b16 %v194
    %v504 = vunpack.c.h.b16 %v194
    %v505 = vunpack.c.l.b16 %v195
    %v506 = vunpack.c.h.b16 %v195
    %v507 = vunpack.c.l.b16 %v196
    %v508 = vunpack.c.h.b16 %v196
    %v509 = vunpack.c.l.b16 %v197
    %v510 = vunpack.c.h.b16 %v197
    %v511 = vunpack.c.l.b16 %v198
    %v512 = vunpack.c.h.b16 %v198
    %v513 = vunpack.c.l.b16 %v199
    %v514 = vunpack.c.h.b16 %v199
    %v515 = vunpack.c.l.b16 %v200
    %v516 = vunpack.c.h.b16 %v200
    %v517 = vunpack.c.l.b16 %v201
    %v518 = vunpack.c.h.b16 %v201
    %v519 = vunpack.c.l.b16 %v202
    %v520 = vunpack.c.h.b16 %v202
    %v521 = vunpack.c.l.b16 %v203
    %v522 = vunpack.c.h.b16 %v203
    %v523 = vunpack.c.l.b16 %v204
    %v524 = vunpack.c.h.b16 %v204
    %v525 = vunpack.c.l.b16 %v205
    %v526 = vunpack.c.h.b16 %v205
    %v527 = vunpack.c.l.b16 %v206
    %v528 = vunpack.c.h.b16 %v206
    %v529 = vunpack.c.l.b16 %v207
    %v530 = vunpack.c.h.b16 %v207
    %v531 = vunpack.c.l.b16 %v208
    %v532 = vunpack.c.h.b16 %v208
    %v533 = vunpack.c.l.b16 %v209
    %v534 = vunpack.c.h.b16 %v209
    %v535 = vunpack.c.l.b16 %v210
    %v536 = vunpack.c.h.b16 %v210
    %v537 = vunpack.c.l.b16 %v211
    %v538 = vunpack.c.h.b16 %v211
    %v539 = vunpack.c.l.b16 %v212
    %v540 = vunpack.c.h.b16 %v212
    %v541 = vunpack.c.l.b16 %v213
    %v542 = vunpack.c.h.b16 %v213
    %v543 = vunpack.c.l.b16 %v214
    %v544 = vunpack.c.h.b16 %v214
    %v545 = vunpack.c.l.b16 %v215
    %v546 = vunpack.c.h.b16 %v215
    %v547 = vunpack.c.l.b16 %v216
    %v548 = vunpack.c.h.b16 %v216
    %v549 = vunpack.c.l.b16 %v217
    %v550 = vunpack.c.h.b16 %v217
    %v551 = vunpack.c.l.b16 %v218
    %v552 = vunpack.c.h.b16 %v218
    %v553 = vunpack.c.l.b16 %v219
    %v554 = vunpack.c.h.b16 %v219
    %v555 = vunpack.c.l.b16 %v220
    %v556 = vunpack.c.h.b16 %v220
    %v557 = vunpack.c.l.b16 %v221
    %v558 = vunpack.c.h.b16 %v221
    %v559 = vunpack.c.l.b16 %v222
    %v560 = vunpack.c.h.b16 %v222
    %v561 = vunpack.c.l.b16 %v223
    %v562 = vunpack.c.h.b16 %v223
    %v563 = vunpack.c.l.b16 %v224
    %v564 = vunpack.c.h.b16 %v224
    %v565 = vunpack.c.l.b16 %v225
    %v566 = vunpack.c.h.b16 %v225
    %v567 = vunpack.c.l.b16 %v226
    %v568 = vunpack.c.h.b16 %v226
    %v569 = vunpack.c.l.b16 %v227
    %v570 = vunpack.c.h.b16 %v227
    %v571 = vunpack.c.l.b16 %v228
    %v572 = vunpack.c.h.b16 %v228
    %v573 = vunpack.c.l.b16 %v229
    %v574 = vunpack.c.h.b16 %v229
    %v575 = vunpack.c.l.b16 %v230
    %v576 = vunpack.c.h.b16 %v230
    %v577 = vunpack.c.l.b16 %v231
    %v578 = vunpack.c.h.b16 %v231
    %v579 = vunpack.c.l.b16 %v232
    %v580 = vunpack.c.h.b16 %v232
    %v581 = vunpack.c.l.b16 %v233
    %v582 = vunpack.c.h.b16 %v233
    %v583 = vunpack.c.l.b16 %v234
    %v584 = vunpack.c.h.b16 %v234
    %v585 = vunpack.c.l.b16 %v235
    %v586 = vunpack.c.h.b16 %v235
    %v587 = vunpack.c.l.b16 %v236
    %v588 = vunpack.c.h.b16 %v236
    %v589 = vunpack.c.l.b16 %v237
    %v590 = vunpack.c.h.b16 %v237
    %v591 = vunpack.c.l.b16 %v238
    %v592 = vunpack.c.h.b16 %v238
    %v593 = vunpack.c.l.b16 %v239
    %v594 = vunpack.c.h.b16 %v239
    %v595 = vunpack.c.l.b16 %v240
    %v596 = vunpack.c.h.b16 %v240
    %v597 = vunpack.c.l.b16 %v241
    %v598 = vunpack.c.h.b16 %v241
    %v599 = vunpack.c.l.b16 %v242
    %v600 = vunpack.c.h.b16 %v242
    %v601 = vunpack.c.l.b16 %v243
    %v602 = vunpack.c.h.b16 %v243
    %v603 = vunpack.c.l.b16 %v244
    %v604 = vunpack.c.h.b16 %v244
    %v605 = vunpack.c.l.b16 %v245
    %v606 = vunpack.c.h.b16 %v245
    %v607 = vunpack.c.l.b16 %v246
    %v608 = vunpack.c.h.b16 %v246
    %v609 = vunpack.c.l.b16 %v247
    %v610 = vunpack.c.h.b16 %v247
    %v611 = vunpack.c.l.b16 %v248
    %v612 = vunpack.c.h.b16 %v248
    %v613 = vunpack.c.l.b16 %v249
    %v614 = vunpack.c.h.b16 %v249
    %v615 = vunpack.c.l.b16 %v250
    %v616 = vunpack.c.h.b16 %v250
    %v617 = vunpack.c.l.b16 %v251
    %v618 = vunpack.c.h.b16 %v251
    %v619 = vunpack.c.l.b16 %v252
    %v620 = vunpack.c.h.b16 %v252
    %v621 = vunpack.c.l.b16 %v253
    %v622 = vunpack.c.h.b16 %v253
    %v623 = vunpack.c.l.b16 %v254
    %v624 = vunpack.c.h.b16 %v254
    %v625 = vunpack.c.l.b16 %v255
    %v626 = vunpack.c.h.b16 %v255
    %v627 = vunpack.c.l.b16 %v256
    %v628 = vunpack.c.h.b16 %v256
    %v629 = vunpack.c.l.b16 %v257
    %v630 = vunpack.c.h.b16 %v257
    %v631 = vunpack.c.l.b16 %v258
    %v632 = vunpack.c.h.b16 %v258
    %v633 = vunpack.c.l.b16 %v259
    %v634 = vunpack.c.h.b16 %v259
    %v635 = vunpack.c.l.b16 %v260
    %v636 = vunpack.c.h.b16 %v260
    %v637 = vunpack.c.l.b16 %v261
    %v638 = vunpack.c.h.b16 %v261
    %v639 = vunpack.c.l.b16 %v262
    %v640 = vunpack.c.h.b16 %v262
    %v641 = vunpack.c.l.b16 %v263
    %v642 = vunpack.c.h.b16 %v263
    %v643 = vunpack.c.l.b16 %v264
    %v644 = vunpack.c.h.b16 %v264
    %v645 = vunpack.c.l.b16 %v265
    %v646 = vunpack.c.h.b16 %v265
    %v647 = vunpack.c.l.b16 %v266
    %v648 = vunpack.c.h.b16 %v266
    %v649 = vunpack.c.l.b16 %v267
    %v650 = vunpack.c.h.b16 %v267
    %v651 = vunpack.c.l.b16 %v268
    %v652 = vunpack.c.h.b16 %v268
    %v653 = vunpack.c.l.b16 %v269
    %v654 = vunpack.c.h.b16 %v269
    %v655 = vunpack.c.l.b16 %v270
    %v656 = vunpack.c.h.b16 %v270
    %v657 = vunpack.c.l.b16 %v271
    %v658 = vunpack.c.h.b16 %v271
    %v659 = vunpack.c.l.b16 %v272
    %v660 = vunpack.c.h.b16 %v272
    %v661 = vunpack.c.l.b16 %v273
    %v662 = vunpack.c.h.b16 %v273
    %v663 = vunpack.c.l.b16 %v274
    %v664 = vunpack.c.h.b16 %v274
    %v665 = vunpack.c.l.b16 %v275
    %v666 = vunpack.c.h.b16 %v275
    %v667 = vunpack.c.l.b16 %v276
    %v668 = vunpack.c.h.b16 %v276
    %v669 = vunpack.c.l.b16 %v277
    %v670 = vunpack.c.h.b16 %v277
    %v671 = vunpack.c.l.b16 %v278
    %v672 = vunpack.c.h.b16 %v278
    %v673 = vunpack.c.l.b16 %v279
    %v674 = vunpack.c.h.b16 %v279
    %v675 = vunpack.c.l.b16 %v280
    %v676 = vunpack.c.h.b16 %v280
    %v677 = vunpack.c.l.b16 %v281
    %v678 = vunpack.c.h.b16 %v281
    %v679 = vunpack.c.l.b16 %v282
    %v680 = vunpack.c.h.b16 %v282
    %v681 = vunpack.c.l.b16 %v283
    %v682 = vunpack.c.h.b16 %v283
    %v683 = vunpack.c.l.b16 %v284
    %v684 = vunpack.c.h.b16 %v284
    %v685 = vunpack.c.l.b16 %v285
    %v686 = vunpack.c.h.b16 %v285
    %v687 = vunpack.c.l.b16 %v286
    %v688 = vunpack.c.h.b16 %v286
    %v689 = vpack.c.b16 %v441, %v433
    %v690 = vpack.c.b16 %v442, %v434
    %v691 = vpack.c.b16 %v443, %v435
    %v692 = vpack.c.b16 %v444, %v436
    %v693 = vpack.c.b16 %v445, %v437
    %v694 = vpack.c.b16 %v446, %v438
    %v695 = vpack.c.b16 %v447, %v439
    %v696 = vpack.c.b16 %v448, %v440
    %v697 = vpack.c.b16 %v457, %v449
    %v698 = vpack.c.b16 %v458, %v450
    %v699 = vpack.c.b16 %v459, %v451
    %v700 = vpack.c.b16 %v460, %v452
    %v701 = vpack.c.b16 %v461, %v453
    %v702 = vpack.c.b16 %v462, %v454
    %v703 = vpack.c.b16 %v463, %v455
    %v704 = vpack.c.b16 %v464, %v456
    %v705 = vpack.c.b16 %v473, %v465
    %v706 = vpack.c.b16 %v474, %v466
    %v707 = vpack.c.b16 %v475, %v467
    %v708 = vpack.c.b16 %v476, %v468
    %v709 = vpack.c.b16 %v477, %v469
    %v710 = vpack.c.b16 %v478, %v470
    %v711 = vpack.c.b16 %v479, %v471
    %v712 = vpack.c.b16 %v480, %v472
    %v713 = vpack.c.b16 %v489, %v481
    %v714 = vpack.c.b16 %v490, %v482
    %v715 = vpack.c.b16 %v491, %v483
    %v716 = vpack.c.b16 %v492, %v484
    %v717 = vpack.c.b16 %v493, %v485
    %v718 = vpack.c.b16 %v494, %v486
    %v719 = vpack.c.b16 %v495, %v487
    %v720 = vpack.c.b16 %v496, %v488
    %v721 = vpack.c.b16 %v505, %v497
    %v722 = vpack.c.b16 %v506, %v498
    %v723 = vpack.c.b16 %v507, %v499
    %v724 = vpack.c.b16 %v508, %v500
    %v725 = vpack.c.b16 %v509, %v501
    %v726 = vpack.c.b16 %v510, %v502
    %v727 = vpack.c.b16 %v511, %v503
    %v728 = vpack.c.b16 %v512, %v504
    %v729 = vpack.c.b16 %v521, %v513
    %v730 = vpack.c.b16 %v522, %v514
    %v731 = vpack.c.b16 %v523, %v515
    %v732 = vpack.c.b16 %v524, %v516
    %v733 = vpack.c.b16 %v525, %v517
    %v734 = vpack.c.b16 %v526, %v518
    %v735 = vpack.c.b16 %v527, %v519
    %v736 = vpack.c.b16 %v528, %v520
    %v737 = vpack.c.b16 %v537, %v529
    %v738 = vpack.c.b16 %v538, %v530
    %v739 = vpack.c.b16 %v539, %v531
    %v740 = vpack.c.b16 %v540, %v532
    %v741 = vpack.c.b16 %v541, %v533
    %v742 = vpack.c.b16 %v542, %v534
    %v743 = vpack.c.b16 %v543, %v535
    %v744 = vpack.c.b16 %v544, %v536
    %v745 = vpack.c.b16 %v553, %v545
    %v746 = vpack.c.b16 %v554, %v546
    %v747 = vpack.c.b16 %v555, %v547
    %v748 = vpack.c.b16 %v556, %v548
    %v749 = vpack.c.b16 %v557, %v549
    %v750 = vpack.c.b16 %v558, %v550
    %v751 = vpack.c.b16 %v559, %v551
    %v752 = vpack.c.b16 %v560, %v552
    %v753 = vpack.c.b16 %v569, %v561
    %v754 = vpack.c.b16 %v570, %v562
    %v755 = vpack.c.b16 %v571, %v563
    %v756 = vpack.c.b16 %v572, %v564
    %v757 = vpack.c.b16 %v573, %v565
    %v758 = vpack.c.b16 %v574, %v566
    %v759 = vpack.c.b16 %v575, %v567
    %v760 = vpack.c.b16 %v576, %v568
    %v761 = vpack.c.b16 %v585, %v577
    %v762 = vpack.c.b16 %v586, %v578
    %v763 = vpack.c.b16 %v587, %v579
    %v764 = vpack.c.b16 %v588, %v580
    %v765 = vpack.c.b16 %v589, %v581
    %v766 = vpack.c.b16 %v590, %v582
    %v767 = vpack.c.b16 %v591, %v583
    %v768 = vpack.c.b16 %v592, %v584
    %v769 = vpack.c.b16 %v601, %v593
    %v770 = vpack.c.b16 %v602, %v594
    %v771 = vpack.c.b16 %v603, %v595
    %v772 = vpack.c.b16 %v604, %v596
    %v773 = vpack.c.b16 %v605, %v597
    %v774 = vpack.c.b16 %v606, %v598
    %v775 = vpack.c.b16 %v607, %v599
    %v776 = vpack.c.b16 %v608, %v600
    %v777 = vpack.c.b16 %v617, %v609
    %v778 = vpack.c.b16 %v618, %v610
    %v779 = vpack.c.b16 %v619, %v611
    %v780 = vpack.c.b16 %v620, %v612
    %v781 = vpack.c.b16 %v621, %v613
    %v782 = vpack.c.b16 %v622, %v614
    %v783 = vpack.c.b16 %v623, %v615
    %v784 = vpack.c.b16 %v624, %v616
    %v785 = vpack.c.b16 %v633, %v625
    %v786 = vpack.c.b16 %v634, %v626
    %v787 = vpack.c.b16 %v635, %v627
    %v788 = vpack.c.b16 %v636, %v628
    %v789 = vpack.c.b16 %v637, %v629
    %v790 = vpack.c.b16 %v638, %v630
    %v791 = vpack.c.b16 %v639, %v631
    %v792 = vpack.c.b16 %v640, %v632
    %v793 = vpack.c.b16 %v649, %v641
    %v794 = vpack.c.b16 %v650, %v642
    %v795 = vpack.c.b16 %v651, %v643
    %v796 = vpack.c.b16 %v652, %v644
    %v797 = vpack.c.b16 %v653, %v645
    %v798 = vpack.c.b16 %v654, %v646
    %v799 = vpack.c.b16 %v655, %v647
    %v800 = vpack.c.b16 %v656, %v648
    %v801 = vpack.c.b16 %v665, %v657
    %v802 = vpack.c.b16 %v666, %v658
    %v803 = vpack.c.b16 %v667, %v659
    %v804 = vpack.c.b16 %v668, %v660
    %v805 = vpack.c.b16 %v669, %v661
    %v806 = vpack.c.b16 %v670, %v662
    %v807 = vpack.c.b16 %v671, %v663
    %v808 = vpack.c.b16 %v672, %v664
    %v809 = vpack.c.b16 %v681, %v673
    %v810 = vpack.c.b16 %v682, %v674
    %v811 = vpack.c.b16 %v683, %v675
    %v812 = vpack.c.b16 %v684, %v676
    %v813 = vpack.c.b16 %v685, %v677
    %v814 = vpack.c.b16 %v686, %v678
    %v815 = vpack.c.b16 %v687, %v679
    %v816 = vpack.c.b16 %v688, %v680
    %945 = vmatpush.bf16.msra.mxu0 %v745
    %946 = vmatpush.bf16.msra.mxu0 %v737
    %947 = vmatpush.bf16.msra.mxu0 %v729
    %948 = vmatpush.bf16.msra.mxu0 %v721
    %949 = vmatpush.bf16.msra.mxu0 %v713
    %950 = vmatpush.bf16.msra.mxu0 %v705
    %951 = vmatpush.bf16.msra.mxu0 %v697
    %952 = vmatpush.bf16.msra.mxu0 %v689
    %953 = vmatmul.bf16.gmra.mxu0 %v157
    %v954 = vpop.f32.mrf.mxu0
    %v955 = vadd.f32 %v289, %v954
    %v956 = vpop.f32.mrf.mxu0
    %957 = vdwg.mxu0
    %958 = vmatpush.bf16.msra.mxu0 %v809
    %959 = vmatpush.bf16.msra.mxu0 %v801
    %960 = vmatpush.bf16.msra.mxu0 %v793
    %961 = vmatpush.bf16.msra.mxu0 %v785
    %962 = vmatpush.bf16.msra.mxu0 %v777
    %963 = vmatpush.bf16.msra.mxu0 %v769
    %964 = vmatpush.bf16.msra.mxu0 %v761
    %965 = vmatpush.bf16.msra.mxu0 %v753
    %966 = vmatmul.bf16.gmra.mxu0 %v158
    %v967 = vpop.f32.mrf.mxu0
    %v968 = vadd.f32 %v955, %v967
    %v969 = vpop.f32.mrf.mxu0
    %970 = vdwg.mxu0
    %971 = vmatpush.bf16.msra.mxu0 %v746
    %972 = vmatpush.bf16.msra.mxu0 %v738
    %973 = vmatpush.bf16.msra.mxu0 %v730
    %974 = vmatpush.bf16.msra.mxu0 %v722
    %975 = vmatpush.bf16.msra.mxu0 %v714
    %976 = vmatpush.bf16.msra.mxu0 %v706
    %977 = vmatpush.bf16.msra.mxu0 %v698
    %978 = vmatpush.bf16.msra.mxu0 %v690
    %979 = vmatmul.bf16.gmra.mxu0 %v157
    %v980 = vpop.f32.mrf.mxu0
    %v981 = vadd.f32 %v290, %v980
    %v982 = vpop.f32.mrf.mxu0
    %983 = vdwg.mxu0
    %984 = vmatpush.bf16.msra.mxu0 %v810
    %985 = vmatpush.bf16.msra.mxu0 %v802
    %986 = vmatpush.bf16.msra.mxu0 %v794
    %987 = vmatpush.bf16.msra.mxu0 %v786
    %988 = vmatpush.bf16.msra.mxu0 %v778
    %989 = vmatpush.bf16.msra.mxu0 %v770
    %990 = vmatpush.bf16.msra.mxu0 %v762
    %991 = vmatpush.bf16.msra.mxu0 %v754
    %992 = vmatmul.bf16.gmra.mxu0 %v158
    %v993 = vpop.f32.mrf.mxu0
    %v994 = vadd.f32 %v981, %v993
    %v995 = vpop.f32.mrf.mxu0
    %996 = vdwg.mxu0
    %997 = vmatpush.bf16.msra.mxu0 %v747
    %998 = vmatpush.bf16.msra.mxu0 %v739
    %999 = vmatpush.bf16.msra.mxu0 %v731
    %1000 = vmatpush.bf16.msra.mxu0 %v723
    %1001 = vmatpush.bf16.msra.mxu0 %v715
    %1002 = vmatpush.bf16.msra.mxu0 %v707
    %1003 = vmatpush.bf16.msra.mxu0 %v699
    %1004 = vmatpush.bf16.msra.mxu0 %v691
    %1005 = vmatmul.bf16.gmra.mxu0 %v157
    %v1006 = vpop.f32.mrf.mxu0
    %v1007 = vadd.f32 %v291, %v1006
    %v1008 = vpop.f32.mrf.mxu0
    %1009 = vdwg.mxu0
    %1010 = vmatpush.bf16.msra.mxu0 %v811
    %1011 = vmatpush.bf16.msra.mxu0 %v803
    %1012 = vmatpush.bf16.msra.mxu0 %v795
    %1013 = vmatpush.bf16.msra.mxu0 %v787
    %1014 = vmatpush.bf16.msra.mxu0 %v779
    %1015 = vmatpush.bf16.msra.mxu0 %v771
    %1016 = vmatpush.bf16.msra.mxu0 %v763
    %1017 = vmatpush.bf16.msra.mxu0 %v755
    %1018 = vmatmul.bf16.gmra.mxu0 %v158
    %v1019 = vpop.f32.mrf.mxu0
    %v1020 = vadd.f32 %v1007, %v1019
    %v1021 = vpop.f32.mrf.mxu0
    %1022 = vdwg.mxu0
    %1023 = vmatpush.bf16.msra.mxu0 %v748
    %1024 = vmatpush.bf16.msra.mxu0 %v740
    %1025 = vmatpush.bf16.msra.mxu0 %v732
    %1026 = vmatpush.bf16.msra.mxu0 %v724
    %1027 = vmatpush.bf16.msra.mxu0 %v716
    %1028 = vmatpush.bf16.msra.mxu0 %v708
    %1029 = vmatpush.bf16.msra.mxu0 %v700
    %1030 = vmatpush.bf16.msra.mxu0 %v692
    %1031 = vmatmul.bf16.gmra.mxu0 %v157
    %v1032 = vpop.f32.mrf.mxu0
    %v1033 = vadd.f32 %v292, %v1032
    %v1034 = vpop.f32.mrf.mxu0
    %1035 = vdwg.mxu0
    %1036 = vmatpush.bf16.msra.mxu0 %v812
    %1037 = vmatpush.bf16.msra.mxu0 %v804
    %1038 = vmatpush.bf16.msra.mxu0 %v796
    %1039 = vmatpush.bf16.msra.mxu0 %v788
    %1040 = vmatpush.bf16.msra.mxu0 %v780
    %1041 = vmatpush.bf16.msra.mxu0 %v772
    %1042 = vmatpush.bf16.msra.mxu0 %v764
    %1043 = vmatpush.bf16.msra.mxu0 %v756
    %1044 = vmatmul.bf16.gmra.mxu0 %v158
    %v1045 = vpop.f32.mrf.mxu0
    %v1046 = vadd.f32 %v1033, %v1045
    %v1047 = vpop.f32.mrf.mxu0
    %1048 = vdwg.mxu0
    %1049 = vmatpush.bf16.msra.mxu0 %v749
    %1050 = vmatpush.bf16.msra.mxu0 %v741
    %1051 = vmatpush.bf16.msra.mxu0 %v733
    %1052 = vmatpush.bf16.msra.mxu0 %v725
    %1053 = vmatpush.bf16.msra.mxu0 %v717
    %1054 = vmatpush.bf16.msra.mxu0 %v709
    %1055 = vmatpush.bf16.msra.mxu0 %v701
    %1056 = vmatpush.bf16.msra.mxu0 %v693
    %1057 = vmatmul.bf16.gmra.mxu0 %v157
    %v1058 = vpop.f32.mrf.mxu0
    %v1059 = vadd.f32 %v293, %v1058
    %v1060 = vpop.f32.mrf.mxu0
    %1061 = vdwg.mxu0
    %1062 = vmatpush.bf16.msra.mxu0 %v813
    %1063 = vmatpush.bf16.msra.mxu0 %v805
    %1064 = vmatpush.bf16.msra.mxu0 %v797
    %1065 = vmatpush.bf16.msra.mxu0 %v789
    %1066 = vmatpush.bf16.msra.mxu0 %v781
    %1067 = vmatpush.bf16.msra.mxu0 %v773
    %1068 = vmatpush.bf16.msra.mxu0 %v765
    %1069 = vmatpush.bf16.msra.mxu0 %v757
    %1070 = vmatmul.bf16.gmra.mxu0 %v158
    %v1071 = vpop.f32.mrf.mxu0
    %v1072 = vadd.f32 %v1059, %v1071
    %v1073 = vpop.f32.mrf.mxu0
    %1074 = vdwg.mxu0
    %1075 = vmatpush.bf16.msra.mxu0 %v750
    %1076 = vmatpush.bf16.msra.mxu0 %v742
    %1077 = vmatpush.bf16.msra.mxu0 %v734
    %1078 = vmatpush.bf16.msra.mxu0 %v726
    %1079 = vmatpush.bf16.msra.mxu0 %v718
    %1080 = vmatpush.bf16.msra.mxu0 %v710
    %1081 = vmatpush.bf16.msra.mxu0 %v702
    %1082 = vmatpush.bf16.msra.mxu0 %v694
    %1083 = vmatmul.bf16.gmra.mxu0 %v157
    %v1084 = vpop.f32.mrf.mxu0
    %v1085 = vadd.f32 %v294, %v1084
    %v1086 = vpop.f32.mrf.mxu0
    %1087 = vdwg.mxu0
    %1088 = vmatpush.bf16.msra.mxu0 %v814
    %1089 = vmatpush.bf16.msra.mxu0 %v806
    %1090 = vmatpush.bf16.msra.mxu0 %v798
    %1091 = vmatpush.bf16.msra.mxu0 %v790
    %1092 = vmatpush.bf16.msra.mxu0 %v782
    %1093 = vmatpush.bf16.msra.mxu0 %v774
    %1094 = vmatpush.bf16.msra.mxu0 %v766
    %1095 = vmatpush.bf16.msra.mxu0 %v758
    %1096 = vmatmul.bf16.gmra.mxu0 %v158
    %v1097 = vpop.f32.mrf.mxu0
    %v1098 = vadd.f32 %v1085, %v1097
    %v1099 = vpop.f32.mrf.mxu0
    %1100 = vdwg.mxu0
    %1101 = vmatpush.bf16.msra.mxu0 %v751
    %1102 = vmatpush.bf16.msra.mxu0 %v743
    %1103 = vmatpush.bf16.msra.mxu0 %v735
    %1104 = vmatpush.bf16.msra.mxu0 %v727
    %1105 = vmatpush.bf16.msra.mxu0 %v719
    %1106 = vmatpush.bf16.msra.mxu0 %v711
    %1107 = vmatpush.bf16.msra.mxu0 %v703
    %1108 = vmatpush.bf16.msra.mxu0 %v695
    %1109 = vmatmul.bf16.gmra.mxu0 %v157
    %v1110 = vpop.f32.mrf.mxu0
    %v1111 = vadd.f32 %v295, %v1110
    %v1112 = vpop.f32.mrf.mxu0
    %1113 = vdwg.mxu0
    %1114 = vmatpush.bf16.msra.mxu0 %v815
    %1115 = vmatpush.bf16.msra.mxu0 %v807
    %1116 = vmatpush.bf16.msra.mxu0 %v799
    %1117 = vmatpush.bf16.msra.mxu0 %v791
    %1118 = vmatpush.bf16.msra.mxu0 %v783
    %1119 = vmatpush.bf16.msra.mxu0 %v775
    %1120 = vmatpush.bf16.msra.mxu0 %v767
    %1121 = vmatpush.bf16.msra.mxu0 %v759
    %1122 = vmatmul.bf16.gmra.mxu0 %v158
    %v1123 = vpop.f32.mrf.mxu0
    %v1124 = vadd.f32 %v1111, %v1123
    %v1125 = vpop.f32.mrf.mxu0
    %1126 = vdwg.mxu0
    %1127 = vmatpush.bf16.msra.mxu0 %v752
    %1128 = vmatpush.bf16.msra.mxu0 %v744
    %1129 = vmatpush.bf16.msra.mxu0 %v736
    %1130 = vmatpush.bf16.msra.mxu0 %v728
    %1131 = vmatpush.bf16.msra.mxu0 %v720
    %1132 = vmatpush.bf16.msra.mxu0 %v712
    %1133 = vmatpush.bf16.msra.mxu0 %v704
    %1134 = vmatpush.bf16.msra.mxu0 %v696
    %1135 = vmatmul.bf16.gmra.mxu0 %v157
    %v1136 = vpop.f32.mrf.mxu0
    %v1137 = vadd.f32 %v296, %v1136
    %v1138 = vpop.f32.mrf.mxu0
    %1139 = vdwg.mxu0
    %1140 = vmatpush.bf16.msra.mxu0 %v816
    %1141 = vmatpush.bf16.msra.mxu0 %v808
    %1142 = vmatpush.bf16.msra.mxu0 %v800
    %1143 = vmatpush.bf16.msra.mxu0 %v792
    %1144 = vmatpush.bf16.msra.mxu0 %v784
    %1145 = vmatpush.bf16.msra.mxu0 %v776
    %1146 = vmatpush.bf16.msra.mxu0 %v768
    %1147 = vmatpush.bf16.msra.mxu0 %v760
    %1148 = vmatmul.bf16.gmra.mxu0 %v158
    %v1149 = vpop.f32.mrf.mxu0
    %v1150 = vadd.f32 %v1137, %v1149
    %v1151 = vpop.f32.mrf.mxu0
    %1152 = vdwg.mxu0
    %v1153 = vmax.f32 %v968, 0.0
    %v1154 = vmax.f32 %v994, 0.0
    %v1155 = vmax.f32 %v1020, 0.0
    %v1156 = vmax.f32 %v1046, 0.0
    %v1157 = vmax.f32 %v1072, 0.0
    %v1158 = vmax.f32 %v1098, 0.0
    %v1159 = vmax.f32 %v1124, 0.0
    %v1160 = vmax.f32 %v1150, 0.0
    %v1169 = vrot.slane %v1154, 6
    %v1170 = vrot.slane %v1155, 4
    %v1171 = vrot.slane %v1156, 2
    %v1172 = vrot.slane %v1158, 6
    %v1173 = vrot.slane %v1159, 4
    %v1174 = vrot.slane %v1160, 2
    %vm1175 = vcmask 1041408
    %v1176 = vsel %vm1175, %v1153, %v1169
    %vm1177 = vcmask 1045508
    %v1178 = vsel %vm1177, %v1170, %v1171
    %vm1179 = vcmask 1043456
    %v1180 = vsel %vm1179, %v1176, %v1178
    %v1181 = vsel %vm1175, %v1157, %v1172
    %v1182 = vsel %vm1177, %v1173, %v1174
    %v1183 = vsel %vm1179, %v1181, %v1182
    %1186 = vst [vmem:[%s5] sm:$0xff] %v1180
    %1187 = vst [vmem:[%s5 + $0x8] sm:$0xff] %v1183
    // Predicated region
    $region42: #{mnist_conv_decoder_forward.4} parent=1 // pred_check
      _
    $region43: #{mnist_conv_decoder_forward.4} parent=1 // pred_check_branch
      %1189 = sbr.rel (0) target = $region45
    $region44: #{mnist_conv_decoder_forward.4} parent=1 // pred_region
      _
    $region45: #{mnist_conv_decoder_forward.4} parent=1 // pred_fallthru
      _
    // Predicated region
    $region46: #{mnist_conv_decoder_forward.4} parent=1 // pred_check
      _
    $region47: #{mnist_conv_decoder_forward.4} parent=1 // pred_check_branch
      %1191 = sbr.rel (0) target = $region49
    $region48: #{mnist_conv_decoder_forward.4} parent=1 // pred_region
      _
    $region49: #{mnist_conv_decoder_forward.4} parent=1 // pred_fallthru
      _
    %1192 = vsyncpa [#allocation3], 1
    %1193 = vsyncpa [#allocation5], 1
    %1194 = vsyncpa [#allocation8], 1

// kernel: mnist_conv_decoder_forward.7
$region0: #{mnist_conv_decoder_forward.7}
  #allocation0 [shape = 'u32[]', space=smem, size = 0x4, offset = 0x4, fixed_abs, tag = 'smem constant byte address 0x4 - core index']
  #allocation1 [shape = 'u32[72,128]{1,0:T(1,128)}', space=vmem, size = 0x9000, scoped, tag = 'internal scratch']
  %s0 = inlined_call_operand.vmem [shape: f32[578,128], index: 0, kind: input, shape index: {}]
  %s1 = inlined_call_operand.vmem [shape: bf16[128,128], index: 1, kind: input, shape index: {}]
  %s2 = inlined_call_operand.vmem [shape: f32[1,128], index: 2, kind: input, shape index: {}]
  %s3 = inlined_call_operand.vmem [shape: f32[578,128], index: 3, kind: output, shape index: {}]
  %s4 = sld [smem:[#allocation0]]
  $region22: #{mnist_conv_decoder_forward.7} parent=0
    _
  %s6 = ssub.s32 1, %s4
  %s7 = scalar_select 0, %s6, %s4
  // Predicated region
  $region2: #{mnist_conv_decoder_forward.7} parent=0 // pred_check
    _
  $region3: #{mnist_conv_decoder_forward.7} parent=0 // pred_check_branch
    %9 = sbr.rel (0) target = $region5
  $region4: #{mnist_conv_decoder_forward.7} parent=0 // pred_region
    _
  $region5: #{mnist_conv_decoder_forward.7} parent=0 // pred_fallthru
    _
  // Predicated region
  $region6: #{mnist_conv_decoder_forward.7} parent=0 // pred_check
    _
  $region7: #{mnist_conv_decoder_forward.7} parent=0 // pred_check_branch
    %11 = sbr.rel (0) target = $region9
  $region8: #{mnist_conv_decoder_forward.7} parent=0 // pred_region
    _
  $region9: #{mnist_conv_decoder_forward.7} parent=0 // pred_fallthru
    _
  // Predicated region
  $region10: #{mnist_conv_decoder_forward.7} parent=0 // pred_check
    _
  $region11: #{mnist_conv_decoder_forward.7} parent=0 // pred_check_branch
    %13 = sbr.rel (0) target = $region13
  $region12: #{mnist_conv_decoder_forward.7} parent=0 // pred_region
    _
  $region13: #{mnist_conv_decoder_forward.7} parent=0 // pred_fallthru
    _
  %v14 = vld [vmem:[%s0] sm:$0xff]
  %v15 = vld [vmem:[%s0 + $0x8] sm:$0xff]
  %v16 = vld [vmem:[%s0 + $0x10] sm:$0xff]
  %v17 = vld [vmem:[%s0 + $0x18] sm:$0xff]
  %v18 = vld [vmem:[%s0 + $0x20] sm:$0xff]
  %v19 = vld [vmem:[%s0 + $0x28] sm:$0xff]
  %v20 = vld [vmem:[%s0 + $0x30] sm:$0xff]
  %v21 = vld [vmem:[%s0 + $0x38] sm:$0xff]
  %v22 = vld [vmem:[%s0 + $0x40] sm:$0xff]
  %v23 = vld [vmem:[%s0 + $0x48] sm:$0xff]
  %v24 = vld [vmem:[%s0 + $0x50] sm:$0xff]
  %v25 = vld [vmem:[%s0 + $0x58] sm:$0xff]
  %v26 = vld [vmem:[%s0 + $0x60] sm:$0xff]
  %v27 = vld [vmem:[%s0 + $0x68] sm:$0xff]
  %v28 = vld [vmem:[%s0 + $0x70] sm:$0xff]
  %v29 = vld [vmem:[%s0 + $0x78] sm:$0xff]
  %v30 = vld [vmem:[%s0 + $0x80] sm:$0xff]
  %v31 = vld [vmem:[%s0 + $0x88] sm:$0xff]
  %v32 = vld [vmem:[%s0 + $0x90] sm:$0xff]
  %v33 = vld [vmem:[%s0 + $0x98] sm:$0xff]
  %v34 = vld [vmem:[%s0 + $0xa0] sm:$0xff]
  %v35 = vld [vmem:[%s0 + $0xa8] sm:$0xff]
  %v36 = vld [vmem:[%s0 + $0xb0] sm:$0xff]
  %v37 = vld [vmem:[%s0 + $0xb8] sm:$0xff]
  %v38 = vld [vmem:[%s0 + $0xc0] sm:$0xff]
  %v39 = vld [vmem:[%s0 + $0xc8] sm:$0xff]
  %v40 = vld [vmem:[%s0 + $0xd0] sm:$0xff]
  %v41 = vld [vmem:[%s0 + $0xd8] sm:$0xff]
  %v42 = vld [vmem:[%s0 + $0xe0] sm:$0xff]
  %v43 = vld [vmem:[%s0 + $0xe8] sm:$0xff]
  %v44 = vld [vmem:[%s0 + $0xf0] sm:$0xff]
  %v45 = vld [vmem:[%s0 + $0xf8] sm:$0xff]
  %v46 = vld [vmem:[%s0 + $0x100] sm:$0xff]
  %v47 = vld [vmem:[%s0 + $0x108] sm:$0xff]
  %v48 = vld [vmem:[%s0 + $0x110] sm:$0xff]
  %v49 = vld [vmem:[%s0 + $0x118] sm:$0xff]
  %v50 = vld [vmem:[%s0 + $0x120] sm:$0xff]
  %v51 = vld [vmem:[%s0 + $0x128] sm:$0xff]
  %v52 = vld [vmem:[%s0 + $0x130] sm:$0xff]
  %v53 = vld [vmem:[%s0 + $0x138] sm:$0xff]
  %v54 = vld [vmem:[%s0 + $0x140] sm:$0xff]
  %v55 = vld [vmem:[%s0 + $0x148] sm:$0xff]
  %v56 = vld [vmem:[%s0 + $0x150] sm:$0xff]
  %v57 = vld [vmem:[%s0 + $0x158] sm:$0xff]
  %v58 = vld [vmem:[%s0 + $0x160] sm:$0xff]
  %v59 = vld [vmem:[%s0 + $0x168] sm:$0xff]
  %v60 = vld [vmem:[%s0 + $0x170] sm:$0xff]
  %v61 = vld [vmem:[%s0 + $0x178] sm:$0xff]
  %v62 = vld [vmem:[%s0 + $0x180] sm:$0xff]
  %v63 = vld [vmem:[%s0 + $0x188] sm:$0xff]
  %v64 = vld [vmem:[%s0 + $0x190] sm:$0xff]
  %v65 = vld [vmem:[%s0 + $0x198] sm:$0xff]
  %v66 = vld [vmem:[%s0 + $0x1a0] sm:$0xff]
  %v67 = vld [vmem:[%s0 + $0x1a8] sm:$0xff]
  %v68 = vld [vmem:[%s0 + $0x1b0] sm:$0xff]
  %v69 = vld [vmem:[%s0 + $0x1b8] sm:$0xff]
  %v70 = vld [vmem:[%s0 + $0x1c0] sm:$0xff]
  %v71 = vld [vmem:[%s0 + $0x1c8] sm:$0xff]
  %v72 = vld [vmem:[%s0 + $0x1d0] sm:$0xff]
  %v73 = vld [vmem:[%s0 + $0x1d8] sm:$0xff]
  %v74 = vld [vmem:[%s0 + $0x1e0] sm:$0xff]
  %v75 = vld [vmem:[%s0 + $0x1e8] sm:$0xff]
  %v76 = vld [vmem:[%s0 + $0x1f0] sm:$0xff]
  %v77 = vld [vmem:[%s0 + $0x1f8] sm:$0xff]
  %v78 = vld [vmem:[%s0 + $0x200] sm:$0xff]
  %v79 = vld [vmem:[%s0 + $0x208] sm:$0xff]
  %v80 = vld [vmem:[%s0 + $0x210] sm:$0xff]
  %v81 = vld [vmem:[%s0 + $0x218] sm:$0xff]
  %v82 = vld [vmem:[%s0 + $0x220] sm:$0xff]
  %v83 = vld [vmem:[%s0 + $0x228] sm:$0xff]
  %v84 = vld [vmem:[%s0 + $0x230] sm:$0xff]
  %v85 = vld [vmem:[%s0 + $0x238] sm:$0xff]
  %v86 = vld [vmem:[%s0 + $0x240] sm:$0x3]
  %v87 = vpack.c.bf16 %v15, %v14
  %v88 = vpack.c.bf16 %v17, %v16
  %v89 = vpack.c.bf16 %v19, %v18
  %v90 = vpack.c.bf16 %v21, %v20
  %v91 = vpack.c.bf16 %v23, %v22
  %v92 = vpack.c.bf16 %v25, %v24
  %v93 = vpack.c.bf16 %v27, %v26
  %v94 = vpack.c.bf16 %v29, %v28
  %v95 = vpack.c.bf16 %v31, %v30
  %v96 = vpack.c.bf16 %v33, %v32
  %v97 = vpack.c.bf16 %v35, %v34
  %v98 = vpack.c.bf16 %v37, %v36
  %v99 = vpack.c.bf16 %v39, %v38
  %v100 = vpack.c.bf16 %v41, %v40
  %v101 = vpack.c.bf16 %v43, %v42
  %v102 = vpack.c.bf16 %v45, %v44
  %v103 = vpack.c.bf16 %v47, %v46
  %v104 = vpack.c.bf16 %v49, %v48
  %v105 = vpack.c.bf16 %v51, %v50
  %v106 = vpack.c.bf16 %v53, %v52
  %v107 = vpack.c.bf16 %v55, %v54
  %v108 = vpack.c.bf16 %v57, %v56
  %v109 = vpack.c.bf16 %v59, %v58
  %v110 = vpack.c.bf16 %v61, %v60
  %v111 = vpack.c.bf16 %v63, %v62
  %v112 = vpack.c.bf16 %v65, %v64
  %v113 = vpack.c.bf16 %v67, %v66
  %v114 = vpack.c.bf16 %v69, %v68
  %v115 = vpack.c.bf16 %v71, %v70
  %v116 = vpack.c.bf16 %v73, %v72
  %v117 = vpack.c.bf16 %v75, %v74
  %v118 = vpack.c.bf16 %v77, %v76
  %v119 = vpack.c.bf16 %v79, %v78
  %v120 = vpack.c.bf16 %v81, %v80
  %v121 = vpack.c.bf16 %v83, %v82
  %v122 = vpack.c.bf16 %v85, %v84
  %v123 = vpack.c.bf16 %v86, %v86
  %v124 = vld [vmem:[%s1] sm:$0xf]
  %v125 = vld [vmem:[%s1 + $0x4] sm:$0xf]
  %v126 = vld [vmem:[%s1 + $0x8] sm:$0xf]
  %v127 = vld [vmem:[%s1 + $0xc] sm:$0xf]
  %v128 = vld [vmem:[%s1 + $0x10] sm:$0xf]
  %v129 = vld [vmem:[%s1 + $0x14] sm:$0xf]
  %v130 = vld [vmem:[%s1 + $0x18] sm:$0xf]
  %v131 = vld [vmem:[%s1 + $0x1c] sm:$0xf]
  %v132 = vld [vmem:[%s1 + $0x20] sm:$0xf]
  %v133 = vld [vmem:[%s1 + $0x24] sm:$0xf]
  %v134 = vld [vmem:[%s1 + $0x28] sm:$0xf]
  %v135 = vld [vmem:[%s1 + $0x2c] sm:$0xf]
  %v136 = vld [vmem:[%s1 + $0x30] sm:$0xf]
  %v137 = vld [vmem:[%s1 + $0x34] sm:$0xf]
  %v138 = vld [vmem:[%s1 + $0x38] sm:$0xf]
  %v139 = vld [vmem:[%s1 + $0x3c] sm:$0xf]
  %v140 = vld [vmem:[%s2] sm:$0x1]
  %v142 = vperm.slane %v140, 0
  %v160 = vunpack.c.l.b16 %v124
  %v161 = vunpack.c.l.b16 %v125
  %v162 = vunpack.c.l.b16 %v126
  %v163 = vunpack.c.l.b16 %v127
  %v164 = vunpack.c.l.b16 %v128
  %v165 = vunpack.c.l.b16 %v129
  %v166 = vunpack.c.l.b16 %v130
  %v167 = vunpack.c.l.b16 %v131
  %v168 = vunpack.c.l.b16 %v132
  %v169 = vunpack.c.l.b16 %v133
  %v170 = vunpack.c.l.b16 %v134
  %v171 = vunpack.c.l.b16 %v135
  %v172 = vunpack.c.l.b16 %v136
  %v173 = vunpack.c.l.b16 %v137
  %v174 = vunpack.c.l.b16 %v138
  %v175 = vunpack.c.l.b16 %v139
  %v176 = vpack.c.b16 %v161, %v160
  %v177 = vpack.c.b16 %v163, %v162
  %v178 = vpack.c.b16 %v165, %v164
  %v179 = vpack.c.b16 %v167, %v166
  %v180 = vpack.c.b16 %v169, %v168
  %v181 = vpack.c.b16 %v171, %v170
  %v182 = vpack.c.b16 %v173, %v172
  %v183 = vpack.c.b16 %v175, %v174
  %192 = vmatpush.bf16.msra.mxu0 %v183
  %193 = vmatpush.bf16.msra.mxu0 %v182
  %194 = vmatpush.bf16.msra.mxu0 %v181
  %195 = vmatpush.bf16.msra.mxu0 %v180
  %196 = vmatpush.bf16.msra.mxu0 %v179
  %197 = vmatpush.bf16.msra.mxu0 %v178
  %198 = vmatpush.bf16.msra.mxu0 %v177
  %199 = vmatpush.bf16.msra.mxu0 %v176
  %200 = vmatmul.bf16.gmra.mxu0 %v87
  %v201 = vpop.f32.mrf.mxu0
  %v202 = vadd.f32 %v142, %v201
  %v203 = vpop.f32.mrf.mxu0
  %v204 = vadd.f32 %v142, %v203
  %205 = vmatmul.bf16.gmra.mxu0 %v88
  %v206 = vpop.f32.mrf.mxu0
  %v207 = vadd.f32 %v142, %v206
  %v208 = vpop.f32.mrf.mxu0
  %v209 = vadd.f32 %v142, %v208
  %210 = vmatmul.bf16.gmra.mxu0 %v89
  %v211 = vpop.f32.mrf.mxu0
  %v212 = vadd.f32 %v142, %v211
  %v213 = vpop.f32.mrf.mxu0
  %v214 = vadd.f32 %v142, %v213
  %215 = vmatmul.bf16.gmra.mxu0 %v90
  %v216 = vpop.f32.mrf.mxu0
  %v217 = vadd.f32 %v142, %v216
  %v218 = vpop.f32.mrf.mxu0
  %v219 = vadd.f32 %v142, %v218
  %220 = vmatmul.bf16.gmra.mxu0 %v91
  %v221 = vpop.f32.mrf.mxu0
  %v222 = vadd.f32 %v142, %v221
  %v223 = vpop.f32.mrf.mxu0
  %v224 = vadd.f32 %v142, %v223
  %225 = vmatmul.bf16.gmra.mxu0 %v92
  %v226 = vpop.f32.mrf.mxu0
  %v227 = vadd.f32 %v142, %v226
  %v228 = vpop.f32.mrf.mxu0
  %v229 = vadd.f32 %v142, %v228
  %230 = vmatmul.bf16.gmra.mxu0 %v93
  %v231 = vpop.f32.mrf.mxu0
  %v232 = vadd.f32 %v142, %v231
  %v233 = vpop.f32.mrf.mxu0
  %v234 = vadd.f32 %v142, %v233
  %235 = vmatmul.bf16.gmra.mxu0 %v94
  %v236 = vpop.f32.mrf.mxu0
  %v237 = vadd.f32 %v142, %v236
  %v238 = vpop.f32.mrf.mxu0
  %v239 = vadd.f32 %v142, %v238
  %240 = vmatmul.bf16.gmra.mxu0 %v95
  %v241 = vpop.f32.mrf.mxu0
  %v242 = vadd.f32 %v142, %v241
  %v243 = vpop.f32.mrf.mxu0
  %v244 = vadd.f32 %v142, %v243
  %245 = vmatmul.bf16.gmra.mxu0 %v96
  %v246 = vpop.f32.mrf.mxu0
  %v247 = vadd.f32 %v142, %v246
  %v248 = vpop.f32.mrf.mxu0
  %v249 = vadd.f32 %v142, %v248
  %250 = vmatmul.bf16.gmra.mxu0 %v97
  %v251 = vpop.f32.mrf.mxu0
  %v252 = vadd.f32 %v142, %v251
  %v253 = vpop.f32.mrf.mxu0
  %v254 = vadd.f32 %v142, %v253
  %255 = vmatmul.bf16.gmra.mxu0 %v98
  %v256 = vpop.f32.mrf.mxu0
  %v257 = vadd.f32 %v142, %v256
  %v258 = vpop.f32.mrf.mxu0
  %v259 = vadd.f32 %v142, %v258
  %260 = vmatmul.bf16.gmra.mxu0 %v99
  %v261 = vpop.f32.mrf.mxu0
  %v262 = vadd.f32 %v142, %v261
  %v263 = vpop.f32.mrf.mxu0
  %v264 = vadd.f32 %v142, %v263
  %265 = vmatmul.bf16.gmra.mxu0 %v100
  %v266 = vpop.f32.mrf.mxu0
  %v267 = vadd.f32 %v142, %v266
  %v268 = vpop.f32.mrf.mxu0
  %v269 = vadd.f32 %v142, %v268
  %270 = vmatmul.bf16.gmra.mxu0 %v101
  %v271 = vpop.f32.mrf.mxu0
  %v272 = vadd.f32 %v142, %v271
  %v273 = vpop.f32.mrf.mxu0
  %v274 = vadd.f32 %v142, %v273
  %275 = vmatmul.bf16.gmra.mxu0 %v102
  %v276 = vpop.f32.mrf.mxu0
  %v277 = vadd.f32 %v142, %v276
  %v278 = vpop.f32.mrf.mxu0
  %v279 = vadd.f32 %v142, %v278
  %280 = vmatmul.bf16.gmra.mxu0 %v103
  %v281 = vpop.f32.mrf.mxu0
  %v282 = vadd.f32 %v142, %v281
  %v283 = vpop.f32.mrf.mxu0
  %v284 = vadd.f32 %v142, %v283
  %285 = vmatmul.bf16.gmra.mxu0 %v104
  %v286 = vpop.f32.mrf.mxu0
  %v287 = vadd.f32 %v142, %v286
  %v288 = vpop.f32.mrf.mxu0
  %v289 = vadd.f32 %v142, %v288
  %290 = vmatmul.bf16.gmra.mxu0 %v105
  %v291 = vpop.f32.mrf.mxu0
  %v292 = vadd.f32 %v142, %v291
  %v293 = vpop.f32.mrf.mxu0
  %v294 = vadd.f32 %v142, %v293
  %295 = vmatmul.bf16.gmra.mxu0 %v106
  %v296 = vpop.f32.mrf.mxu0
  %v297 = vadd.f32 %v142, %v296
  %v298 = vpop.f32.mrf.mxu0
  %v299 = vadd.f32 %v142, %v298
  %300 = vmatmul.bf16.gmra.mxu0 %v107
  %v301 = vpop.f32.mrf.mxu0
  %v302 = vadd.f32 %v142, %v301
  %v303 = vpop.f32.mrf.mxu0
  %v304 = vadd.f32 %v142, %v303
  %305 = vmatmul.bf16.gmra.mxu0 %v108
  %v306 = vpop.f32.mrf.mxu0
  %v307 = vadd.f32 %v142, %v306
  %v308 = vpop.f32.mrf.mxu0
  %v309 = vadd.f32 %v142, %v308
  %310 = vmatmul.bf16.gmra.mxu0 %v109
  %v311 = vpop.f32.mrf.mxu0
  %v312 = vadd.f32 %v142, %v311
  %v313 = vpop.f32.mrf.mxu0
  %v314 = vadd.f32 %v142, %v313
  %315 = vmatmul.bf16.gmra.mxu0 %v110
  %v316 = vpop.f32.mrf.mxu0
  %v317 = vadd.f32 %v142, %v316
  %v318 = vpop.f32.mrf.mxu0
  %v319 = vadd.f32 %v142, %v318
  %320 = vmatmul.bf16.gmra.mxu0 %v111
  %v321 = vpop.f32.mrf.mxu0
  %v322 = vadd.f32 %v142, %v321
  %v323 = vpop.f32.mrf.mxu0
  %v324 = vadd.f32 %v142, %v323
  %325 = vmatmul.bf16.gmra.mxu0 %v112
  %v326 = vpop.f32.mrf.mxu0
  %v327 = vadd.f32 %v142, %v326
  %v328 = vpop.f32.mrf.mxu0
  %v329 = vadd.f32 %v142, %v328
  %330 = vmatmul.bf16.gmra.mxu0 %v113
  %v331 = vpop.f32.mrf.mxu0
  %v332 = vadd.f32 %v142, %v331
  %v333 = vpop.f32.mrf.mxu0
  %v334 = vadd.f32 %v142, %v333
  %335 = vmatmul.bf16.gmra.mxu0 %v114
  %v336 = vpop.f32.mrf.mxu0
  %v337 = vadd.f32 %v142, %v336
  %v338 = vpop.f32.mrf.mxu0
  %v339 = vadd.f32 %v142, %v338
  %340 = vmatmul.bf16.gmra.mxu0 %v115
  %v341 = vpop.f32.mrf.mxu0
  %v342 = vadd.f32 %v142, %v341
  %v343 = vpop.f32.mrf.mxu0
  %v344 = vadd.f32 %v142, %v343
  %345 = vmatmul.bf16.gmra.mxu0 %v116
  %v346 = vpop.f32.mrf.mxu0
  %v347 = vadd.f32 %v142, %v346
  %v348 = vpop.f32.mrf.mxu0
  %v349 = vadd.f32 %v142, %v348
  %350 = vmatmul.bf16.gmra.mxu0 %v117
  %v351 = vpop.f32.mrf.mxu0
  %v352 = vadd.f32 %v142, %v351
  %v353 = vpop.f32.mrf.mxu0
  %v354 = vadd.f32 %v142, %v353
  %355 = vmatmul.bf16.gmra.mxu0 %v118
  %v356 = vpop.f32.mrf.mxu0
  %v357 = vadd.f32 %v142, %v356
  %v358 = vpop.f32.mrf.mxu0
  %v359 = vadd.f32 %v142, %v358
  %360 = vmatmul.bf16.gmra.mxu0 %v119
  %v361 = vpop.f32.mrf.mxu0
  %v362 = vadd.f32 %v142, %v361
  %v363 = vpop.f32.mrf.mxu0
  %v364 = vadd.f32 %v142, %v363
  %365 = vmatmul.bf16.gmra.mxu0 %v120
  %v366 = vpop.f32.mrf.mxu0
  %v367 = vadd.f32 %v142, %v366
  %v368 = vpop.f32.mrf.mxu0
  %v369 = vadd.f32 %v142, %v368
  %370 = vmatmul.bf16.gmra.mxu0 %v121
  %v371 = vpop.f32.mrf.mxu0
  %v372 = vadd.f32 %v142, %v371
  %v373 = vpop.f32.mrf.mxu0
  %v374 = vadd.f32 %v142, %v373
  %375 = vmatmul.bf16.gmra.mxu0 %v122
  %v376 = vpop.f32.mrf.mxu0
  %v377 = vadd.f32 %v142, %v376
  %v378 = vpop.f32.mrf.mxu0
  %v379 = vadd.f32 %v142, %v378
  %380 = vmatmul.bf16.gmra.mxu0 %v123
  %v381 = vpop.f32.mrf.mxu0
  %v382 = vadd.f32 %v142, %v381
  %v383 = vpop.f32.mrf.mxu0
  %384 = vdwg.mxu0
  %v385 = vxor.u32 %v202, 2147483648
  %v386 = vxor.u32 %v204, 2147483648
  %v387 = vxor.u32 %v207, 2147483648
  %v388 = vxor.u32 %v209, 2147483648
  %v389 = vxor.u32 %v212, 2147483648
  %v390 = vxor.u32 %v214, 2147483648
  %v391 = vxor.u32 %v217, 2147483648
  %v392 = vxor.u32 %v219, 2147483648
  %v393 = vxor.u32 %v222, 2147483648
  %v394 = vxor.u32 %v224, 2147483648
  %v395 = vxor.u32 %v227, 2147483648
  %v396 = vxor.u32 %v229, 2147483648
  %v397 = vxor.u32 %v232, 2147483648
  %v398 = vxor.u32 %v234, 2147483648
  %v399 = vxor.u32 %v237, 2147483648
  %v400 = vxor.u32 %v239, 2147483648
  %v401 = vxor.u32 %v242, 2147483648
  %v402 = vxor.u32 %v244, 2147483648
  %v403 = vxor.u32 %v247, 2147483648
  %v404 = vxor.u32 %v249, 2147483648
  %v405 = vxor.u32 %v252, 2147483648
  %v406 = vxor.u32 %v254, 2147483648
  %v407 = vxor.u32 %v257, 2147483648
  %v408 = vxor.u32 %v259, 2147483648
  %v409 = vxor.u32 %v262, 2147483648
  %v410 = vxor.u32 %v264, 2147483648
  %v411 = vxor.u32 %v267, 2147483648
  %v412 = vxor.u32 %v269, 2147483648
  %v413 = vxor.u32 %v272, 2147483648
  %v414 = vxor.u32 %v274, 2147483648
  %v415 = vxor.u32 %v277, 2147483648
  %v416 = vxor.u32 %v279, 2147483648
  %v417 = vxor.u32 %v282, 2147483648
  %v418 = vxor.u32 %v284, 2147483648
  %v419 = vxor.u32 %v287, 2147483648
  %v420 = vxor.u32 %v289, 2147483648
  %v421 = vxor.u32 %v292, 2147483648
  %v422 = vxor.u32 %v294, 2147483648
  %v423 = vxor.u32 %v297, 2147483648
  %v424 = vxor.u32 %v299, 2147483648
  %v425 = vxor.u32 %v302, 2147483648
  %v426 = vxor.u32 %v304, 2147483648
  %v427 = vxor.u32 %v307, 2147483648
  %v428 = vxor.u32 %v309, 2147483648
  %v429 = vxor.u32 %v312, 2147483648
  %v430 = vxor.u32 %v314, 2147483648
  %v431 = vxor.u32 %v317, 2147483648
  %v432 = vxor.u32 %v319, 2147483648
  %v433 = vxor.u32 %v322, 2147483648
  %v434 = vxor.u32 %v324, 2147483648
  %v435 = vxor.u32 %v327, 2147483648
  %v436 = vxor.u32 %v329, 2147483648
  %v437 = vxor.u32 %v332, 2147483648
  %v438 = vxor.u32 %v334, 2147483648
  %v439 = vxor.u32 %v337, 2147483648
  %v440 = vxor.u32 %v339, 2147483648
  %v441 = vxor.u32 %v342, 2147483648
  %v442 = vxor.u32 %v344, 2147483648
  %v443 = vxor.u32 %v347, 2147483648
  %v444 = vxor.u32 %v349, 2147483648
  %v445 = vxor.u32 %v352, 2147483648
  %v446 = vxor.u32 %v354, 2147483648
  %v447 = vxor.u32 %v357, 2147483648
  %v448 = vxor.u32 %v359, 2147483648
  %v449 = vxor.u32 %v362, 2147483648
  %v450 = vxor.u32 %v364, 2147483648
  %v451 = vxor.u32 %v367, 2147483648
  %v452 = vxor.u32 %v369, 2147483648
  %v453 = vxor.u32 %v372, 2147483648
  %v454 = vxor.u32 %v374, 2147483648
  %v455 = vxor.u32 %v377, 2147483648
  %v456 = vxor.u32 %v379, 2147483648
  %v457 = vxor.u32 %v382, 2147483648
  %v458 = vmul.f32 %v385, 1.442695
  %v459 = vpow.pop %v458
  %v460 = vmul.f32 %v386, 1.442695
  %v461 = vpow.pop %v460
  %v462 = vmul.f32 %v387, 1.442695
  %v463 = vpow.pop %v462
  %v464 = vmul.f32 %v388, 1.442695
  %v465 = vpow.pop %v464
  %v466 = vmul.f32 %v389, 1.442695
  %v467 = vpow.pop %v466
  %v468 = vmul.f32 %v390, 1.442695
  %v469 = vpow.pop %v468
  %v470 = vmul.f32 %v391, 1.442695
  %v471 = vpow.pop %v470
  %v472 = vmul.f32 %v392, 1.442695
  %v473 = vpow.pop %v472
  %v474 = vmul.f32 %v393, 1.442695
  %v475 = vpow.pop %v474
  %v476 = vmul.f32 %v394, 1.442695
  %v477 = vpow.pop %v476
  %v478 = vmul.f32 %v395, 1.442695
  %v479 = vpow.pop %v478
  %v480 = vmul.f32 %v396, 1.442695
  %v481 = vpow.pop %v480
  %v482 = vmul.f32 %v397, 1.442695
  %v483 = vpow.pop %v482
  %v484 = vmul.f32 %v398, 1.442695
  %v485 = vpow.pop %v484
  %v486 = vmul.f32 %v399, 1.442695
  %v487 = vpow.pop %v486
  %v488 = vmul.f32 %v400, 1.442695
  %v489 = vpow.pop %v488
  %v490 = vmul.f32 %v401, 1.442695
  %v491 = vpow.pop %v490
  %v492 = vmul.f32 %v402, 1.442695
  %v493 = vpow.pop %v492
  %v494 = vmul.f32 %v403, 1.442695
  %v495 = vpow.pop %v494
  %v496 = vmul.f32 %v404, 1.442695
  %v497 = vpow.pop %v496
  %v498 = vmul.f32 %v405, 1.442695
  %v499 = vpow.pop %v498
  %v500 = vmul.f32 %v406, 1.442695
  %v501 = vpow.pop %v500
  %v502 = vmul.f32 %v407, 1.442695
  %v503 = vpow.pop %v502
  %v504 = vmul.f32 %v408, 1.442695
  %v505 = vpow.pop %v504
  %v506 = vmul.f32 %v409, 1.442695
  %v507 = vpow.pop %v506
  %v508 = vmul.f32 %v410, 1.442695
  %v509 = vpow.pop %v508
  %v510 = vmul.f32 %v411, 1.442695
  %v511 = vpow.pop %v510
  %v512 = vmul.f32 %v412, 1.442695
  %v513 = vpow.pop %v512
  %v514 = vmul.f32 %v413, 1.442695
  %v515 = vpow.pop %v514
  %v516 = vmul.f32 %v414, 1.442695
  %v517 = vpow.pop %v516
  %v518 = vmul.f32 %v415, 1.442695
  %v519 = vpow.pop %v518
  %v520 = vmul.f32 %v416, 1.442695
  %v521 = vpow.pop %v520
  %v522 = vmul.f32 %v417, 1.442695
  %v523 = vpow.pop %v522
  %v524 = vmul.f32 %v418, 1.442695
  %v525 = vpow.pop %v524
  %v526 = vmul.f32 %v419, 1.442695
  %v527 = vpow.pop %v526
  %v528 = vmul.f32 %v420, 1.442695
  %v529 = vpow.pop %v528
  %v530 = vmul.f32 %v421, 1.442695
  %v531 = vpow.pop %v530
  %v532 = vmul.f32 %v422, 1.442695
  %v533 = vpow.pop %v532
  %v534 = vmul.f32 %v423, 1.442695
  %v535 = vpow.pop %v534
  %v536 = vmul.f32 %v424, 1.442695
  %v537 = vpow.pop %v536
  %v538 = vmul.f32 %v425, 1.442695
  %v539 = vpow.pop %v538
  %v540 = vmul.f32 %v426, 1.442695
  %v541 = vpow.pop %v540
  %v542 = vmul.f32 %v427, 1.442695
  %v543 = vpow.pop %v542
  %v544 = vmul.f32 %v428, 1.442695
  %v545 = vpow.pop %v544
  %v546 = vmul.f32 %v429, 1.442695
  %v547 = vpow.pop %v546
  %v548 = vmul.f32 %v430, 1.442695
  %v549 = vpow.pop %v548
  %v550 = vmul.f32 %v431, 1.442695
  %v551 = vpow.pop %v550
  %v552 = vmul.f32 %v432, 1.442695
  %v553 = vpow.pop %v552
  %v554 = vmul.f32 %v433, 1.442695
  %v555 = vpow.pop %v554
  %v556 = vmul.f32 %v434, 1.442695
  %v557 = vpow.pop %v556
  %v558 = vmul.f32 %v435, 1.442695
  %v559 = vpow.pop %v558
  %v560 = vmul.f32 %v436, 1.442695
  %v561 = vpow.pop %v560
  %v562 = vmul.f32 %v437, 1.442695
  %v563 = vpow.pop %v562
  %v564 = vmul.f32 %v438, 1.442695
  %v565 = vpow.pop %v564
  %v566 = vmul.f32 %v439, 1.442695
  %v567 = vpow.pop %v566
  %v568 = vmul.f32 %v440, 1.442695
  %v569 = vpow.pop %v568
  %v570 = vmul.f32 %v441, 1.442695
  %v571 = vpow.pop %v570
  %v572 = vmul.f32 %v442, 1.442695
  %v573 = vpow.pop %v572
  %v574 = vmul.f32 %v443, 1.442695
  %v575 = vpow.pop %v574
  %v576 = vmul.f32 %v444, 1.442695
  %v577 = vpow.pop %v576
  %v578 = vmul.f32 %v445, 1.442695
  %v579 = vpow.pop %v578
  %v580 = vmul.f32 %v446, 1.442695
  %v581 = vpow.pop %v580
  %v582 = vmul.f32 %v447, 1.442695
  %v583 = vpow.pop %v582
  %v584 = vmul.f32 %v448, 1.442695
  %v585 = vpow.pop %v584
  %v586 = vmul.f32 %v449, 1.442695
  %v587 = vpow.pop %v586
  %v588 = vmul.f32 %v450, 1.442695
  %v589 = vpow.pop %v588
  %v590 = vmul.f32 %v451, 1.442695
  %v591 = vpow.pop %v590
  %v592 = vmul.f32 %v452, 1.442695
  %v593 = vpow.pop %v592
  %v594 = vmul.f32 %v453, 1.442695
  %v595 = vpow.pop %v594
  %v596 = vmul.f32 %v454, 1.442695
  %v597 = vpow.pop %v596
  %v598 = vmul.f32 %v455, 1.442695
  %v599 = vpow.pop %v598
  %v600 = vmul.f32 %v456, 1.442695
  %v601 = vpow.pop %v600
  %v602 = vmul.f32 %v457, 1.442695
  %v603 = vpow.pop %v602
  %v604 = vadd.f32 %v459, 1.0
  %v605 = vadd.f32 %v461, 1.0
  %v606 = vadd.f32 %v463, 1.0
  %v607 = vadd.f32 %v465, 1.0
  %v608 = vadd.f32 %v467, 1.0
  %v609 = vadd.f32 %v469, 1.0
  %v610 = vadd.f32 %v471, 1.0
  %v611 = vadd.f32 %v473, 1.0
  %v612 = vadd.f32 %v475, 1.0
  %v613 = vadd.f32 %v477, 1.0
  %v614 = vadd.f32 %v479, 1.0
  %v615 = vadd.f32 %v481, 1.0
  %v616 = vadd.f32 %v483, 1.0
  %v617 = vadd.f32 %v485, 1.0
  %v618 = vadd.f32 %v487, 1.0
  %v619 = vadd.f32 %v489, 1.0
  %v620 = vadd.f32 %v491, 1.0
  %v621 = vadd.f32 %v493, 1.0
  %v622 = vadd.f32 %v495, 1.0
  %v623 = vadd.f32 %v497, 1.0
  %v624 = vadd.f32 %v499, 1.0
  %v625 = vadd.f32 %v501, 1.0
  %v626 = vadd.f32 %v503, 1.0
  %v627 = vadd.f32 %v505, 1.0
  %v628 = vadd.f32 %v507, 1.0
  %v629 = vadd.f32 %v509, 1.0
  %v630 = vadd.f32 %v511, 1.0
  %v631 = vadd.f32 %v513, 1.0
  %v632 = vadd.f32 %v515, 1.0
  %v633 = vadd.f32 %v517, 1.0
  %v634 = vadd.f32 %v519, 1.0
  %v635 = vadd.f32 %v521, 1.0
  %v636 = vadd.f32 %v523, 1.0
  %v637 = vadd.f32 %v525, 1.0
  %v638 = vadd.f32 %v527, 1.0
  %v639 = vadd.f32 %v529, 1.0
  %v640 = vadd.f32 %v531, 1.0
  %v641 = vadd.f32 %v533, 1.0
  %v642 = vadd.f32 %v535, 1.0
  %v643 = vadd.f32 %v537, 1.0
  %v644 = vadd.f32 %v539, 1.0
  %v645 = vadd.f32 %v541, 1.0
  %v646 = vadd.f32 %v543, 1.0
  %v647 = vadd.f32 %v545, 1.0
  %v648 = vadd.f32 %v547, 1.0
  %v649 = vadd.f32 %v549, 1.0
  %v650 = vadd.f32 %v551, 1.0
  %v651 = vadd.f32 %v553, 1.0
  %v652 = vadd.f32 %v555, 1.0
  %v653 = vadd.f32 %v557, 1.0
  %v654 = vadd.f32 %v559, 1.0
  %v655 = vadd.f32 %v561, 1.0
  %v656 = vadd.f32 %v563, 1.0
  %v657 = vadd.f32 %v565, 1.0
  %v658 = vadd.f32 %v567, 1.0
  %v659 = vadd.f32 %v569, 1.0
  %v660 = vadd.f32 %v571, 1.0
  %v661 = vadd.f32 %v573, 1.0
  %v662 = vadd.f32 %v575, 1.0
  %v663 = vadd.f32 %v577, 1.0
  %v664 = vadd.f32 %v579, 1.0
  %v665 = vadd.f32 %v581, 1.0
  %v666 = vadd.f32 %v583, 1.0
  %v667 = vadd.f32 %v585, 1.0
  %v668 = vadd.f32 %v587, 1.0
  %v669 = vadd.f32 %v589, 1.0
  %v670 = vadd.f32 %v591, 1.0
  %v671 = vadd.f32 %v593, 1.0
  %v672 = vadd.f32 %v595, 1.0
  %v673 = vadd.f32 %v597, 1.0
  %v674 = vadd.f32 %v599, 1.0
  %v675 = vadd.f32 %v601, 1.0
  %v676 = vadd.f32 %v603, 1.0
  %v677 = vrcp.pop %v604
  %v678 = vmul.f32 %v604, %v677
  %v679 = vsub.f32 1.0, %v678
  %v680 = vmul.f32 %v677, %v679
  %v681 = vadd.f32 %v677, %v680
  %vm682 = vweird.f32 %v604
  %vm683 = vweird.f32 %v677
  %vm684 = vmor %vm682, %vm683
  %v685 = vsel %vm684, %v677, %v681
  %v686 = vand.u32 2147483647, %v604
  %vm687 = vcmp.eq.f32.partialorder %v686, 8.507059e+37
  %v688 = vand.u32 %v604, 2147483648
  %v689 = vor.u32 1.1754944e-38, %v688
  %v690 = vsel %vm687, %v689, %v685
  %v691 = vmul.f32 1.0, %v690
  %v692 = vrcp.pop %v605
  %v693 = vmul.f32 %v605, %v692
  %v694 = vsub.f32 1.0, %v693
  %v695 = vmul.f32 %v692, %v694
  %v696 = vadd.f32 %v692, %v695
  %vm697 = vweird.f32 %v605
  %vm698 = vweird.f32 %v692
  %vm699 = vmor %vm697, %vm698
  %v700 = vsel %vm699, %v692, %v696
  %v701 = vand.u32 2147483647, %v605
  %vm702 = vcmp.eq.f32.partialorder %v701, 8.507059e+37
  %v703 = vand.u32 %v605, 2147483648
  %v704 = vor.u32 1.1754944e-38, %v703
  %v705 = vsel %vm702, %v704, %v700
  %v706 = vmul.f32 1.0, %v705
  %v707 = vrcp.pop %v606
  %v708 = vmul.f32 %v606, %v707
  %v709 = vsub.f32 1.0, %v708
  %v710 = vmul.f32 %v707, %v709
  %v711 = vadd.f32 %v707, %v710
  %vm712 = vweird.f32 %v606
  %vm713 = vweird.f32 %v707
  %vm714 = vmor %vm712, %vm713
  %v715 = vsel %vm714, %v707, %v711
  %v716 = vand.u32 2147483647, %v606
  %vm717 = vcmp.eq.f32.partialorder %v716, 8.507059e+37
  %v718 = vand.u32 %v606, 2147483648
  %v719 = vor.u32 1.1754944e-38, %v718
  %v720 = vsel %vm717, %v719, %v715
  %v721 = vmul.f32 1.0, %v720
  %v722 = vrcp.pop %v607
  %v723 = vmul.f32 %v607, %v722
  %v724 = vsub.f32 1.0, %v723
  %v725 = vmul.f32 %v722, %v724
  %v726 = vadd.f32 %v722, %v725
  %vm727 = vweird.f32 %v607
  %vm728 = vweird.f32 %v722
  %vm729 = vmor %vm727, %vm728
  %v730 = vsel %vm729, %v722, %v726
  %v731 = vand.u32 2147483647, %v607
  %vm732 = vcmp.eq.f32.partialorder %v731, 8.507059e+37
  %v733 = vand.u32 %v607, 2147483648
  %v734 = vor.u32 1.1754944e-38, %v733
  %v735 = vsel %vm732, %v734, %v730
  %v736 = vmul.f32 1.0, %v735
  %v737 = vrcp.pop %v608
  %v738 = vmul.f32 %v608, %v737
  %v739 = vsub.f32 1.0, %v738
  %v740 = vmul.f32 %v737, %v739
  %v741 = vadd.f32 %v737, %v740
  %vm742 = vweird.f32 %v608
  %vm743 = vweird.f32 %v737
  %vm744 = vmor %vm742, %vm743
  %v745 = vsel %vm744, %v737, %v741
  %v746 = vand.u32 2147483647, %v608
  %vm747 = vcmp.eq.f32.partialorder %v746, 8.507059e+37
  %v748 = vand.u32 %v608, 2147483648
  %v749 = vor.u32 1.1754944e-38, %v748
  %v750 = vsel %vm747, %v749, %v745
  %v751 = vmul.f32 1.0, %v750
  %v752 = vrcp.pop %v609
  %v753 = vmul.f32 %v609, %v752
  %v754 = vsub.f32 1.0, %v753
  %v755 = vmul.f32 %v752, %v754
  %v756 = vadd.f32 %v752, %v755
  %vm757 = vweird.f32 %v609
  %vm758 = vweird.f32 %v752
  %vm759 = vmor %vm757, %vm758
  %v760 = vsel %vm759, %v752, %v756
  %v761 = vand.u32 2147483647, %v609
  %vm762 = vcmp.eq.f32.partialorder %v761, 8.507059e+37
  %v763 = vand.u32 %v609, 2147483648
  %v764 = vor.u32 1.1754944e-38, %v763
  %v765 = vsel %vm762, %v764, %v760
  %v766 = vmul.f32 1.0, %v765
  %v767 = vrcp.pop %v610
  %v768 = vmul.f32 %v610, %v767
  %v769 = vsub.f32 1.0, %v768
  %v770 = vmul.f32 %v767, %v769
  %v771 = vadd.f32 %v767, %v770
  %vm772 = vweird.f32 %v610
  %vm773 = vweird.f32 %v767
  %vm774 = vmor %vm772, %vm773
  %v775 = vsel %vm774, %v767, %v771
  %v776 = vand.u32 2147483647, %v610
  %vm777 = vcmp.eq.f32.partialorder %v776, 8.507059e+37
  %v778 = vand.u32 %v610, 2147483648
  %v779 = vor.u32 1.1754944e-38, %v778
  %v780 = vsel %vm777, %v779, %v775
  %v781 = vmul.f32 1.0, %v780
  %v782 = vrcp.pop %v611
  %v783 = vmul.f32 %v611, %v782
  %v784 = vsub.f32 1.0, %v783
  %v785 = vmul.f32 %v782, %v784
  %v786 = vadd.f32 %v782, %v785
  %vm787 = vweird.f32 %v611
  %vm788 = vweird.f32 %v782
  %vm789 = vmor %vm787, %vm788
  %v790 = vsel %vm789, %v782, %v786
  %v791 = vand.u32 2147483647, %v611
  %vm792 = vcmp.eq.f32.partialorder %v791, 8.507059e+37
  %v793 = vand.u32 %v611, 2147483648
  %v794 = vor.u32 1.1754944e-38, %v793
  %v795 = vsel %vm792, %v794, %v790
  %v796 = vmul.f32 1.0, %v795
  %v797 = vrcp.pop %v612
  %v798 = vmul.f32 %v612, %v797
  %v799 = vsub.f32 1.0, %v798
  %v800 = vmul.f32 %v797, %v799
  %v801 = vadd.f32 %v797, %v800
  %vm802 = vweird.f32 %v612
  %vm803 = vweird.f32 %v797
  %vm804 = vmor %vm802, %vm803
  %v805 = vsel %vm804, %v797, %v801
  %v806 = vand.u32 2147483647, %v612
  %vm807 = vcmp.eq.f32.partialorder %v806, 8.507059e+37
  %v808 = vand.u32 %v612, 2147483648
  %v809 = vor.u32 1.1754944e-38, %v808
  %v810 = vsel %vm807, %v809, %v805
  %v811 = vmul.f32 1.0, %v810
  %v812 = vrcp.pop %v613
  %v813 = vmul.f32 %v613, %v812
  %v814 = vsub.f32 1.0, %v813
  %v815 = vmul.f32 %v812, %v814
  %v816 = vadd.f32 %v812, %v815
  %vm817 = vweird.f32 %v613
  %vm818 = vweird.f32 %v812
  %vm819 = vmor %vm817, %vm818
  %v820 = vsel %vm819, %v812, %v816
  %v821 = vand.u32 2147483647, %v613
  %vm822 = vcmp.eq.f32.partialorder %v821, 8.507059e+37
  %v823 = vand.u32 %v613, 2147483648
  %v824 = vor.u32 1.1754944e-38, %v823
  %v825 = vsel %vm822, %v824, %v820
  %v826 = vmul.f32 1.0, %v825
  %v827 = vrcp.pop %v614
  %v828 = vmul.f32 %v614, %v827
  %v829 = vsub.f32 1.0, %v828
  %v830 = vmul.f32 %v827, %v829
  %v831 = vadd.f32 %v827, %v830
  %vm832 = vweird.f32 %v614
  %vm833 = vweird.f32 %v827
  %vm834 = vmor %vm832, %vm833
  %v835 = vsel %vm834, %v827, %v831
  %v836 = vand.u32 2147483647, %v614
  %vm837 = vcmp.eq.f32.partialorder %v836, 8.507059e+37
  %v838 = vand.u32 %v614, 2147483648
  %v839 = vor.u32 1.1754944e-38, %v838
  %v840 = vsel %vm837, %v839, %v835
  %v841 = vmul.f32 1.0, %v840
  %v842 = vrcp.pop %v615
  %v843 = vmul.f32 %v615, %v842
  %v844 = vsub.f32 1.0, %v843
  %v845 = vmul.f32 %v842, %v844
  %v846 = vadd.f32 %v842, %v845
  %vm847 = vweird.f32 %v615
  %vm848 = vweird.f32 %v842
  %vm849 = vmor %vm847, %vm848
  %v850 = vsel %vm849, %v842, %v846
  %v851 = vand.u32 2147483647, %v615
  %vm852 = vcmp.eq.f32.partialorder %v851, 8.507059e+37
  %v853 = vand.u32 %v615, 2147483648
  %v854 = vor.u32 1.1754944e-38, %v853
  %v855 = vsel %vm852, %v854, %v850
  %v856 = vmul.f32 1.0, %v855
  %v857 = vrcp.pop %v616
  %v858 = vmul.f32 %v616, %v857
  %v859 = vsub.f32 1.0, %v858
  %v860 = vmul.f32 %v857, %v859
  %v861 = vadd.f32 %v857, %v860
  %vm862 = vweird.f32 %v616
  %vm863 = vweird.f32 %v857
  %vm864 = vmor %vm862, %vm863
  %v865 = vsel %vm864, %v857, %v861
  %v866 = vand.u32 2147483647, %v616
  %vm867 = vcmp.eq.f32.partialorder %v866, 8.507059e+37
  %v868 = vand.u32 %v616, 2147483648
  %v869 = vor.u32 1.1754944e-38, %v868
  %v870 = vsel %vm867, %v869, %v865
  %v871 = vmul.f32 1.0, %v870
  %v872 = vrcp.pop %v617
  %v873 = vmul.f32 %v617, %v872
  %v874 = vsub.f32 1.0, %v873
  %v875 = vmul.f32 %v872, %v874
  %v876 = vadd.f32 %v872, %v875
  %vm877 = vweird.f32 %v617
  %vm878 = vweird.f32 %v872
  %vm879 = vmor %vm877, %vm878
  %v880 = vsel %vm879, %v872, %v876
  %v881 = vand.u32 2147483647, %v617
  %vm882 = vcmp.eq.f32.partialorder %v881, 8.507059e+37
  %v883 = vand.u32 %v617, 2147483648
  %v884 = vor.u32 1.1754944e-38, %v883
  %v885 = vsel %vm882, %v884, %v880
  %v886 = vmul.f32 1.0, %v885
  %v887 = vrcp.pop %v618
  %v888 = vmul.f32 %v618, %v887
  %v889 = vsub.f32 1.0, %v888
  %v890 = vmul.f32 %v887, %v889
  %v891 = vadd.f32 %v887, %v890
  %vm892 = vweird.f32 %v618
  %vm893 = vweird.f32 %v887
  %vm894 = vmor %vm892, %vm893
  %v895 = vsel %vm894, %v887, %v891
  %v896 = vand.u32 2147483647, %v618
  %vm897 = vcmp.eq.f32.partialorder %v896, 8.507059e+37
  %v898 = vand.u32 %v618, 2147483648
  %v899 = vor.u32 1.1754944e-38, %v898
  %v900 = vsel %vm897, %v899, %v895
  %v901 = vmul.f32 1.0, %v900
  %v902 = vrcp.pop %v619
  %v903 = vmul.f32 %v619, %v902
  %v904 = vsub.f32 1.0, %v903
  %v905 = vmul.f32 %v902, %v904
  %v906 = vadd.f32 %v902, %v905
  %vm907 = vweird.f32 %v619
  %vm908 = vweird.f32 %v902
  %vm909 = vmor %vm907, %vm908
  %v910 = vsel %vm909, %v902, %v906
  %v911 = vand.u32 2147483647, %v619
  %vm912 = vcmp.eq.f32.partialorder %v911, 8.507059e+37
  %v913 = vand.u32 %v619, 2147483648
  %v914 = vor.u32 1.1754944e-38, %v913
  %v915 = vsel %vm912, %v914, %v910
  %v916 = vmul.f32 1.0, %v915
  %v917 = vrcp.pop %v620
  %v918 = vmul.f32 %v620, %v917
  %v919 = vsub.f32 1.0, %v918
  %v920 = vmul.f32 %v917, %v919
  %v921 = vadd.f32 %v917, %v920
  %vm922 = vweird.f32 %v620
  %vm923 = vweird.f32 %v917
  %vm924 = vmor %vm922, %vm923
  %v925 = vsel %vm924, %v917, %v921
  %v926 = vand.u32 2147483647, %v620
  %vm927 = vcmp.eq.f32.partialorder %v926, 8.507059e+37
  %v928 = vand.u32 %v620, 2147483648
  %v929 = vor.u32 1.1754944e-38, %v928
  %v930 = vsel %vm927, %v929, %v925
  %v931 = vmul.f32 1.0, %v930
  %v932 = vrcp.pop %v621
  %v933 = vmul.f32 %v621, %v932
  %v934 = vsub.f32 1.0, %v933
  %v935 = vmul.f32 %v932, %v934
  %v936 = vadd.f32 %v932, %v935
  %vm937 = vweird.f32 %v621
  %vm938 = vweird.f32 %v932
  %vm939 = vmor %vm937, %vm938
  %v940 = vsel %vm939, %v932, %v936
  %v941 = vand.u32 2147483647, %v621
  %vm942 = vcmp.eq.f32.partialorder %v941, 8.507059e+37
  %v943 = vand.u32 %v621, 2147483648
  %v944 = vor.u32 1.1754944e-38, %v943
  %v945 = vsel %vm942, %v944, %v940
  %v946 = vmul.f32 1.0, %v945
  %v947 = vrcp.pop %v622
  %v948 = vmul.f32 %v622, %v947
  %v949 = vsub.f32 1.0, %v948
  %v950 = vmul.f32 %v947, %v949
  %v951 = vadd.f32 %v947, %v950
  %vm952 = vweird.f32 %v622
  %vm953 = vweird.f32 %v947
  %vm954 = vmor %vm952, %vm953
  %v955 = vsel %vm954, %v947, %v951
  %v956 = vand.u32 2147483647, %v622
  %vm957 = vcmp.eq.f32.partialorder %v956, 8.507059e+37
  %v958 = vand.u32 %v622, 2147483648
  %v959 = vor.u32 1.1754944e-38, %v958
  %v960 = vsel %vm957, %v959, %v955
  %v961 = vmul.f32 1.0, %v960
  %v962 = vrcp.pop %v623
  %v963 = vmul.f32 %v623, %v962
  %v964 = vsub.f32 1.0, %v963
  %v965 = vmul.f32 %v962, %v964
  %v966 = vadd.f32 %v962, %v965
  %vm967 = vweird.f32 %v623
  %vm968 = vweird.f32 %v962
  %vm969 = vmor %vm967, %vm968
  %v970 = vsel %vm969, %v962, %v966
  %v971 = vand.u32 2147483647, %v623
  %vm972 = vcmp.eq.f32.partialorder %v971, 8.507059e+37
  %v973 = vand.u32 %v623, 2147483648
  %v974 = vor.u32 1.1754944e-38, %v973
  %v975 = vsel %vm972, %v974, %v970
  %v976 = vmul.f32 1.0, %v975
  %v977 = vrcp.pop %v624
  %v978 = vmul.f32 %v624, %v977
  %v979 = vsub.f32 1.0, %v978
  %v980 = vmul.f32 %v977, %v979
  %v981 = vadd.f32 %v977, %v980
  %vm982 = vweird.f32 %v624
  %vm983 = vweird.f32 %v977
  %vm984 = vmor %vm982, %vm983
  %v985 = vsel %vm984, %v977, %v981
  %v986 = vand.u32 2147483647, %v624
  %vm987 = vcmp.eq.f32.partialorder %v986, 8.507059e+37
  %v988 = vand.u32 %v624, 2147483648
  %v989 = vor.u32 1.1754944e-38, %v988
  %v990 = vsel %vm987, %v989, %v985
  %v991 = vmul.f32 1.0, %v990
  %v992 = vrcp.pop %v625
  %v993 = vmul.f32 %v625, %v992
  %v994 = vsub.f32 1.0, %v993
  %v995 = vmul.f32 %v992, %v994
  %v996 = vadd.f32 %v992, %v995
  %vm997 = vweird.f32 %v625
  %vm998 = vweird.f32 %v992
  %vm999 = vmor %vm997, %vm998
  %v1000 = vsel %vm999, %v992, %v996
  %v1001 = vand.u32 2147483647, %v625
  %vm1002 = vcmp.eq.f32.partialorder %v1001, 8.507059e+37
  %v1003 = vand.u32 %v625, 2147483648
  %v1004 = vor.u32 1.1754944e-38, %v1003
  %v1005 = vsel %vm1002, %v1004, %v1000
  %v1006 = vmul.f32 1.0, %v1005
  %v1007 = vrcp.pop %v626
  %v1008 = vmul.f32 %v626, %v1007
  %v1009 = vsub.f32 1.0, %v1008
  %v1010 = vmul.f32 %v1007, %v1009
  %v1011 = vadd.f32 %v1007, %v1010
  %vm1012 = vweird.f32 %v626
  %vm1013 = vweird.f32 %v1007
  %vm1014 = vmor %vm1012, %vm1013
  %v1015 = vsel %vm1014, %v1007, %v1011
  %v1016 = vand.u32 2147483647, %v626
  %vm1017 = vcmp.eq.f32.partialorder %v1016, 8.507059e+37
  %v1018 = vand.u32 %v626, 2147483648
  %v1019 = vor.u32 1.1754944e-38, %v1018
  %v1020 = vsel %vm1017, %v1019, %v1015
  %v1021 = vmul.f32 1.0, %v1020
  %v1022 = vrcp.pop %v627
  %v1023 = vmul.f32 %v627, %v1022
  %v1024 = vsub.f32 1.0, %v1023
  %v1025 = vmul.f32 %v1022, %v1024
  %v1026 = vadd.f32 %v1022, %v1025
  %vm1027 = vweird.f32 %v627
  %vm1028 = vweird.f32 %v1022
  %vm1029 = vmor %vm1027, %vm1028
  %v1030 = vsel %vm1029, %v1022, %v1026
  %v1031 = vand.u32 2147483647, %v627
  %vm1032 = vcmp.eq.f32.partialorder %v1031, 8.507059e+37
  %v1033 = vand.u32 %v627, 2147483648
  %v1034 = vor.u32 1.1754944e-38, %v1033
  %v1035 = vsel %vm1032, %v1034, %v1030
  %v1036 = vmul.f32 1.0, %v1035
  %v1037 = vrcp.pop %v628
  %v1038 = vmul.f32 %v628, %v1037
  %v1039 = vsub.f32 1.0, %v1038
  %v1040 = vmul.f32 %v1037, %v1039
  %v1041 = vadd.f32 %v1037, %v1040
  %vm1042 = vweird.f32 %v628
  %vm1043 = vweird.f32 %v1037
  %vm1044 = vmor %vm1042, %vm1043
  %v1045 = vsel %vm1044, %v1037, %v1041
  %v1046 = vand.u32 2147483647, %v628
  %vm1047 = vcmp.eq.f32.partialorder %v1046, 8.507059e+37
  %v1048 = vand.u32 %v628, 2147483648
  %v1049 = vor.u32 1.1754944e-38, %v1048
  %v1050 = vsel %vm1047, %v1049, %v1045
  %v1051 = vmul.f32 1.0, %v1050
  %v1052 = vrcp.pop %v629
  %v1053 = vmul.f32 %v629, %v1052
  %v1054 = vsub.f32 1.0, %v1053
  %v1055 = vmul.f32 %v1052, %v1054
  %v1056 = vadd.f32 %v1052, %v1055
  %vm1057 = vweird.f32 %v629
  %vm1058 = vweird.f32 %v1052
  %vm1059 = vmor %vm1057, %vm1058
  %v1060 = vsel %vm1059, %v1052, %v1056
  %v1061 = vand.u32 2147483647, %v629
  %vm1062 = vcmp.eq.f32.partialorder %v1061, 8.507059e+37
  %v1063 = vand.u32 %v629, 2147483648
  %v1064 = vor.u32 1.1754944e-38, %v1063
  %v1065 = vsel %vm1062, %v1064, %v1060
  %v1066 = vmul.f32 1.0, %v1065
  %v1067 = vrcp.pop %v630
  %v1068 = vmul.f32 %v630, %v1067
  %v1069 = vsub.f32 1.0, %v1068
  %v1070 = vmul.f32 %v1067, %v1069
  %v1071 = vadd.f32 %v1067, %v1070
  %vm1072 = vweird.f32 %v630
  %vm1073 = vweird.f32 %v1067
  %vm1074 = vmor %vm1072, %vm1073
  %v1075 = vsel %vm1074, %v1067, %v1071
  %v1076 = vand.u32 2147483647, %v630
  %vm1077 = vcmp.eq.f32.partialorder %v1076, 8.507059e+37
  %v1078 = vand.u32 %v630, 2147483648
  %v1079 = vor.u32 1.1754944e-38, %v1078
  %v1080 = vsel %vm1077, %v1079, %v1075
  %v1081 = vmul.f32 1.0, %v1080
  %v1082 = vrcp.pop %v631
  %v1083 = vmul.f32 %v631, %v1082
  %v1084 = vsub.f32 1.0, %v1083
  %v1085 = vmul.f32 %v1082, %v1084
  %v1086 = vadd.f32 %v1082, %v1085
  %vm1087 = vweird.f32 %v631
  %vm1088 = vweird.f32 %v1082
  %vm1089 = vmor %vm1087, %vm1088
  %v1090 = vsel %vm1089, %v1082, %v1086
  %v1091 = vand.u32 2147483647, %v631
  %vm1092 = vcmp.eq.f32.partialorder %v1091, 8.507059e+37
  %v1093 = vand.u32 %v631, 2147483648
  %v1094 = vor.u32 1.1754944e-38, %v1093
  %v1095 = vsel %vm1092, %v1094, %v1090
  %v1096 = vmul.f32 1.0, %v1095
  %v1097 = vrcp.pop %v632
  %v1098 = vmul.f32 %v632, %v1097
  %v1099 = vsub.f32 1.0, %v1098
  %v1100 = vmul.f32 %v1097, %v1099
  %v1101 = vadd.f32 %v1097, %v1100
  %vm1102 = vweird.f32 %v632
  %vm1103 = vweird.f32 %v1097
  %vm1104 = vmor %vm1102, %vm1103
  %v1105 = vsel %vm1104, %v1097, %v1101
  %v1106 = vand.u32 2147483647, %v632
  %vm1107 = vcmp.eq.f32.partialorder %v1106, 8.507059e+37
  %v1108 = vand.u32 %v632, 2147483648
  %v1109 = vor.u32 1.1754944e-38, %v1108
  %v1110 = vsel %vm1107, %v1109, %v1105
  %v1111 = vmul.f32 1.0, %v1110
  %v1112 = vrcp.pop %v633
  %v1113 = vmul.f32 %v633, %v1112
  %v1114 = vsub.f32 1.0, %v1113
  %v1115 = vmul.f32 %v1112, %v1114
  %v1116 = vadd.f32 %v1112, %v1115
  %vm1117 = vweird.f32 %v633
  %vm1118 = vweird.f32 %v1112
  %vm1119 = vmor %vm1117, %vm1118
  %v1120 = vsel %vm1119, %v1112, %v1116
  %v1121 = vand.u32 2147483647, %v633
  %vm1122 = vcmp.eq.f32.partialorder %v1121, 8.507059e+37
  %v1123 = vand.u32 %v633, 2147483648
  %v1124 = vor.u32 1.1754944e-38, %v1123
  %v1125 = vsel %vm1122, %v1124, %v1120
  %v1126 = vmul.f32 1.0, %v1125
  %v1127 = vrcp.pop %v634
  %v1128 = vmul.f32 %v634, %v1127
  %v1129 = vsub.f32 1.0, %v1128
  %v1130 = vmul.f32 %v1127, %v1129
  %v1131 = vadd.f32 %v1127, %v1130
  %vm1132 = vweird.f32 %v634
  %vm1133 = vweird.f32 %v1127
  %vm1134 = vmor %vm1132, %vm1133
  %v1135 = vsel %vm1134, %v1127, %v1131
  %v1136 = vand.u32 2147483647, %v634
  %vm1137 = vcmp.eq.f32.partialorder %v1136, 8.507059e+37
  %v1138 = vand.u32 %v634, 2147483648
  %v1139 = vor.u32 1.1754944e-38, %v1138
  %v1140 = vsel %vm1137, %v1139, %v1135
  %v1141 = vmul.f32 1.0, %v1140
  %v1142 = vrcp.pop %v635
  %v1143 = vmul.f32 %v635, %v1142
  %v1144 = vsub.f32 1.0, %v1143
  %v1145 = vmul.f32 %v1142, %v1144
  %v1146 = vadd.f32 %v1142, %v1145
  %vm1147 = vweird.f32 %v635
  %vm1148 = vweird.f32 %v1142
  %vm1149 = vmor %vm1147, %vm1148
  %v1150 = vsel %vm1149, %v1142, %v1146
  %v1151 = vand.u32 2147483647, %v635
  %vm1152 = vcmp.eq.f32.partialorder %v1151, 8.507059e+37
  %v1153 = vand.u32 %v635, 2147483648
  %v1154 = vor.u32 1.1754944e-38, %v1153
  %v1155 = vsel %vm1152, %v1154, %v1150
  %v1156 = vmul.f32 1.0, %v1155
  %v1157 = vrcp.pop %v636
  %v1158 = vmul.f32 %v636, %v1157
  %v1159 = vsub.f32 1.0, %v1158
  %v1160 = vmul.f32 %v1157, %v1159
  %v1161 = vadd.f32 %v1157, %v1160
  %vm1162 = vweird.f32 %v636
  %vm1163 = vweird.f32 %v1157
  %vm1164 = vmor %vm1162, %vm1163
  %v1165 = vsel %vm1164, %v1157, %v1161
  %v1166 = vand.u32 2147483647, %v636
  %vm1167 = vcmp.eq.f32.partialorder %v1166, 8.507059e+37
  %v1168 = vand.u32 %v636, 2147483648
  %v1169 = vor.u32 1.1754944e-38, %v1168
  %v1170 = vsel %vm1167, %v1169, %v1165
  %v1171 = vmul.f32 1.0, %v1170
  %v1172 = vrcp.pop %v637
  %v1173 = vmul.f32 %v637, %v1172
  %v1174 = vsub.f32 1.0, %v1173
  %v1175 = vmul.f32 %v1172, %v1174
  %v1176 = vadd.f32 %v1172, %v1175
  %vm1177 = vweird.f32 %v637
  %vm1178 = vweird.f32 %v1172
  %vm1179 = vmor %vm1177, %vm1178
  %v1180 = vsel %vm1179, %v1172, %v1176
  %v1181 = vand.u32 2147483647, %v637
  %vm1182 = vcmp.eq.f32.partialorder %v1181, 8.507059e+37
  %v1183 = vand.u32 %v637, 2147483648
  %v1184 = vor.u32 1.1754944e-38, %v1183
  %v1185 = vsel %vm1182, %v1184, %v1180
  %v1186 = vmul.f32 1.0, %v1185
  %v1187 = vrcp.pop %v638
  %v1188 = vmul.f32 %v638, %v1187
  %v1189 = vsub.f32 1.0, %v1188
  %v1190 = vmul.f32 %v1187, %v1189
  %v1191 = vadd.f32 %v1187, %v1190
  %vm1192 = vweird.f32 %v638
  %vm1193 = vweird.f32 %v1187
  %vm1194 = vmor %vm1192, %vm1193
  %v1195 = vsel %vm1194, %v1187, %v1191
  %v1196 = vand.u32 2147483647, %v638
  %vm1197 = vcmp.eq.f32.partialorder %v1196, 8.507059e+37
  %v1198 = vand.u32 %v638, 2147483648
  %v1199 = vor.u32 1.1754944e-38, %v1198
  %v1200 = vsel %vm1197, %v1199, %v1195
  %v1201 = vmul.f32 1.0, %v1200
  %v1202 = vrcp.pop %v639
  %v1203 = vmul.f32 %v639, %v1202
  %v1204 = vsub.f32 1.0, %v1203
  %v1205 = vmul.f32 %v1202, %v1204
  %v1206 = vadd.f32 %v1202, %v1205
  %vm1207 = vweird.f32 %v639
  %vm1208 = vweird.f32 %v1202
  %vm1209 = vmor %vm1207, %vm1208
  %v1210 = vsel %vm1209, %v1202, %v1206
  %v1211 = vand.u32 2147483647, %v639
  %vm1212 = vcmp.eq.f32.partialorder %v1211, 8.507059e+37
  %v1213 = vand.u32 %v639, 2147483648
  %v1214 = vor.u32 1.1754944e-38, %v1213
  %v1215 = vsel %vm1212, %v1214, %v1210
  %v1216 = vmul.f32 1.0, %v1215
  %v1217 = vrcp.pop %v640
  %v1218 = vmul.f32 %v640, %v1217
  %v1219 = vsub.f32 1.0, %v1218
  %v1220 = vmul.f32 %v1217, %v1219
  %v1221 = vadd.f32 %v1217, %v1220
  %vm1222 = vweird.f32 %v640
  %vm1223 = vweird.f32 %v1217
  %vm1224 = vmor %vm1222, %vm1223
  %v1225 = vsel %vm1224, %v1217, %v1221
  %v1226 = vand.u32 2147483647, %v640
  %vm1227 = vcmp.eq.f32.partialorder %v1226, 8.507059e+37
  %v1228 = vand.u32 %v640, 2147483648
  %v1229 = vor.u32 1.1754944e-38, %v1228
  %v1230 = vsel %vm1227, %v1229, %v1225
  %v1231 = vmul.f32 1.0, %v1230
  %v1232 = vrcp.pop %v641
  %v1233 = vmul.f32 %v641, %v1232
  %v1234 = vsub.f32 1.0, %v1233
  %v1235 = vmul.f32 %v1232, %v1234
  %v1236 = vadd.f32 %v1232, %v1235
  %vm1237 = vweird.f32 %v641
  %vm1238 = vweird.f32 %v1232
  %vm1239 = vmor %vm1237, %vm1238
  %v1240 = vsel %vm1239, %v1232, %v1236
  %v1241 = vand.u32 2147483647, %v641
  %vm1242 = vcmp.eq.f32.partialorder %v1241, 8.507059e+37
  %v1243 = vand.u32 %v641, 2147483648
  %v1244 = vor.u32 1.1754944e-38, %v1243
  %v1245 = vsel %vm1242, %v1244, %v1240
  %v1246 = vmul.f32 1.0, %v1245
  %v1247 = vrcp.pop %v642
  %v1248 = vmul.f32 %v642, %v1247
  %v1249 = vsub.f32 1.0, %v1248
  %v1250 = vmul.f32 %v1247, %v1249
  %v1251 = vadd.f32 %v1247, %v1250
  %vm1252 = vweird.f32 %v642
  %vm1253 = vweird.f32 %v1247
  %vm1254 = vmor %vm1252, %vm1253
  %v1255 = vsel %vm1254, %v1247, %v1251
  %v1256 = vand.u32 2147483647, %v642
  %vm1257 = vcmp.eq.f32.partialorder %v1256, 8.507059e+37
  %v1258 = vand.u32 %v642, 2147483648
  %v1259 = vor.u32 1.1754944e-38, %v1258
  %v1260 = vsel %vm1257, %v1259, %v1255
  %v1261 = vmul.f32 1.0, %v1260
  %v1262 = vrcp.pop %v643
  %v1263 = vmul.f32 %v643, %v1262
  %v1264 = vsub.f32 1.0, %v1263
  %v1265 = vmul.f32 %v1262, %v1264
  %v1266 = vadd.f32 %v1262, %v1265
  %vm1267 = vweird.f32 %v643
  %vm1268 = vweird.f32 %v1262
  %vm1269 = vmor %vm1267, %vm1268
  %v1270 = vsel %vm1269, %v1262, %v1266
  %v1271 = vand.u32 2147483647, %v643
  %vm1272 = vcmp.eq.f32.partialorder %v1271, 8.507059e+37
  %v1273 = vand.u32 %v643, 2147483648
  %v1274 = vor.u32 1.1754944e-38, %v1273
  %v1275 = vsel %vm1272, %v1274, %v1270
  %v1276 = vmul.f32 1.0, %v1275
  %v1277 = vrcp.pop %v644
  %v1278 = vmul.f32 %v644, %v1277
  %v1279 = vsub.f32 1.0, %v1278
  %v1280 = vmul.f32 %v1277, %v1279
  %v1281 = vadd.f32 %v1277, %v1280
  %vm1282 = vweird.f32 %v644
  %vm1283 = vweird.f32 %v1277
  %vm1284 = vmor %vm1282, %vm1283
  %v1285 = vsel %vm1284, %v1277, %v1281
  %v1286 = vand.u32 2147483647, %v644
  %vm1287 = vcmp.eq.f32.partialorder %v1286, 8.507059e+37
  %v1288 = vand.u32 %v644, 2147483648
  %v1289 = vor.u32 1.1754944e-38, %v1288
  %v1290 = vsel %vm1287, %v1289, %v1285
  %v1291 = vmul.f32 1.0, %v1290
  %v1292 = vrcp.pop %v645
  %v1293 = vmul.f32 %v645, %v1292
  %v1294 = vsub.f32 1.0, %v1293
  %v1295 = vmul.f32 %v1292, %v1294
  %v1296 = vadd.f32 %v1292, %v1295
  %vm1297 = vweird.f32 %v645
  %vm1298 = vweird.f32 %v1292
  %vm1299 = vmor %vm1297, %vm1298
  %v1300 = vsel %vm1299, %v1292, %v1296
  %v1301 = vand.u32 2147483647, %v645
  %vm1302 = vcmp.eq.f32.partialorder %v1301, 8.507059e+37
  %v1303 = vand.u32 %v645, 2147483648
  %v1304 = vor.u32 1.1754944e-38, %v1303
  %v1305 = vsel %vm1302, %v1304, %v1300
  %v1306 = vmul.f32 1.0, %v1305
  %v1307 = vrcp.pop %v646
  %v1308 = vmul.f32 %v646, %v1307
  %v1309 = vsub.f32 1.0, %v1308
  %v1310 = vmul.f32 %v1307, %v1309
  %v1311 = vadd.f32 %v1307, %v1310
  %vm1312 = vweird.f32 %v646
  %vm1313 = vweird.f32 %v1307
  %vm1314 = vmor %vm1312, %vm1313
  %v1315 = vsel %vm1314, %v1307, %v1311
  %v1316 = vand.u32 2147483647, %v646
  %vm1317 = vcmp.eq.f32.partialorder %v1316, 8.507059e+37
  %v1318 = vand.u32 %v646, 2147483648
  %v1319 = vor.u32 1.1754944e-38, %v1318
  %v1320 = vsel %vm1317, %v1319, %v1315
  %v1321 = vmul.f32 1.0, %v1320
  %v1322 = vrcp.pop %v647
  %v1323 = vmul.f32 %v647, %v1322
  %v1324 = vsub.f32 1.0, %v1323
  %v1325 = vmul.f32 %v1322, %v1324
  %v1326 = vadd.f32 %v1322, %v1325
  %vm1327 = vweird.f32 %v647
  %vm1328 = vweird.f32 %v1322
  %vm1329 = vmor %vm1327, %vm1328
  %v1330 = vsel %vm1329, %v1322, %v1326
  %v1331 = vand.u32 2147483647, %v647
  %vm1332 = vcmp.eq.f32.partialorder %v1331, 8.507059e+37
  %v1333 = vand.u32 %v647, 2147483648
  %v1334 = vor.u32 1.1754944e-38, %v1333
  %v1335 = vsel %vm1332, %v1334, %v1330
  %v1336 = vmul.f32 1.0, %v1335
  %v1337 = vrcp.pop %v648
  %v1338 = vmul.f32 %v648, %v1337
  %v1339 = vsub.f32 1.0, %v1338
  %v1340 = vmul.f32 %v1337, %v1339
  %v1341 = vadd.f32 %v1337, %v1340
  %vm1342 = vweird.f32 %v648
  %vm1343 = vweird.f32 %v1337
  %vm1344 = vmor %vm1342, %vm1343
  %v1345 = vsel %vm1344, %v1337, %v1341
  %v1346 = vand.u32 2147483647, %v648
  %vm1347 = vcmp.eq.f32.partialorder %v1346, 8.507059e+37
  %v1348 = vand.u32 %v648, 2147483648
  %v1349 = vor.u32 1.1754944e-38, %v1348
  %v1350 = vsel %vm1347, %v1349, %v1345
  %v1351 = vmul.f32 1.0, %v1350
  %v1352 = vrcp.pop %v649
  %v1353 = vmul.f32 %v649, %v1352
  %v1354 = vsub.f32 1.0, %v1353
  %v1355 = vmul.f32 %v1352, %v1354
  %v1356 = vadd.f32 %v1352, %v1355
  %vm1357 = vweird.f32 %v649
  %vm1358 = vweird.f32 %v1352
  %vm1359 = vmor %vm1357, %vm1358
  %v1360 = vsel %vm1359, %v1352, %v1356
  %v1361 = vand.u32 2147483647, %v649
  %vm1362 = vcmp.eq.f32.partialorder %v1361, 8.507059e+37
  %v1363 = vand.u32 %v649, 2147483648
  %v1364 = vor.u32 1.1754944e-38, %v1363
  %v1365 = vsel %vm1362, %v1364, %v1360
  %v1366 = vmul.f32 1.0, %v1365
  %v1367 = vrcp.pop %v650
  %v1368 = vmul.f32 %v650, %v1367
  %v1369 = vsub.f32 1.0, %v1368
  %v1370 = vmul.f32 %v1367, %v1369
  %v1371 = vadd.f32 %v1367, %v1370
  %vm1372 = vweird.f32 %v650
  %vm1373 = vweird.f32 %v1367
  %vm1374 = vmor %vm1372, %vm1373
  %v1375 = vsel %vm1374, %v1367, %v1371
  %v1376 = vand.u32 2147483647, %v650
  %vm1377 = vcmp.eq.f32.partialorder %v1376, 8.507059e+37
  %v1378 = vand.u32 %v650, 2147483648
  %v1379 = vor.u32 1.1754944e-38, %v1378
  %v1380 = vsel %vm1377, %v1379, %v1375
  %v1381 = vmul.f32 1.0, %v1380
  %v1382 = vrcp.pop %v651
  %v1383 = vmul.f32 %v651, %v1382
  %v1384 = vsub.f32 1.0, %v1383
  %v1385 = vmul.f32 %v1382, %v1384
  %v1386 = vadd.f32 %v1382, %v1385
  %vm1387 = vweird.f32 %v651
  %vm1388 = vweird.f32 %v1382
  %vm1389 = vmor %vm1387, %vm1388
  %v1390 = vsel %vm1389, %v1382, %v1386
  %v1391 = vand.u32 2147483647, %v651
  %vm1392 = vcmp.eq.f32.partialorder %v1391, 8.507059e+37
  %v1393 = vand.u32 %v651, 2147483648
  %v1394 = vor.u32 1.1754944e-38, %v1393
  %v1395 = vsel %vm1392, %v1394, %v1390
  %v1396 = vmul.f32 1.0, %v1395
  %v1397 = vrcp.pop %v652
  %v1398 = vmul.f32 %v652, %v1397
  %v1399 = vsub.f32 1.0, %v1398
  %v1400 = vmul.f32 %v1397, %v1399
  %v1401 = vadd.f32 %v1397, %v1400
  %vm1402 = vweird.f32 %v652
  %vm1403 = vweird.f32 %v1397
  %vm1404 = vmor %vm1402, %vm1403
  %v1405 = vsel %vm1404, %v1397, %v1401
  %v1406 = vand.u32 2147483647, %v652
  %vm1407 = vcmp.eq.f32.partialorder %v1406, 8.507059e+37
  %v1408 = vand.u32 %v652, 2147483648
  %v1409 = vor.u32 1.1754944e-38, %v1408
  %v1410 = vsel %vm1407, %v1409, %v1405
  %v1411 = vmul.f32 1.0, %v1410
  %v1412 = vrcp.pop %v653
  %v1413 = vmul.f32 %v653, %v1412
  %v1414 = vsub.f32 1.0, %v1413
  %v1415 = vmul.f32 %v1412, %v1414
  %v1416 = vadd.f32 %v1412, %v1415
  %vm1417 = vweird.f32 %v653
  %vm1418 = vweird.f32 %v1412
  %vm1419 = vmor %vm1417, %vm1418
  %v1420 = vsel %vm1419, %v1412, %v1416
  %v1421 = vand.u32 2147483647, %v653
  %vm1422 = vcmp.eq.f32.partialorder %v1421, 8.507059e+37
  %v1423 = vand.u32 %v653, 2147483648
  %v1424 = vor.u32 1.1754944e-38, %v1423
  %v1425 = vsel %vm1422, %v1424, %v1420
  %v1426 = vmul.f32 1.0, %v1425
  %v1427 = vrcp.pop %v654
  %v1428 = vmul.f32 %v654, %v1427
  %v1429 = vsub.f32 1.0, %v1428
  %v1430 = vmul.f32 %v1427, %v1429
  %v1431 = vadd.f32 %v1427, %v1430
  %vm1432 = vweird.f32 %v654
  %vm1433 = vweird.f32 %v1427
  %vm1434 = vmor %vm1432, %vm1433
  %v1435 = vsel %vm1434, %v1427, %v1431
  %v1436 = vand.u32 2147483647, %v654
  %vm1437 = vcmp.eq.f32.partialorder %v1436, 8.507059e+37
  %v1438 = vand.u32 %v654, 2147483648
  %v1439 = vor.u32 1.1754944e-38, %v1438
  %v1440 = vsel %vm1437, %v1439, %v1435
  %v1441 = vmul.f32 1.0, %v1440
  %v1442 = vrcp.pop %v655
  %v1443 = vmul.f32 %v655, %v1442
  %v1444 = vsub.f32 1.0, %v1443
  %v1445 = vmul.f32 %v1442, %v1444
  %v1446 = vadd.f32 %v1442, %v1445
  %vm1447 = vweird.f32 %v655
  %vm1448 = vweird.f32 %v1442
  %vm1449 = vmor %vm1447, %vm1448
  %v1450 = vsel %vm1449, %v1442, %v1446
  %v1451 = vand.u32 2147483647, %v655
  %vm1452 = vcmp.eq.f32.partialorder %v1451, 8.507059e+37
  %v1453 = vand.u32 %v655, 2147483648
  %v1454 = vor.u32 1.1754944e-38, %v1453
  %v1455 = vsel %vm1452, %v1454, %v1450
  %v1456 = vmul.f32 1.0, %v1455
  %v1457 = vrcp.pop %v656
  %v1458 = vmul.f32 %v656, %v1457
  %v1459 = vsub.f32 1.0, %v1458
  %v1460 = vmul.f32 %v1457, %v1459
  %v1461 = vadd.f32 %v1457, %v1460
  %vm1462 = vweird.f32 %v656
  %vm1463 = vweird.f32 %v1457
  %vm1464 = vmor %vm1462, %vm1463
  %v1465 = vsel %vm1464, %v1457, %v1461
  %v1466 = vand.u32 2147483647, %v656
  %vm1467 = vcmp.eq.f32.partialorder %v1466, 8.507059e+37
  %v1468 = vand.u32 %v656, 2147483648
  %v1469 = vor.u32 1.1754944e-38, %v1468
  %v1470 = vsel %vm1467, %v1469, %v1465
  %v1471 = vmul.f32 1.0, %v1470
  %v1472 = vrcp.pop %v657
  %v1473 = vmul.f32 %v657, %v1472
  %v1474 = vsub.f32 1.0, %v1473
  %v1475 = vmul.f32 %v1472, %v1474
  %v1476 = vadd.f32 %v1472, %v1475
  %vm1477 = vweird.f32 %v657
  %vm1478 = vweird.f32 %v1472
  %vm1479 = vmor %vm1477, %vm1478
  %v1480 = vsel %vm1479, %v1472, %v1476
  %v1481 = vand.u32 2147483647, %v657
  %vm1482 = vcmp.eq.f32.partialorder %v1481, 8.507059e+37
  %v1483 = vand.u32 %v657, 2147483648
  %v1484 = vor.u32 1.1754944e-38, %v1483
  %v1485 = vsel %vm1482, %v1484, %v1480
  %v1486 = vmul.f32 1.0, %v1485
  %v1487 = vrcp.pop %v658
  %v1488 = vmul.f32 %v658, %v1487
  %v1489 = vsub.f32 1.0, %v1488
  %v1490 = vmul.f32 %v1487, %v1489
  %v1491 = vadd.f32 %v1487, %v1490
  %vm1492 = vweird.f32 %v658
  %vm1493 = vweird.f32 %v1487
  %vm1494 = vmor %vm1492, %vm1493
  %v1495 = vsel %vm1494, %v1487, %v1491
  %v1496 = vand.u32 2147483647, %v658
  %vm1497 = vcmp.eq.f32.partialorder %v1496, 8.507059e+37
  %v1498 = vand.u32 %v658, 2147483648
  %v1499 = vor.u32 1.1754944e-38, %v1498
  %v1500 = vsel %vm1497, %v1499, %v1495
  %v1501 = vmul.f32 1.0, %v1500
  %v1502 = vrcp.pop %v659
  %v1503 = vmul.f32 %v659, %v1502
  %v1504 = vsub.f32 1.0, %v1503
  %v1505 = vmul.f32 %v1502, %v1504
  %v1506 = vadd.f32 %v1502, %v1505
  %vm1507 = vweird.f32 %v659
  %vm1508 = vweird.f32 %v1502
  %vm1509 = vmor %vm1507, %vm1508
  %v1510 = vsel %vm1509, %v1502, %v1506
  %v1511 = vand.u32 2147483647, %v659
  %vm1512 = vcmp.eq.f32.partialorder %v1511, 8.507059e+37
  %v1513 = vand.u32 %v659, 2147483648
  %v1514 = vor.u32 1.1754944e-38, %v1513
  %v1515 = vsel %vm1512, %v1514, %v1510
  %v1516 = vmul.f32 1.0, %v1515
  %v1517 = vrcp.pop %v660
  %v1518 = vmul.f32 %v660, %v1517
  %v1519 = vsub.f32 1.0, %v1518
  %v1520 = vmul.f32 %v1517, %v1519
  %v1521 = vadd.f32 %v1517, %v1520
  %vm1522 = vweird.f32 %v660
  %vm1523 = vweird.f32 %v1517
  %vm1524 = vmor %vm1522, %vm1523
  %v1525 = vsel %vm1524, %v1517, %v1521
  %v1526 = vand.u32 2147483647, %v660
  %vm1527 = vcmp.eq.f32.partialorder %v1526, 8.507059e+37
  %v1528 = vand.u32 %v660, 2147483648
  %v1529 = vor.u32 1.1754944e-38, %v1528
  %v1530 = vsel %vm1527, %v1529, %v1525
  %v1531 = vmul.f32 1.0, %v1530
  %v1532 = vrcp.pop %v661
  %v1533 = vmul.f32 %v661, %v1532
  %v1534 = vsub.f32 1.0, %v1533
  %v1535 = vmul.f32 %v1532, %v1534
  %v1536 = vadd.f32 %v1532, %v1535
  %vm1537 = vweird.f32 %v661
  %vm1538 = vweird.f32 %v1532
  %vm1539 = vmor %vm1537, %vm1538
  %v1540 = vsel %vm1539, %v1532, %v1536
  %v1541 = vand.u32 2147483647, %v661
  %vm1542 = vcmp.eq.f32.partialorder %v1541, 8.507059e+37
  %v1543 = vand.u32 %v661, 2147483648
  %v1544 = vor.u32 1.1754944e-38, %v1543
  %v1545 = vsel %vm1542, %v1544, %v1540
  %v1546 = vmul.f32 1.0, %v1545
  %v1547 = vrcp.pop %v662
  %v1548 = vmul.f32 %v662, %v1547
  %v1549 = vsub.f32 1.0, %v1548
  %v1550 = vmul.f32 %v1547, %v1549
  %v1551 = vadd.f32 %v1547, %v1550
  %vm1552 = vweird.f32 %v662
  %vm1553 = vweird.f32 %v1547
  %vm1554 = vmor %vm1552, %vm1553
  %v1555 = vsel %vm1554, %v1547, %v1551
  %v1556 = vand.u32 2147483647, %v662
  %vm1557 = vcmp.eq.f32.partialorder %v1556, 8.507059e+37
  %v1558 = vand.u32 %v662, 2147483648
  %v1559 = vor.u32 1.1754944e-38, %v1558
  %v1560 = vsel %vm1557, %v1559, %v1555
  %v1561 = vmul.f32 1.0, %v1560
  %v1562 = vrcp.pop %v663
  %v1563 = vmul.f32 %v663, %v1562
  %v1564 = vsub.f32 1.0, %v1563
  %v1565 = vmul.f32 %v1562, %v1564
  %v1566 = vadd.f32 %v1562, %v1565
  %vm1567 = vweird.f32 %v663
  %vm1568 = vweird.f32 %v1562
  %vm1569 = vmor %vm1567, %vm1568
  %v1570 = vsel %vm1569, %v1562, %v1566
  %v1571 = vand.u32 2147483647, %v663
  %vm1572 = vcmp.eq.f32.partialorder %v1571, 8.507059e+37
  %v1573 = vand.u32 %v663, 2147483648
  %v1574 = vor.u32 1.1754944e-38, %v1573
  %v1575 = vsel %vm1572, %v1574, %v1570
  %v1576 = vmul.f32 1.0, %v1575
  %v1577 = vrcp.pop %v664
  %v1578 = vmul.f32 %v664, %v1577
  %v1579 = vsub.f32 1.0, %v1578
  %v1580 = vmul.f32 %v1577, %v1579
  %v1581 = vadd.f32 %v1577, %v1580
  %vm1582 = vweird.f32 %v664
  %vm1583 = vweird.f32 %v1577
  %vm1584 = vmor %vm1582, %vm1583
  %v1585 = vsel %vm1584, %v1577, %v1581
  %v1586 = vand.u32 2147483647, %v664
  %vm1587 = vcmp.eq.f32.partialorder %v1586, 8.507059e+37
  %v1588 = vand.u32 %v664, 2147483648
  %v1589 = vor.u32 1.1754944e-38, %v1588
  %v1590 = vsel %vm1587, %v1589, %v1585
  %v1591 = vmul.f32 1.0, %v1590
  %v1592 = vrcp.pop %v665
  %v1593 = vmul.f32 %v665, %v1592
  %v1594 = vsub.f32 1.0, %v1593
  %v1595 = vmul.f32 %v1592, %v1594
  %v1596 = vadd.f32 %v1592, %v1595
  %vm1597 = vweird.f32 %v665
  %vm1598 = vweird.f32 %v1592
  %vm1599 = vmor %vm1597, %vm1598
  %v1600 = vsel %vm1599, %v1592, %v1596
  %v1601 = vand.u32 2147483647, %v665
  %vm1602 = vcmp.eq.f32.partialorder %v1601, 8.507059e+37
  %v1603 = vand.u32 %v665, 2147483648
  %v1604 = vor.u32 1.1754944e-38, %v1603
  %v1605 = vsel %vm1602, %v1604, %v1600
  %v1606 = vmul.f32 1.0, %v1605
  %v1607 = vrcp.pop %v666
  %v1608 = vmul.f32 %v666, %v1607
  %v1609 = vsub.f32 1.0, %v1608
  %v1610 = vmul.f32 %v1607, %v1609
  %v1611 = vadd.f32 %v1607, %v1610
  %vm1612 = vweird.f32 %v666
  %vm1613 = vweird.f32 %v1607
  %vm1614 = vmor %vm1612, %vm1613
  %v1615 = vsel %vm1614, %v1607, %v1611
  %v1616 = vand.u32 2147483647, %v666
  %vm1617 = vcmp.eq.f32.partialorder %v1616, 8.507059e+37
  %v1618 = vand.u32 %v666, 2147483648
  %v1619 = vor.u32 1.1754944e-38, %v1618
  %v1620 = vsel %vm1617, %v1619, %v1615
  %v1621 = vmul.f32 1.0, %v1620
  %v1622 = vrcp.pop %v667
  %v1623 = vmul.f32 %v667, %v1622
  %v1624 = vsub.f32 1.0, %v1623
  %v1625 = vmul.f32 %v1622, %v1624
  %v1626 = vadd.f32 %v1622, %v1625
  %vm1627 = vweird.f32 %v667
  %vm1628 = vweird.f32 %v1622
  %vm1629 = vmor %vm1627, %vm1628
  %v1630 = vsel %vm1629, %v1622, %v1626
  %v1631 = vand.u32 2147483647, %v667
  %vm1632 = vcmp.eq.f32.partialorder %v1631, 8.507059e+37
  %v1633 = vand.u32 %v667, 2147483648
  %v1634 = vor.u32 1.1754944e-38, %v1633
  %v1635 = vsel %vm1632, %v1634, %v1630
  %v1636 = vmul.f32 1.0, %v1635
  %v1637 = vrcp.pop %v668
  %v1638 = vmul.f32 %v668, %v1637
  %v1639 = vsub.f32 1.0, %v1638
  %v1640 = vmul.f32 %v1637, %v1639
  %v1641 = vadd.f32 %v1637, %v1640
  %vm1642 = vweird.f32 %v668
  %vm1643 = vweird.f32 %v1637
  %vm1644 = vmor %vm1642, %vm1643
  %v1645 = vsel %vm1644, %v1637, %v1641
  %v1646 = vand.u32 2147483647, %v668
  %vm1647 = vcmp.eq.f32.partialorder %v1646, 8.507059e+37
  %v1648 = vand.u32 %v668, 2147483648
  %v1649 = vor.u32 1.1754944e-38, %v1648
  %v1650 = vsel %vm1647, %v1649, %v1645
  %v1651 = vmul.f32 1.0, %v1650
  %v1652 = vrcp.pop %v669
  %v1653 = vmul.f32 %v669, %v1652
  %v1654 = vsub.f32 1.0, %v1653
  %v1655 = vmul.f32 %v1652, %v1654
  %v1656 = vadd.f32 %v1652, %v1655
  %vm1657 = vweird.f32 %v669
  %vm1658 = vweird.f32 %v1652
  %vm1659 = vmor %vm1657, %vm1658
  %v1660 = vsel %vm1659, %v1652, %v1656
  %v1661 = vand.u32 2147483647, %v669
  %vm1662 = vcmp.eq.f32.partialorder %v1661, 8.507059e+37
  %v1663 = vand.u32 %v669, 2147483648
  %v1664 = vor.u32 1.1754944e-38, %v1663
  %v1665 = vsel %vm1662, %v1664, %v1660
  %v1666 = vmul.f32 1.0, %v1665
  %v1667 = vrcp.pop %v670
  %v1668 = vmul.f32 %v670, %v1667
  %v1669 = vsub.f32 1.0, %v1668
  %v1670 = vmul.f32 %v1667, %v1669
  %v1671 = vadd.f32 %v1667, %v1670
  %vm1672 = vweird.f32 %v670
  %vm1673 = vweird.f32 %v1667
  %vm1674 = vmor %vm1672, %vm1673
  %v1675 = vsel %vm1674, %v1667, %v1671
  %v1676 = vand.u32 2147483647, %v670
  %vm1677 = vcmp.eq.f32.partialorder %v1676, 8.507059e+37
  %v1678 = vand.u32 %v670, 2147483648
  %v1679 = vor.u32 1.1754944e-38, %v1678
  %v1680 = vsel %vm1677, %v1679, %v1675
  %v1681 = vmul.f32 1.0, %v1680
  %v1682 = vrcp.pop %v671
  %v1683 = vmul.f32 %v671, %v1682
  %v1684 = vsub.f32 1.0, %v1683
  %v1685 = vmul.f32 %v1682, %v1684
  %v1686 = vadd.f32 %v1682, %v1685
  %vm1687 = vweird.f32 %v671
  %vm1688 = vweird.f32 %v1682
  %vm1689 = vmor %vm1687, %vm1688
  %v1690 = vsel %vm1689, %v1682, %v1686
  %v1691 = vand.u32 2147483647, %v671
  %vm1692 = vcmp.eq.f32.partialorder %v1691, 8.507059e+37
  %v1693 = vand.u32 %v671, 2147483648
  %v1694 = vor.u32 1.1754944e-38, %v1693
  %v1695 = vsel %vm1692, %v1694, %v1690
  %v1696 = vmul.f32 1.0, %v1695
  %v1697 = vrcp.pop %v672
  %v1698 = vmul.f32 %v672, %v1697
  %v1699 = vsub.f32 1.0, %v1698
  %v1700 = vmul.f32 %v1697, %v1699
  %v1701 = vadd.f32 %v1697, %v1700
  %vm1702 = vweird.f32 %v672
  %vm1703 = vweird.f32 %v1697
  %vm1704 = vmor %vm1702, %vm1703
  %v1705 = vsel %vm1704, %v1697, %v1701
  %v1706 = vand.u32 2147483647, %v672
  %vm1707 = vcmp.eq.f32.partialorder %v1706, 8.507059e+37
  %v1708 = vand.u32 %v672, 2147483648
  %v1709 = vor.u32 1.1754944e-38, %v1708
  %v1710 = vsel %vm1707, %v1709, %v1705
  %v1711 = vmul.f32 1.0, %v1710
  %v1712 = vrcp.pop %v673
  %v1713 = vmul.f32 %v673, %v1712
  %v1714 = vsub.f32 1.0, %v1713
  %v1715 = vmul.f32 %v1712, %v1714
  %v1716 = vadd.f32 %v1712, %v1715
  %vm1717 = vweird.f32 %v673
  %vm1718 = vweird.f32 %v1712
  %vm1719 = vmor %vm1717, %vm1718
  %v1720 = vsel %vm1719, %v1712, %v1716
  %v1721 = vand.u32 2147483647, %v673
  %vm1722 = vcmp.eq.f32.partialorder %v1721, 8.507059e+37
  %v1723 = vand.u32 %v673, 2147483648
  %v1724 = vor.u32 1.1754944e-38, %v1723
  %v1725 = vsel %vm1722, %v1724, %v1720
  %v1726 = vmul.f32 1.0, %v1725
  %v1727 = vrcp.pop %v674
  %v1728 = vmul.f32 %v674, %v1727
  %v1729 = vsub.f32 1.0, %v1728
  %v1730 = vmul.f32 %v1727, %v1729
  %v1731 = vadd.f32 %v1727, %v1730
  %vm1732 = vweird.f32 %v674
  %vm1733 = vweird.f32 %v1727
  %vm1734 = vmor %vm1732, %vm1733
  %v1735 = vsel %vm1734, %v1727, %v1731
  %v1736 = vand.u32 2147483647, %v674
  %vm1737 = vcmp.eq.f32.partialorder %v1736, 8.507059e+37
  %v1738 = vand.u32 %v674, 2147483648
  %v1739 = vor.u32 1.1754944e-38, %v1738
  %v1740 = vsel %vm1737, %v1739, %v1735
  %v1741 = vmul.f32 1.0, %v1740
  %v1742 = vrcp.pop %v675
  %v1743 = vmul.f32 %v675, %v1742
  %v1744 = vsub.f32 1.0, %v1743
  %v1745 = vmul.f32 %v1742, %v1744
  %v1746 = vadd.f32 %v1742, %v1745
  %vm1747 = vweird.f32 %v675
  %vm1748 = vweird.f32 %v1742
  %vm1749 = vmor %vm1747, %vm1748
  %v1750 = vsel %vm1749, %v1742, %v1746
  %v1751 = vand.u32 2147483647, %v675
  %vm1752 = vcmp.eq.f32.partialorder %v1751, 8.507059e+37
  %v1753 = vand.u32 %v675, 2147483648
  %v1754 = vor.u32 1.1754944e-38, %v1753
  %v1755 = vsel %vm1752, %v1754, %v1750
  %v1756 = vmul.f32 1.0, %v1755
  %v1757 = vrcp.pop %v676
  %v1758 = vmul.f32 %v676, %v1757
  %v1759 = vsub.f32 1.0, %v1758
  %v1760 = vmul.f32 %v1757, %v1759
  %v1761 = vadd.f32 %v1757, %v1760
  %vm1762 = vweird.f32 %v676
  %vm1763 = vweird.f32 %v1757
  %vm1764 = vmor %vm1762, %vm1763
  %v1765 = vsel %vm1764, %v1757, %v1761
  %v1766 = vand.u32 2147483647, %v676
  %vm1767 = vcmp.eq.f32.partialorder %v1766, 8.507059e+37
  %v1768 = vand.u32 %v676, 2147483648
  %v1769 = vor.u32 1.1754944e-38, %v1768
  %v1770 = vsel %vm1767, %v1769, %v1765
  %v1771 = vmul.f32 1.0, %v1770
  %1772 = vst [vmem:[%s3] sm:$0xff] %v691
  %1773 = vst [vmem:[%s3 + $0x8] sm:$0xff] %v706
  %1774 = vst [vmem:[%s3 + $0x10] sm:$0xff] %v721
  %1775 = vst [vmem:[%s3 + $0x18] sm:$0xff] %v736
  %1776 = vst [vmem:[%s3 + $0x20] sm:$0xff] %v751
  %1777 = vst [vmem:[%s3 + $0x28] sm:$0xff] %v766
  %1778 = vst [vmem:[%s3 + $0x30] sm:$0xff] %v781
  %1779 = vst [vmem:[%s3 + $0x38] sm:$0xff] %v796
  %1780 = vst [vmem:[%s3 + $0x40] sm:$0xff] %v811
  %1781 = vst [vmem:[%s3 + $0x48] sm:$0xff] %v826
  %1782 = vst [vmem:[%s3 + $0x50] sm:$0xff] %v841
  %1783 = vst [vmem:[%s3 + $0x58] sm:$0xff] %v856
  %1784 = vst [vmem:[%s3 + $0x60] sm:$0xff] %v871
  %1785 = vst [vmem:[%s3 + $0x68] sm:$0xff] %v886
  %1786 = vst [vmem:[%s3 + $0x70] sm:$0xff] %v901
  %1787 = vst [vmem:[%s3 + $0x78] sm:$0xff] %v916
  %1788 = vst [vmem:[%s3 + $0x80] sm:$0xff] %v931
  %1789 = vst [vmem:[%s3 + $0x88] sm:$0xff] %v946
  %1790 = vst [vmem:[%s3 + $0x90] sm:$0xff] %v961
  %1791 = vst [vmem:[%s3 + $0x98] sm:$0xff] %v976
  %1792 = vst [vmem:[%s3 + $0xa0] sm:$0xff] %v991
  %1793 = vst [vmem:[%s3 + $0xa8] sm:$0xff] %v1006
  %1794 = vst [vmem:[%s3 + $0xb0] sm:$0xff] %v1021
  %1795 = vst [vmem:[%s3 + $0xb8] sm:$0xff] %v1036
  %1796 = vst [vmem:[%s3 + $0xc0] sm:$0xff] %v1051
  %1797 = vst [vmem:[%s3 + $0xc8] sm:$0xff] %v1066
  %1798 = vst [vmem:[%s3 + $0xd0] sm:$0xff] %v1081
  %1799 = vst [vmem:[%s3 + $0xd8] sm:$0xff] %v1096
  %1800 = vst [vmem:[%s3 + $0xe0] sm:$0xff] %v1111
  %1801 = vst [vmem:[%s3 + $0xe8] sm:$0xff] %v1126
  %1802 = vst [vmem:[%s3 + $0xf0] sm:$0xff] %v1141
  %1803 = vst [vmem:[%s3 + $0xf8] sm:$0xff] %v1156
  %1804 = vst [vmem:[%s3 + $0x100] sm:$0xff] %v1171
  %1805 = vst [vmem:[%s3 + $0x108] sm:$0xff] %v1186
  %1806 = vst [vmem:[%s3 + $0x110] sm:$0xff] %v1201
  %1807 = vst [vmem:[%s3 + $0x118] sm:$0xff] %v1216
  %1808 = vst [vmem:[%s3 + $0x120] sm:$0xff] %v1231
  %1809 = vst [vmem:[%s3 + $0x128] sm:$0xff] %v1246
  %1810 = vst [vmem:[%s3 + $0x130] sm:$0xff] %v1261
  %1811 = vst [vmem:[%s3 + $0x138] sm:$0xff] %v1276
  %1812 = vst [vmem:[%s3 + $0x140] sm:$0xff] %v1291
  %1813 = vst [vmem:[%s3 + $0x148] sm:$0xff] %v1306
  %1814 = vst [vmem:[%s3 + $0x150] sm:$0xff] %v1321
  %1815 = vst [vmem:[%s3 + $0x158] sm:$0xff] %v1336
  %1816 = vst [vmem:[%s3 + $0x160] sm:$0xff] %v1351
  %1817 = vst [vmem:[%s3 + $0x168] sm:$0xff] %v1366
  %1818 = vst [vmem:[%s3 + $0x170] sm:$0xff] %v1381
  %1819 = vst [vmem:[%s3 + $0x178] sm:$0xff] %v1396
  %1820 = vst [vmem:[%s3 + $0x180] sm:$0xff] %v1411
  %1821 = vst [vmem:[%s3 + $0x188] sm:$0xff] %v1426
  %1822 = vst [vmem:[%s3 + $0x190] sm:$0xff] %v1441
  %1823 = vst [vmem:[%s3 + $0x198] sm:$0xff] %v1456
  %1824 = vst [vmem:[%s3 + $0x1a0] sm:$0xff] %v1471
  %1825 = vst [vmem:[%s3 + $0x1a8] sm:$0xff] %v1486
  %1826 = vst [vmem:[%s3 + $0x1b0] sm:$0xff] %v1501
  %1827 = vst [vmem:[%s3 + $0x1b8] sm:$0xff] %v1516
  %1828 = vst [vmem:[%s3 + $0x1c0] sm:$0xff] %v1531
  %1829 = vst [vmem:[%s3 + $0x1c8] sm:$0xff] %v1546
  %1830 = vst [vmem:[%s3 + $0x1d0] sm:$0xff] %v1561
  %1831 = vst [vmem:[%s3 + $0x1d8] sm:$0xff] %v1576
  %1832 = vst [vmem:[%s3 + $0x1e0] sm:$0xff] %v1591
  %1833 = vst [vmem:[%s3 + $0x1e8] sm:$0xff] %v1606
  %1834 = vst [vmem:[%s3 + $0x1f0] sm:$0xff] %v1621
  %1835 = vst [vmem:[%s3 + $0x1f8] sm:$0xff] %v1636
  %1836 = vst [vmem:[%s3 + $0x200] sm:$0xff] %v1651
  %1837 = vst [vmem:[%s3 + $0x208] sm:$0xff] %v1666
  %1838 = vst [vmem:[%s3 + $0x210] sm:$0xff] %v1681
  %1839 = vst [vmem:[%s3 + $0x218] sm:$0xff] %v1696
  %1840 = vst [vmem:[%s3 + $0x220] sm:$0xff] %v1711
  %1841 = vst [vmem:[%s3 + $0x228] sm:$0xff] %v1726
  %1842 = vst [vmem:[%s3 + $0x230] sm:$0xff] %v1741
  %1843 = vst [vmem:[%s3 + $0x238] sm:$0xff] %v1756
  %1844 = vst [vmem:[%s3 + $0x240] sm:$0x3] %v1771
  // Predicated region
  $region14: #{mnist_conv_decoder_forward.7} parent=0 // pred_check
    _
  $region15: #{mnist_conv_decoder_forward.7} parent=0 // pred_check_branch
    %1846 = sbr.rel (0) target = $region17
  $region16: #{mnist_conv_decoder_forward.7} parent=0 // pred_region
    _
  $region17: #{mnist_conv_decoder_forward.7} parent=0 // pred_fallthru
    _
  // Predicated region
  $region18: #{mnist_conv_decoder_forward.7} parent=0 // pred_check
    _
  $region19: #{mnist_conv_decoder_forward.7} parent=0 // pred_check_branch
    %1848 = sbr.rel (0) target = $region21
  $region20: #{mnist_conv_decoder_forward.7} parent=0 // pred_region
    _
  $region21: #{mnist_conv_decoder_forward.7} parent=0 // pred_fallthru
    _

</llo_original>
